<compile_context>
chip_gen: v6e
topology: v6e:2x2x1
jax: 0.10.0
libtpu: 0.0.40
codegen_flags: <defaults>
</compile_context>

<pallas_src>
import math
import functools

import jax
import jax.numpy as jnp
from jax import lax
from jax.experimental import pallas as pl
from jax.experimental.pallas import tpu as pltpu

# ----------------------- model config (small, decode-mode) -----------------------
DIM = 32
N_LAYERS = 2
N_HEADS = 4
N_KV_HEADS = 2
VOCAB = 64
MULTIPLE_OF = 16
NORM_EPS = 1e-5
MAX_BATCH = 2
MAX_SEQ = 16
HEAD_DIM = DIM // N_HEADS            # 8
N_REP = N_HEADS // N_KV_HEADS        # 2
Q_DIM = N_HEADS * HEAD_DIM           # 32
KV_DIM = N_KV_HEADS * HEAD_DIM       # 16
POS_TABLE = 2 * MAX_SEQ              # rope table length (matches reference)


def _ffn_hidden_dim(dim, multiple_of, ffn_dim_multiplier=None):
    hidden = 4 * dim
    hidden = int(2 * hidden / 3)
    if ffn_dim_multiplier is not None:
        hidden = int(ffn_dim_multiplier * hidden)
    return multiple_of * ((hidden + multiple_of - 1) // multiple_of)


HIDDEN = _ffn_hidden_dim(DIM, MULTIPLE_OF)   # 96 for DIM=32, MULTIPLE_OF=16


# ------------------------------- fused Pallas kernel -------------------------------


def _decode_kernel(start_ref, tok_ref, emb_ref, cos_ref, sin_ref,
                   rotq_ref, rotk_ref, anorm_ref, fnorm_ref,
                   wqkv_ref, wo_ref, w1_ref, w3_ref, w2_ref,
                   onorm_ref, wout_ref, ck_in_ref, cv_in_ref,
                   logits_ref, ck_out_ref, cv_out_ref,
                   *, batch, eps, scale):
    sp = start_ref[0]                                         # decode position (scalar)

    def rmsnorm(x, w):                                        # x [B,D], w [1,D]
        ms = jnp.mean(x * x, axis=-1, keepdims=True)
        return x * lax.rsqrt(ms + eps) * w

    # ---- token embedding (gather-free: one-hot @ table) ----
    tok = tok_ref[...]                                        # [B, 1] int32
    vocab_ids = lax.broadcasted_iota(jnp.int32, (batch, VOCAB), 1)
    onehot = (vocab_ids == tok).astype(jnp.float32)
    h = jnp.dot(onehot, emb_ref[...], preferred_element_type=jnp.float32)   # [B, DIM]

    # ---- rope row for the current position (interleaved convention) ----
    cos_q = cos_ref[pl.ds(sp, 1), :]                          # [1, Q_DIM]
    sin_q = sin_ref[pl.ds(sp, 1), :]
    cos_k = cos_q[:, :KV_DIM]
    sin_k = sin_q[:, :KV_DIM]
    rot_q = rotq_ref[...]                                     # [Q_DIM, Q_DIM] pair-swap
    rot_k = rotk_ref[...]                                     # [KV_DIM, KV_DIM]

    pos_ids = lax.broadcasted_iota(jnp.int32, (1, MAX_SEQ), 1)
    t_ids = lax.broadcasted_iota(jnp.int32, (batch, MAX_SEQ, KV_DIM), 1)

    for li in range(N_LAYERS):
        # -------------------- attention block --------------------
        xn = rmsnorm(h, anorm_ref[li])
        qkv = jnp.dot(xn, wqkv_ref[li], preferred_element_type=jnp.float32)  # [B, 64]
        q = qkv[:, :Q_DIM]                                    # [B, 32]
        k = qkv[:, Q_DIM:Q_DIM + KV_DIM]                      # [B, 16]
        v = qkv[:, Q_DIM + KV_DIM:]                           # [B, 16]

        # RoPE: x*cos + pair_swap(x)*sin
        q = q * cos_q + jnp.dot(q, rot_q, preferred_element_type=jnp.float32) * sin_q
        k = k * cos_k + jnp.dot(k, rot_k, preferred_element_type=jnp.float32) * sin_k

        # KV-cache: merge old rows with new row at position sp (static shapes)
        old_k = ck_in_ref[li, pl.ds(0, batch)]                # [B, S, KV_DIM]
        old_v = cv_in_ref[li, pl.ds(0, batch)]
        keys = jnp.where(t_ids == sp, k[:, None, :], old_k)
        vals = jnp.where(t_ids == sp, v[:, None, :], old_v)
        ck_out_ref[li, pl.ds(0, batch)] = keys
        cv_out_ref[li, pl.ds(0, batch)] = vals
        if batch < MAX_BATCH:                                 # keep untouched batch rows
            ck_out_ref[li, pl.ds(batch, MAX_BATCH - batch)] = \
                ck_in_ref[li, pl.ds(batch, MAX_BATCH - batch)]
            cv_out_ref[li, pl.ds(batch, MAX_BATCH - batch)] = \
                cv_in_ref[li, pl.ds(batch, MAX_BATCH - batch)]

        # GQA attention over the full (masked) cache — fully unrolled, tiny 2-D dots
        attn_rows = []
        for b in range(batch):
            k_b = keys[b]                                     # [S, KV_DIM]
            v_b = vals[b]
            head_outs = []
            for hq in range(N_HEADS):
                kvh = hq // N_REP
                qv = q[b:b + 1, hq * HEAD_DIM:(hq + 1) * HEAD_DIM]        # [1, HD]
                km = k_b[:, kvh * HEAD_DIM:(kvh + 1) * HEAD_DIM]          # [S, HD]
                vm = v_b[:, kvh * HEAD_DIM:(kvh + 1) * HEAD_DIM]          # [S, HD]
                s = lax.dot_general(qv, km, (((1,), (1,)), ((), ())),
                                    preferred_element_type=jnp.float32) * scale  # [1,S]
                s = jnp.where(pos_ids <= sp, s, -1e30)        # mask t > start_pos
                m = jnp.max(s, axis=-1, keepdims=True)
                p = jnp.exp(s - m)
                p = p / jnp.sum(p, axis=-1, keepdims=True)
                head_outs.append(jnp.dot(p, vm, preferred_element_type=jnp.float32))
            attn_rows.append(jnp.concatenate(head_outs, axis=-1))         # [1, Q_DIM]
        attn = jnp.concatenate(attn_rows, axis=0)                          # [B, Q_DIM]

        h = h + jnp.dot(attn, wo_ref[li], preferred_element_type=jnp.float32)

        # -------------------- feed-forward block (SwiGLU) --------------------
        fn = rmsnorm(h, fnorm_ref[li])
        h1 = jnp.dot(fn, w1_ref[li], preferred_element_type=jnp.float32)   # [B, HIDDEN]
        h3 = jnp.dot(fn, w3_ref[li], preferred_element_type=jnp.float32)
        swish = h1 * (1.0 / (1.0 + jnp.exp(-h1)))                          # SiLU
        h = h + jnp.dot(swish * h3, w2_ref[li], preferred_element_type=jnp.float32)

    # -------------------- final norm + vocab projection --------------------
    hn = rmsnorm(h, onorm_ref[...])
    logits_ref[...] = jnp.dot(hn, wout_ref[...], preferred_element_type=jnp.float32)


# --------------------------------- host-side glue ----------------------------------


def make_rope_tables():
    inv = 1.0 / (10000.0 ** (jnp.arange(0, HEAD_DIM, 2, dtype=jnp.float32) / HEAD_DIM))
    pos = jnp.arange(POS_TABLE, dtype=jnp.float32)
    freqs = jnp.outer(pos, inv)                                # [P, HD/2]
    cos = jnp.repeat(jnp.cos(freqs), 2, axis=-1)               # [P, HD] (interleaved dup)
    sin = jnp.repeat(jnp.sin(freqs), 2, axis=-1)
    return jnp.tile(cos, (1, N_HEADS)), jnp.tile(sin, (1, N_HEADS))   # [P, Q_DIM]


def pair_swap_matrix(n):
    # y = x @ R  with  y[2i] = -x[2i+1], y[2i+1] = x[2i]
    ev = jnp.arange(0, n, 2)
    od = jnp.arange(1, n, 2)
    r = jnp.zeros((n, n), jnp.float32)
    r = r.at[ev, ev + 1].set(1.0)
    r = r.at[od, od - 1].set(-1.0)
    return r


def init_params(key):
    keys = jax.random.split(key, 2 + 7 * N_LAYERS)
    it = iter(keys)
    params = {"tok_emb": jax.random.normal(next(it), (VOCAB, DIM), jnp.float32) * 0.02,
              "layers": []}
    for _ in range(N_LAYERS):
        params["layers"].append({
            "attn_norm": jnp.ones((DIM,), jnp.float32),
            "ffn_norm": jnp.ones((DIM,), jnp.float32),
            "wq": jax.random.normal(next(it), (DIM, Q_DIM), jnp.float32) * 0.05,
            "wk": jax.random.normal(next(it), (DIM, KV_DIM), jnp.float32) * 0.05,
            "wv": jax.random.normal(next(it), (DIM, KV_DIM), jnp.float32) * 0.05,
            "wo": jax.random.normal(next(it), (Q_DIM, DIM), jnp.float32) * 0.05,
            "w1": jax.random.normal(next(it), (DIM, HIDDEN), jnp.float32) * 0.05,
            "w3": jax.random.normal(next(it), (DIM, HIDDEN), jnp.float32) * 0.05,
            "w2": jax.random.normal(next(it), (HIDDEN, DIM), jnp.float32) * 0.05,
        })
    params["norm"] = jnp.ones((DIM,), jnp.float32)
    params["out"] = jax.random.normal(next(it), (DIM, VOCAB), jnp.float32) * 0.05
    return params


def pack_params(params):
    """Stack per-layer weights (one array per weight kind) and fuse wq|wk|wv."""
    stacked = {k: jnp.stack([lp[k] for lp in params["layers"]])
               for k in params["layers"][0]}
    cos_tab, sin_tab = make_rope_tables()
    return {
        "tok_emb": params["tok_emb"],
        "cos": cos_tab, "sin": sin_tab,
        "rot_q": pair_swap_matrix(Q_DIM), "rot_k": pair_swap_matrix(KV_DIM),
        "attn_norm": stacked["attn_norm"][:, None, :],          # [L, 1, D]
        "ffn_norm": stacked["ffn_norm"][:, None, :],
        "wqkv": jnp.concatenate([stacked["wq"], stacked["wk"], stacked["wv"]], axis=-1),
        "wo": stacked["wo"],
        "w1": stacked["w1"], "w3": stacked["w3"], "w2": stacked["w2"],
        "norm": params["norm"][None, :],                        # [1, D]
        "out": params["out"],
    }


@jax.jit
def decode_step(fp, tokens, start_pos, cache_k, cache_v):
    """One fused decode step.  start_pos is a runtime (1,) int32 array, so the
    same compilation serves every position.  Returns (logits, new_k, new_v)."""
    B = tokens.shape[0]
    kernel = functools.partial(_decode_kernel, batch=B, eps=NORM_EPS,
                               scale=1.0 / math.sqrt(HEAD_DIM))
    vmem = pl.BlockSpec(memory_space=pltpu.MemorySpace.VMEM)
    smem = pl.BlockSpec(memory_space=pltpu.MemorySpace.SMEM)
    logits, new_ck, new_cv = pl.pallas_call(
        kernel,
        out_shape=(jax.ShapeDtypeStruct((B, VOCAB), jnp.float32),
                   jax.ShapeDtypeStruct(cache_k.shape, cache_k.dtype),
                   jax.ShapeDtypeStruct(cache_v.shape, cache_v.dtype)),
        in_specs=[smem] + [vmem] * 17,
        out_specs=(vmem, vmem, vmem),
    )(start_pos, tokens, fp["tok_emb"], fp["cos"], fp["sin"],
      fp["rot_q"], fp["rot_k"], fp["attn_norm"], fp["ffn_norm"],
      fp["wqkv"], fp["wo"], fp["w1"], fp["w3"], fp["w2"],
      fp["norm"], fp["out"], cache_k, cache_v)
    return logits.reshape(B, 1, VOCAB), new_ck, new_cv


if __name__ == "__main__":
    key = jax.random.PRNGKey(0)
    pkey, tkey = jax.random.split(key)
    params = init_params(pkey)
    fp = pack_params(params)

    B = 2
    tokens = jax.random.randint(tkey, (B, 1), 0, VOCAB, dtype=jnp.int32)
    start_pos = jnp.array([4], dtype=jnp.int32)          # decode position (runtime scalar)

    # lane-dense KV-cache layout: [n_layers, max_batch, max_seq, n_kv_heads * head_dim]
    cache_k = jnp.zeros((N_LAYERS, MAX_BATCH, MAX_SEQ, KV_DIM), jnp.float32)
    cache_v = jnp.zeros_like(cache_k)

    logits, cache_k, cache_v = decode_step(fp, tokens, start_pos, cache_k, cache_v)
    jax.block_until_ready(logits)
    assert logits.shape == (B, 1, VOCAB) and logits.dtype == jnp.float32
    assert cache_k.shape == (N_LAYERS, MAX_BATCH, MAX_SEQ, KV_DIM)
    print("KERNEL_OK")
</pallas_src>

<mosaic_0001>
module attributes {stable_mosaic.version = 11 : i64} {
  func.func @_decode_kernel(%arg0: memref<1xi32, #tpu.memory_space<smem>>, %arg1: memref<2x1xi32, #tpu.memory_space<vmem>>, %arg2: memref<64x32xf32, #tpu.memory_space<vmem>>, %arg3: memref<32x32xf32, #tpu.memory_space<vmem>>, %arg4: memref<32x32xf32, #tpu.memory_space<vmem>>, %arg5: memref<32x32xf32, #tpu.memory_space<vmem>>, %arg6: memref<16x16xf32, #tpu.memory_space<vmem>>, %arg7: memref<2x1x32xf32, #tpu.memory_space<vmem>>, %arg8: memref<2x1x32xf32, #tpu.memory_space<vmem>>, %arg9: memref<2x32x64xf32, #tpu.memory_space<vmem>>, %arg10: memref<2x32x32xf32, #tpu.memory_space<vmem>>, %arg11: memref<2x32x96xf32, #tpu.memory_space<vmem>>, %arg12: memref<2x32x96xf32, #tpu.memory_space<vmem>>, %arg13: memref<2x96x32xf32, #tpu.memory_space<vmem>>, %arg14: memref<1x32xf32, #tpu.memory_space<vmem>>, %arg15: memref<32x64xf32, #tpu.memory_space<vmem>>, %arg16: memref<2x2x16x16xf32, #tpu.memory_space<vmem>>, %arg17: memref<2x2x16x16xf32, #tpu.memory_space<vmem>>, %arg18: memref<2x64xf32, #tpu.memory_space<vmem>>, %arg19: memref<2x2x16x16xf32, #tpu.memory_space<vmem>>, %arg20: memref<2x2x16x16xf32, #tpu.memory_space<vmem>>) attributes {dimension_semantics = [], scalar_prefetch = 0 : i64, scratch_operands = 0 : i64, tpu.core_type = #tpu.core_type<tc>} {
    %c0 = arith.constant 0 : index
    %0 = memref.load %arg0[%c0] : memref<1xi32, #tpu.memory_space<smem>>
    %c0_0 = arith.constant 0 : index
    %c0_1 = arith.constant 0 : index
    %1 = vector.load %arg1[%c0_0, %c0_1] : memref<2x1xi32, #tpu.memory_space<vmem>>, vector<2x1xi32>
    %2 = tpu.iota {dimensions = array<i32: 1>} : vector<2x64xi32>
    %3 = vector.broadcast %1 : vector<2x1xi32> to vector<2x64xi32>
    %4 = arith.cmpi eq, %2, %3 : vector<2x64xi32>
    %5 = arith.extui %4 : vector<2x64xi1> to vector<2x64xi32>
    %6 = arith.sitofp %5 : vector<2x64xi32> to vector<2x64xf32>
    %c0_2 = arith.constant 0 : index
    %c0_3 = arith.constant 0 : index
    %7 = vector.load %arg2[%c0_2, %c0_3] : memref<64x32xf32, #tpu.memory_space<vmem>>, vector<64x32xf32>
    %cst = arith.constant dense<0.000000e+00> : vector<2x32xf32>
    %8 = tpu.matmul %6, %7, %cst {dimension_numbers = #tpu.dot_dimension_numbers<[1], [0], [0], [1], [0, 0, 1, 1], [], []>} : vector<2x64xf32>, vector<64x32xf32>, vector<2x32xf32> -> vector<2x32xf32>
    %9 = arith.index_cast %0 : i32 to index
    %c0_4 = arith.constant 0 : index
    %10 = vector.load %arg3[%9, %c0_4] : memref<32x32xf32, #tpu.memory_space<vmem>>, vector<1x32xf32>
    %11 = arith.index_cast %0 : i32 to index
    %c0_5 = arith.constant 0 : index
    %12 = vector.load %arg4[%11, %c0_5] : memref<32x32xf32, #tpu.memory_space<vmem>>, vector<1x32xf32>
    %13 = vector.extract_strided_slice %10 {offsets = [0, 0], sizes = [1, 16], strides = [1, 1]} : vector<1x32xf32> to vector<1x16xf32>
    %14 = vector.extract_strided_slice %12 {offsets = [0, 0], sizes = [1, 16], strides = [1, 1]} : vector<1x32xf32> to vector<1x16xf32>
    %c0_6 = arith.constant 0 : index
    %c0_7 = arith.constant 0 : index
    %15 = vector.load %arg5[%c0_6, %c0_7] : memref<32x32xf32, #tpu.memory_space<vmem>>, vector<32x32xf32>
    %c0_8 = arith.constant 0 : index
    %c0_9 = arith.constant 0 : index
    %16 = vector.load %arg6[%c0_8, %c0_9] : memref<16x16xf32, #tpu.memory_space<vmem>>, vector<16x16xf32>
    %17 = tpu.iota {dimensions = array<i32: 1>} : vector<1x16xi32>
    %18 = tpu.iota {dimensions = array<i32: 1>} : vector<2x16x16xi32>
    %c0_10 = arith.constant 0 : index
    %c0_11 = arith.constant 0 : index
    %c0_12 = arith.constant 0 : index
    %19 = vector.load %arg7[%c0_10, %c0_11, %c0_12] : memref<2x1x32xf32, #tpu.memory_space<vmem>>, vector<1x1x32xf32>
    %20 = vector.shape_cast %19 : vector<1x1x32xf32> to vector<1x32xf32>
    %21 = arith.mulf %8, %8 : vector<2x32xf32>
    %cst_13 = arith.constant dense<0.000000e+00> : vector<2xf32>
    %22 = vector.multi_reduction <add>, %21, %cst_13 [1] : vector<2x32xf32> to vector<2xf32>
    %23 = vector.shape_cast %22 : vector<2xf32> to vector<2x1xf32>
    %cst_14 = arith.constant 3.200000e+01 : f32
    %24 = vector.broadcast %cst_14 : f32 to vector<2x1xf32>
    %25 = arith.divf %23, %24 : vector<2x1xf32>
    %cst_15 = arith.constant 9.99999974E-6 : f32
    %26 = vector.broadcast %cst_15 : f32 to vector<2x1xf32>
    %27 = arith.addf %25, %26 : vector<2x1xf32>
    %28 = math.rsqrt %27 : vector<2x1xf32>
    %29 = vector.broadcast %28 : vector<2x1xf32> to vector<2x32xf32>
    %30 = arith.mulf %8, %29 : vector<2x32xf32>
    %31 = vector.broadcast %20 : vector<1x32xf32> to vector<2x32xf32>
    %32 = arith.mulf %30, %31 : vector<2x32xf32>
    %c0_16 = arith.constant 0 : index
    %c0_17 = arith.constant 0 : index
    %c0_18 = arith.constant 0 : index
    %33 = vector.load %arg9[%c0_16, %c0_17, %c0_18] : memref<2x32x64xf32, #tpu.memory_space<vmem>>, vector<1x32x64xf32>
    %34 = vector.shape_cast %33 : vector<1x32x64xf32> to vector<32x64xf32>
    %cst_19 = arith.constant dense<0.000000e+00> : vector<2x64xf32>
    %35 = tpu.matmul %32, %34, %cst_19 {dimension_numbers = #tpu.dot_dimension_numbers<[1], [0], [0], [1], [0, 0, 1, 1], [], []>} : vector<2x32xf32>, vector<32x64xf32>, vector<2x64xf32> -> vector<2x64xf32>
    %36 = vector.extract_strided_slice %35 {offsets = [0, 0], sizes = [2, 32], strides = [1, 1]} : vector<2x64xf32> to vector<2x32xf32>
    %37 = vector.extract_strided_slice %35 {offsets = [0, 32], sizes = [2, 16], strides = [1, 1]} : vector<2x64xf32> to vector<2x16xf32>
    %38 = vector.extract_strided_slice %35 {offsets = [0, 48], sizes = [2, 16], strides = [1, 1]} : vector<2x64xf32> to vector<2x16xf32>
    %39 = vector.broadcast %10 : vector<1x32xf32> to vector<2x32xf32>
    %40 = arith.mulf %36, %39 : vector<2x32xf32>
    %cst_20 = arith.constant dense<0.000000e+00> : vector<2x32xf32>
    %41 = tpu.matmul %36, %15, %cst_20 {dimension_numbers = #tpu.dot_dimension_numbers<[1], [0], [0], [1], [0, 0, 1, 1], [], []>} : vector<2x32xf32>, vector<32x32xf32>, vector<2x32xf32> -> vector<2x32xf32>
    %42 = vector.broadcast %12 : vector<1x32xf32> to vector<2x32xf32>
    %43 = arith.mulf %41, %42 : vector<2x32xf32>
    %44 = arith.addf %40, %43 : vector<2x32xf32>
    %45 = vector.broadcast %13 : vector<1x16xf32> to vector<2x16xf32>
    %46 = arith.mulf %37, %45 : vector<2x16xf32>
    %cst_21 = arith.constant dense<0.000000e+00> : vector<2x16xf32>
    %47 = tpu.matmul %37, %16, %cst_21 {dimension_numbers = #tpu.dot_dimension_numbers<[1], [0], [0], [1], [0, 0, 1, 1], [], []>} : vector<2x16xf32>, vector<16x16xf32>, vector<2x16xf32> -> vector<2x16xf32>
    %48 = vector.broadcast %14 : vector<1x16xf32> to vector<2x16xf32>
    %49 = arith.mulf %47, %48 : vector<2x16xf32>
    %50 = arith.addf %46, %49 : vector<2x16xf32>
    %c0_22 = arith.constant 0 : index
    %c0_23 = arith.constant 0 : index
    %c0_24 = arith.constant 0 : index
    %c0_25 = arith.constant 0 : index
    %51 = vector.load %arg16[%c0_22, %c0_23, %c0_24, %c0_25] : memref<2x2x16x16xf32, #tpu.memory_space<vmem>>, vector<1x2x16x16xf32>
    %52 = vector.shape_cast %51 : vector<1x2x16x16xf32> to vector<2x16x16xf32>
    %c0_26 = arith.constant 0 : index
    %c0_27 = arith.constant 0 : index
    %c0_28 = arith.constant 0 : index
    %c0_29 = arith.constant 0 : index
    %53 = vector.load %arg17[%c0_26, %c0_27, %c0_28, %c0_29] : memref<2x2x16x16xf32, #tpu.memory_space<vmem>>, vector<1x2x16x16xf32>
    %54 = vector.shape_cast %53 : vector<1x2x16x16xf32> to vector<2x16x16xf32>
    %55 = vector.broadcast %0 : i32 to vector<2x16x16xi32>
    %56 = arith.cmpi eq, %18, %55 : vector<2x16x16xi32>
    %57 = vector.shape_cast %50 : vector<2x16xf32> to vector<2x1x16xf32>
    %58 = vector.shape_cast %57 : vector<2x1x16xf32> to vector<2x1x16xf32>
    %59 = vector.broadcast %58 : vector<2x1x16xf32> to vector<2x16x16xf32>
    %60 = arith.select %56, %59, %52 : vector<2x16x16xi1>, vector<2x16x16xf32>
    %61 = vector.broadcast %0 : i32 to vector<2x16x16xi32>
    %62 = arith.cmpi eq, %18, %61 : vector<2x16x16xi32>
    %63 = vector.shape_cast %38 : vector<2x16xf32> to vector<2x1x16xf32>
    %64 = vector.shape_cast %63 : vector<2x1x16xf32> to vector<2x1x16xf32>
    %65 = vector.broadcast %64 : vector<2x1x16xf32> to vector<2x16x16xf32>
    %66 = arith.select %62, %65, %54 : vector<2x16x16xi1>, vector<2x16x16xf32>
    %c0_30 = arith.constant 0 : index
    %c0_31 = arith.constant 0 : index
    %c0_32 = arith.constant 0 : index
    %c0_33 = arith.constant 0 : index
    %67 = vector.load %arg19[%c0_30, %c0_31, %c0_32, %c0_33] : memref<2x2x16x16xf32, #tpu.memory_space<vmem>>, vector<1x2x16x16xf32>
    %68 = vector.shape_cast %67 : vector<1x2x16x16xf32> to vector<2x16x16xf32>
    %69 = vector.shape_cast %60 : vector<2x16x16xf32> to vector<1x2x16x16xf32>
    tpu.vector_store %arg19[%c0_30, %c0_31, %c0_32, %c0_33], %69 {strides = array<i32>} : memref<2x2x16x16xf32, #tpu.memory_space<vmem>>, vector<1x2x16x16xf32>,
    %c0_34 = arith.constant 0 : index
    %c0_35 = arith.constant 0 : index
    %c0_36 = arith.constant 0 : index
    %c0_37 = arith.constant 0 : index
    %70 = vector.load %arg20[%c0_34, %c0_35, %c0_36, %c0_37] : memref<2x2x16x16xf32, #tpu.memory_space<vmem>>, vector<1x2x16x16xf32>
    %71 = vector.shape_cast %70 : vector<1x2x16x16xf32> to vector<2x16x16xf32>
    %72 = vector.shape_cast %66 : vector<2x16x16xf32> to vector<1x2x16x16xf32>
    tpu.vector_store %arg20[%c0_34, %c0_35, %c0_36, %c0_37], %72 {strides = array<i32>} : memref<2x2x16x16xf32, #tpu.memory_space<vmem>>, vector<1x2x16x16xf32>,
    %73 = vector.extract_strided_slice %60 {offsets = [0, 0, 0], sizes = [1, 16, 16], strides = [1, 1, 1]} : vector<2x16x16xf32> to vector<1x16x16xf32>
    %74 = vector.shape_cast %73 : vector<1x16x16xf32> to vector<16x16xf32>
    %75 = vector.extract_strided_slice %66 {offsets = [0, 0, 0], sizes = [1, 16, 16], strides = [1, 1, 1]} : vector<2x16x16xf32> to vector<1x16x16xf32>
    %76 = vector.shape_cast %75 : vector<1x16x16xf32> to vector<16x16xf32>
    %77 = vector.extract_strided_slice %44 {offsets = [0, 0], sizes = [1, 8], strides = [1, 1]} : vector<2x32xf32> to vector<1x8xf32>
    %78 = vector.extract_strided_slice %74 {offsets = [0, 0], sizes = [16, 8], strides = [1, 1]} : vector<16x16xf32> to vector<16x8xf32>
    %79 = vector.extract_strided_slice %76 {offsets = [0, 0], sizes = [16, 8], strides = [1, 1]} : vector<16x16xf32> to vector<16x8xf32>
    %cst_38 = arith.constant dense<0.000000e+00> : vector<1x16xf32>
    %80 = tpu.matmul %77, %78, %cst_38 {dimension_numbers = #tpu.dot_dimension_numbers<[1], [1], [0], [0], [0, 0, 1, 0], [], []>} : vector<1x8xf32>, vector<16x8xf32>, vector<1x16xf32> -> vector<1x16xf32>
    %cst_39 = arith.constant 0.353553385 : f32
    %81 = vector.broadcast %cst_39 : f32 to vector<1x16xf32>
    %82 = arith.mulf %80, %81 : vector<1x16xf32>
    %83 = vector.broadcast %0 : i32 to vector<1x16xi32>
    %84 = arith.cmpi sle, %17, %83 : vector<1x16xi32>
    %cst_40 = arith.constant -1.000000e+30 : f32
    %85 = vector.broadcast %cst_40 : f32 to vector<1x16xf32>
    %86 = arith.select %84, %82, %85 : vector<1x16xi1>, vector<1x16xf32>
    %cst_41 = arith.constant dense<0xFF800000> : vector<1xf32>
    %87 = vector.multi_reduction <maximumf>, %86, %cst_41 [1] : vector<1x16xf32> to vector<1xf32>
    %88 = vector.shape_cast %87 : vector<1xf32> to vector<1x1xf32>
    %89 = vector.broadcast %88 : vector<1x1xf32> to vector<1x16xf32>
    %90 = arith.subf %86, %89 : vector<1x16xf32>
    %91 = math.exp %90 : vector<1x16xf32>
    %cst_42 = arith.constant dense<0.000000e+00> : vector<1xf32>
    %92 = vector.multi_reduction <add>, %91, %cst_42 [1] : vector<1x16xf32> to vector<1xf32>
    %93 = vector.shape_cast %92 : vector<1xf32> to vector<1x1xf32>
    %94 = vector.broadcast %93 : vector<1x1xf32> to vector<1x16xf32>
    %95 = arith.divf %91, %94 : vector<1x16xf32>
    %cst_43 = arith.constant dense<0.000000e+00> : vector<1x8xf32>
    %96 = tpu.matmul %95, %79, %cst_43 {dimension_numbers = #tpu.dot_dimension_numbers<[1], [0], [0], [1], [0, 0, 1, 1], [], []>} : vector<1x16xf32>, vector<16x8xf32>, vector<1x8xf32> -> vector<1x8xf32>
    %97 = vector.extract_strided_slice %44 {offsets = [0, 8], sizes = [1, 8], strides = [1, 1]} : vector<2x32xf32> to vector<1x8xf32>
    %98 = vector.extract_strided_slice %74 {offsets = [0, 0], sizes = [16, 8], strides = [1, 1]} : vector<16x16xf32> to vector<16x8xf32>
    %99 = vector.extract_strided_slice %76 {offsets = [0, 0], sizes = [16, 8], strides = [1, 1]} : vector<16x16xf32> to vector<16x8xf32>
    %cst_44 = arith.constant dense<0.000000e+00> : vector<1x16xf32>
    %100 = tpu.matmul %97, %98, %cst_44 {dimension_numbers = #tpu.dot_dimension_numbers<[1], [1], [0], [0], [0, 0, 1, 0], [], []>} : vector<1x8xf32>, vector<16x8xf32>, vector<1x16xf32> -> vector<1x16xf32>
    %cst_45 = arith.constant 0.353553385 : f32
    %101 = vector.broadcast %cst_45 : f32 to vector<1x16xf32>
    %102 = arith.mulf %100, %101 : vector<1x16xf32>
    %103 = vector.broadcast %0 : i32 to vector<1x16xi32>
    %104 = arith.cmpi sle, %17, %103 : vector<1x16xi32>
    %cst_46 = arith.constant -1.000000e+30 : f32
    %105 = vector.broadcast %cst_46 : f32 to vector<1x16xf32>
    %106 = arith.select %104, %102, %105 : vector<1x16xi1>, vector<1x16xf32>
    %cst_47 = arith.constant dense<0xFF800000> : vector<1xf32>
    %107 = vector.multi_reduction <maximumf>, %106, %cst_47 [1] : vector<1x16xf32> to vector<1xf32>
    %108 = vector.shape_cast %107 : vector<1xf32> to vector<1x1xf32>
    %109 = vector.broadcast %108 : vector<1x1xf32> to vector<1x16xf32>
    %110 = arith.subf %106, %109 : vector<1x16xf32>
    %111 = math.exp %110 : vector<1x16xf32>
    %cst_48 = arith.constant dense<0.000000e+00> : vector<1xf32>
    %112 = vector.multi_reduction <add>, %111, %cst_48 [1] : vector<1x16xf32> to vector<1xf32>
    %113 = vector.shape_cast %112 : vector<1xf32> to vector<1x1xf32>
    %114 = vector.broadcast %113 : vector<1x1xf32> to vector<1x16xf32>
    %115 = arith.divf %111, %114 : vector<1x16xf32>
    %cst_49 = arith.constant dense<0.000000e+00> : vector<1x8xf32>
    %116 = tpu.matmul %115, %99, %cst_49 {dimension_numbers = #tpu.dot_dimension_numbers<[1], [0], [0], [1], [0, 0, 1, 1], [], []>} : vector<1x16xf32>, vector<16x8xf32>, vector<1x8xf32> -> vector<1x8xf32>
    %117 = vector.extract_strided_slice %44 {offsets = [0, 16], sizes = [1, 8], strides = [1, 1]} : vector<2x32xf32> to vector<1x8xf32>
    %118 = vector.extract_strided_slice %74 {offsets = [0, 8], sizes = [16, 8], strides = [1, 1]} : vector<16x16xf32> to vector<16x8xf32>
    %119 = vector.extract_strided_slice %76 {offsets = [0, 8], sizes = [16, 8], strides = [1, 1]} : vector<16x16xf32> to vector<16x8xf32>
    %cst_50 = arith.constant dense<0.000000e+00> : vector<1x16xf32>
    %120 = tpu.matmul %117, %118, %cst_50 {dimension_numbers = #tpu.dot_dimension_numbers<[1], [1], [0], [0], [0, 0, 1, 0], [], []>} : vector<1x8xf32>, vector<16x8xf32>, vector<1x16xf32> -> vector<1x16xf32>
    %cst_51 = arith.constant 0.353553385 : f32
    %121 = vector.broadcast %cst_51 : f32 to vector<1x16xf32>
    %122 = arith.mulf %120, %121 : vector<1x16xf32>
    %123 = vector.broadcast %0 : i32 to vector<1x16xi32>
    %124 = arith.cmpi sle, %17, %123 : vector<1x16xi32>
    %cst_52 = arith.constant -1.000000e+30 : f32
    %125 = vector.broadcast %cst_52 : f32 to vector<1x16xf32>
    %126 = arith.select %124, %122, %125 : vector<1x16xi1>, vector<1x16xf32>
    %cst_53 = arith.constant dense<0xFF800000> : vector<1xf32>
    %127 = vector.multi_reduction <maximumf>, %126, %cst_53 [1] : vector<1x16xf32> to vector<1xf32>
    %128 = vector.shape_cast %127 : vector<1xf32> to vector<1x1xf32>
    %129 = vector.broadcast %128 : vector<1x1xf32> to vector<1x16xf32>
    %130 = arith.subf %126, %129 : vector<1x16xf32>
    %131 = math.exp %130 : vector<1x16xf32>
    %cst_54 = arith.constant dense<0.000000e+00> : vector<1xf32>
    %132 = vector.multi_reduction <add>, %131, %cst_54 [1] : vector<1x16xf32> to vector<1xf32>
    %133 = vector.shape_cast %132 : vector<1xf32> to vector<1x1xf32>
    %134 = vector.broadcast %133 : vector<1x1xf32> to vector<1x16xf32>
    %135 = arith.divf %131, %134 : vector<1x16xf32>
    %cst_55 = arith.constant dense<0.000000e+00> : vector<1x8xf32>
    %136 = tpu.matmul %135, %119, %cst_55 {dimension_numbers = #tpu.dot_dimension_numbers<[1], [0], [0], [1], [0, 0, 1, 1], [], []>} : vector<1x16xf32>, vector<16x8xf32>, vector<1x8xf32> -> vector<1x8xf32>
    %137 = vector.extract_strided_slice %44 {offsets = [0, 24], sizes = [1, 8], strides = [1, 1]} : vector<2x32xf32> to vector<1x8xf32>
    %138 = vector.extract_strided_slice %74 {offsets = [0, 8], sizes = [16, 8], strides = [1, 1]} : vector<16x16xf32> to vector<16x8xf32>
    %139 = vector.extract_strided_slice %76 {offsets = [0, 8], sizes = [16, 8], strides = [1, 1]} : vector<16x16xf32> to vector<16x8xf32>
    %cst_56 = arith.constant dense<0.000000e+00> : vector<1x16xf32>
    %140 = tpu.matmul %137, %138, %cst_56 {dimension_numbers = #tpu.dot_dimension_numbers<[1], [1], [0], [0], [0, 0, 1, 0], [], []>} : vector<1x8xf32>, vector<16x8xf32>, vector<1x16xf32> -> vector<1x16xf32>
    %cst_57 = arith.constant 0.353553385 : f32
    %141 = vector.broadcast %cst_57 : f32 to vector<1x16xf32>
    %142 = arith.mulf %140, %141 : vector<1x16xf32>
    %143 = vector.broadcast %0 : i32 to vector<1x16xi32>
    %144 = arith.cmpi sle, %17, %143 : vector<1x16xi32>
    %cst_58 = arith.constant -1.000000e+30 : f32
    %145 = vector.broadcast %cst_58 : f32 to vector<1x16xf32>
    %146 = arith.select %144, %142, %145 : vector<1x16xi1>, vector<1x16xf32>
    %cst_59 = arith.constant dense<0xFF800000> : vector<1xf32>
    %147 = vector.multi_reduction <maximumf>, %146, %cst_59 [1] : vector<1x16xf32> to vector<1xf32>
    %148 = vector.shape_cast %147 : vector<1xf32> to vector<1x1xf32>
    %149 = vector.broadcast %148 : vector<1x1xf32> to vector<1x16xf32>
    %150 = arith.subf %146, %149 : vector<1x16xf32>
    %151 = math.exp %150 : vector<1x16xf32>
    %cst_60 = arith.constant dense<0.000000e+00> : vector<1xf32>
    %152 = vector.multi_reduction <add>, %151, %cst_60 [1] : vector<1x16xf32> to vector<1xf32>
    %153 = vector.shape_cast %152 : vector<1xf32> to vector<1x1xf32>
    %154 = vector.broadcast %153 : vector<1x1xf32> to vector<1x16xf32>
    %155 = arith.divf %151, %154 : vector<1x16xf32>
    %cst_61 = arith.constant dense<0.000000e+00> : vector<1x8xf32>
    %156 = tpu.matmul %155, %139, %cst_61 {dimension_numbers = #tpu.dot_dimension_numbers<[1], [0], [0], [1], [0, 0, 1, 1], [], []>} : vector<1x16xf32>, vector<16x8xf32>, vector<1x8xf32> -> vector<1x8xf32>
    %157 = tpu.concatenate %96, %116, %136, %156 in 1 : vector<1x8xf32>, vector<1x8xf32>, vector<1x8xf32>, vector<1x8xf32> -> vector<1x32xf32>
    %158 = vector.extract_strided_slice %60 {offsets = [1, 0, 0], sizes = [1, 16, 16], strides = [1, 1, 1]} : vector<2x16x16xf32> to vector<1x16x16xf32>
    %159 = vector.shape_cast %158 : vector<1x16x16xf32> to vector<16x16xf32>
    %160 = vector.extract_strided_slice %66 {offsets = [1, 0, 0], sizes = [1, 16, 16], strides = [1, 1, 1]} : vector<2x16x16xf32> to vector<1x16x16xf32>
    %161 = vector.shape_cast %160 : vector<1x16x16xf32> to vector<16x16xf32>
    %162 = vector.extract_strided_slice %44 {offsets = [1, 0], sizes = [1, 8], strides = [1, 1]} : vector<2x32xf32> to vector<1x8xf32>
    %163 = vector.extract_strided_slice %159 {offsets = [0, 0], sizes = [16, 8], strides = [1, 1]} : vector<16x16xf32> to vector<16x8xf32>
    %164 = vector.extract_strided_slice %161 {offsets = [0, 0], sizes = [16, 8], strides = [1, 1]} : vector<16x16xf32> to vector<16x8xf32>
    %cst_62 = arith.constant dense<0.000000e+00> : vector<1x16xf32>
    %165 = tpu.matmul %162, %163, %cst_62 {dimension_numbers = #tpu.dot_dimension_numbers<[1], [1], [0], [0], [0, 0, 1, 0], [], []>} : vector<1x8xf32>, vector<16x8xf32>, vector<1x16xf32> -> vector<1x16xf32>
    %cst_63 = arith.constant 0.353553385 : f32
    %166 = vector.broadcast %cst_63 : f32 to vector<1x16xf32>
    %167 = arith.mulf %165, %166 : vector<1x16xf32>
    %168 = vector.broadcast %0 : i32 to vector<1x16xi32>
    %169 = arith.cmpi sle, %17, %168 : vector<1x16xi32>
    %cst_64 = arith.constant -1.000000e+30 : f32
    %170 = vector.broadcast %cst_64 : f32 to vector<1x16xf32>
    %171 = arith.select %169, %167, %170 : vector<1x16xi1>, vector<1x16xf32>
    %cst_65 = arith.constant dense<0xFF800000> : vector<1xf32>
    %172 = vector.multi_reduction <maximumf>, %171, %cst_65 [1] : vector<1x16xf32> to vector<1xf32>
    %173 = vector.shape_cast %172 : vector<1xf32> to vector<1x1xf32>
    %174 = vector.broadcast %173 : vector<1x1xf32> to vector<1x16xf32>
    %175 = arith.subf %171, %174 : vector<1x16xf32>
    %176 = math.exp %175 : vector<1x16xf32>
    %cst_66 = arith.constant dense<0.000000e+00> : vector<1xf32>
    %177 = vector.multi_reduction <add>, %176, %cst_66 [1] : vector<1x16xf32> to vector<1xf32>
    %178 = vector.shape_cast %177 : vector<1xf32> to vector<1x1xf32>
    %179 = vector.broadcast %178 : vector<1x1xf32> to vector<1x16xf32>
    %180 = arith.divf %176, %179 : vector<1x16xf32>
    %cst_67 = arith.constant dense<0.000000e+00> : vector<1x8xf32>
    %181 = tpu.matmul %180, %164, %cst_67 {dimension_numbers = #tpu.dot_dimension_numbers<[1], [0], [0], [1], [0, 0, 1, 1], [], []>} : vector<1x16xf32>, vector<16x8xf32>, vector<1x8xf32> -> vector<1x8xf32>
    %182 = vector.extract_strided_slice %44 {offsets = [1, 8], sizes = [1, 8], strides = [1, 1]} : vector<2x32xf32> to vector<1x8xf32>
    %183 = vector.extract_strided_slice %159 {offsets = [0, 0], sizes = [16, 8], strides = [1, 1]} : vector<16x16xf32> to vector<16x8xf32>
    %184 = vector.extract_strided_slice %161 {offsets = [0, 0], sizes = [16, 8], strides = [1, 1]} : vector<16x16xf32> to vector<16x8xf32>
    %cst_68 = arith.constant dense<0.000000e+00> : vector<1x16xf32>
    %185 = tpu.matmul %182, %183, %cst_68 {dimension_numbers = #tpu.dot_dimension_numbers<[1], [1], [0], [0], [0, 0, 1, 0], [], []>} : vector<1x8xf32>, vector<16x8xf32>, vector<1x16xf32> -> vector<1x16xf32>
    %cst_69 = arith.constant 0.353553385 : f32
    %186 = vector.broadcast %cst_69 : f32 to vector<1x16xf32>
    %187 = arith.mulf %185, %186 : vector<1x16xf32>
    %188 = vector.broadcast %0 : i32 to vector<1x16xi32>
    %189 = arith.cmpi sle, %17, %188 : vector<1x16xi32>
    %cst_70 = arith.constant -1.000000e+30 : f32
    %190 = vector.broadcast %cst_70 : f32 to vector<1x16xf32>
    %191 = arith.select %189, %187, %190 : vector<1x16xi1>, vector<1x16xf32>
    %cst_71 = arith.constant dense<0xFF800000> : vector<1xf32>
    %192 = vector.multi_reduction <maximumf>, %191, %cst_71 [1] : vector<1x16xf32> to vector<1xf32>
    %193 = vector.shape_cast %192 : vector<1xf32> to vector<1x1xf32>
    %194 = vector.broadcast %193 : vector<1x1xf32> to vector<1x16xf32>
    %195 = arith.subf %191, %194 : vector<1x16xf32>
    %196 = math.exp %195 : vector<1x16xf32>
    %cst_72 = arith.constant dense<0.000000e+00> : vector<1xf32>
    %197 = vector.multi_reduction <add>, %196, %cst_72 [1] : vector<1x16xf32> to vector<1xf32>
    %198 = vector.shape_cast %197 : vector<1xf32> to vector<1x1xf32>
    %199 = vector.broadcast %198 : vector<1x1xf32> to vector<1x16xf32>
    %200 = arith.divf %196, %199 : vector<1x16xf32>
    %cst_73 = arith.constant dense<0.000000e+00> : vector<1x8xf32>
    %201 = tpu.matmul %200, %184, %cst_73 {dimension_numbers = #tpu.dot_dimension_numbers<[1], [0], [0], [1], [0, 0, 1, 1], [], []>} : vector<1x16xf32>, vector<16x8xf32>, vector<1x8xf32> -> vector<1x8xf32>
    %202 = vector.extract_strided_slice %44 {offsets = [1, 16], sizes = [1, 8], strides = [1, 1]} : vector<2x32xf32> to vector<1x8xf32>
    %203 = vector.extract_strided_slice %159 {offsets = [0, 8], sizes = [16, 8], strides = [1, 1]} : vector<16x16xf32> to vector<16x8xf32>
    %204 = vector.extract_strided_slice %161 {offsets = [0, 8], sizes = [16, 8], strides = [1, 1]} : vector<16x16xf32> to vector<16x8xf32>
    %cst_74 = arith.constant dense<0.000000e+00> : vector<1x16xf32>
    %205 = tpu.matmul %202, %203, %cst_74 {dimension_numbers = #tpu.dot_dimension_numbers<[1], [1], [0], [0], [0, 0, 1, 0], [], []>} : vector<1x8xf32>, vector<16x8xf32>, vector<1x16xf32> -> vector<1x16xf32>
    %cst_75 = arith.constant 0.353553385 : f32
    %206 = vector.broadcast %cst_75 : f32 to vector<1x16xf32>
    %207 = arith.mulf %205, %206 : vector<1x16xf32>
    %208 = vector.broadcast %0 : i32 to vector<1x16xi32>
    %209 = arith.cmpi sle, %17, %208 : vector<1x16xi32>
    %cst_76 = arith.constant -1.000000e+30 : f32
    %210 = vector.broadcast %cst_76 : f32 to vector<1x16xf32>
    %211 = arith.select %209, %207, %210 : vector<1x16xi1>, vector<1x16xf32>
    %cst_77 = arith.constant dense<0xFF800000> : vector<1xf32>
    %212 = vector.multi_reduction <maximumf>, %211, %cst_77 [1] : vector<1x16xf32> to vector<1xf32>
    %213 = vector.shape_cast %212 : vector<1xf32> to vector<1x1xf32>
    %214 = vector.broadcast %213 : vector<1x1xf32> to vector<1x16xf32>
    %215 = arith.subf %211, %214 : vector<1x16xf32>
    %216 = math.exp %215 : vector<1x16xf32>
    %cst_78 = arith.constant dense<0.000000e+00> : vector<1xf32>
    %217 = vector.multi_reduction <add>, %216, %cst_78 [1] : vector<1x16xf32> to vector<1xf32>
    %218 = vector.shape_cast %217 : vector<1xf32> to vector<1x1xf32>
    %219 = vector.broadcast %218 : vector<1x1xf32> to vector<1x16xf32>
    %220 = arith.divf %216, %219 : vector<1x16xf32>
    %cst_79 = arith.constant dense<0.000000e+00> : vector<1x8xf32>
    %221 = tpu.matmul %220, %204, %cst_79 {dimension_numbers = #tpu.dot_dimension_numbers<[1], [0], [0], [1], [0, 0, 1, 1], [], []>} : vector<1x16xf32>, vector<16x8xf32>, vector<1x8xf32> -> vector<1x8xf32>
    %222 = vector.extract_strided_slice %44 {offsets = [1, 24], sizes = [1, 8], strides = [1, 1]} : vector<2x32xf32> to vector<1x8xf32>
    %223 = vector.extract_strided_slice %159 {offsets = [0, 8], sizes = [16, 8], strides = [1, 1]} : vector<16x16xf32> to vector<16x8xf32>
    %224 = vector.extract_strided_slice %161 {offsets = [0, 8], sizes = [16, 8], strides = [1, 1]} : vector<16x16xf32> to vector<16x8xf32>
    %cst_80 = arith.constant dense<0.000000e+00> : vector<1x16xf32>
    %225 = tpu.matmul %222, %223, %cst_80 {dimension_numbers = #tpu.dot_dimension_numbers<[1], [1], [0], [0], [0, 0, 1, 0], [], []>} : vector<1x8xf32>, vector<16x8xf32>, vector<1x16xf32> -> vector<1x16xf32>
    %cst_81 = arith.constant 0.353553385 : f32
    %226 = vector.broadcast %cst_81 : f32 to vector<1x16xf32>
    %227 = arith.mulf %225, %226 : vector<1x16xf32>
    %228 = vector.broadcast %0 : i32 to vector<1x16xi32>
    %229 = arith.cmpi sle, %17, %228 : vector<1x16xi32>
    %cst_82 = arith.constant -1.000000e+30 : f32
    %230 = vector.broadcast %cst_82 : f32 to vector<1x16xf32>
    %231 = arith.select %229, %227, %230 : vector<1x16xi1>, vector<1x16xf32>
    %cst_83 = arith.constant dense<0xFF800000> : vector<1xf32>
    %232 = vector.multi_reduction <maximumf>, %231, %cst_83 [1] : vector<1x16xf32> to vector<1xf32>
    %233 = vector.shape_cast %232 : vector<1xf32> to vector<1x1xf32>
    %234 = vector.broadcast %233 : vector<1x1xf32> to vector<1x16xf32>
    %235 = arith.subf %231, %234 : vector<1x16xf32>
    %236 = math.exp %235 : vector<1x16xf32>
    %cst_84 = arith.constant dense<0.000000e+00> : vector<1xf32>
    %237 = vector.multi_reduction <add>, %236, %cst_84 [1] : vector<1x16xf32> to vector<1xf32>
    %238 = vector.shape_cast %237 : vector<1xf32> to vector<1x1xf32>
    %239 = vector.broadcast %238 : vector<1x1xf32> to vector<1x16xf32>
    %240 = arith.divf %236, %239 : vector<1x16xf32>
    %cst_85 = arith.constant dense<0.000000e+00> : vector<1x8xf32>
    %241 = tpu.matmul %240, %224, %cst_85 {dimension_numbers = #tpu.dot_dimension_numbers<[1], [0], [0], [1], [0, 0, 1, 1], [], []>} : vector<1x16xf32>, vector<16x8xf32>, vector<1x8xf32> -> vector<1x8xf32>
    %242 = tpu.concatenate %181, %201, %221, %241 in 1 : vector<1x8xf32>, vector<1x8xf32>, vector<1x8xf32>, vector<1x8xf32> -> vector<1x32xf32>
    %243 = tpu.concatenate %157, %242 in 0 : vector<1x32xf32>, vector<1x32xf32> -> vector<2x32xf32>
    %c0_86 = arith.constant 0 : index
    %c0_87 = arith.constant 0 : index
    %c0_88 = arith.constant 0 : index
    %244 = vector.load %arg10[%c0_86, %c0_87, %c0_88] : memref<2x32x32xf32, #tpu.memory_space<vmem>>, vector<1x32x32xf32>
    %245 = vector.shape_cast %244 : vector<1x32x32xf32> to vector<32x32xf32>
    %cst_89 = arith.constant dense<0.000000e+00> : vector<2x32xf32>
    %246 = tpu.matmul %243, %245, %cst_89 {dimension_numbers = #tpu.dot_dimension_numbers<[1], [0], [0], [1], [0, 0, 1, 1], [], []>} : vector<2x32xf32>, vector<32x32xf32>, vector<2x32xf32> -> vector<2x32xf32>
    %247 = arith.addf %8, %246 : vector<2x32xf32>
    %c0_90 = arith.constant 0 : index
    %c0_91 = arith.constant 0 : index
    %c0_92 = arith.constant 0 : index
    %248 = vector.load %arg8[%c0_90, %c0_91, %c0_92] : memref<2x1x32xf32, #tpu.memory_space<vmem>>, vector<1x1x32xf32>
    %249 = vector.shape_cast %248 : vector<1x1x32xf32> to vector<1x32xf32>
    %250 = arith.mulf %247, %247 : vector<2x32xf32>
    %cst_93 = arith.constant dense<0.000000e+00> : vector<2xf32>
    %251 = vector.multi_reduction <add>, %250, %cst_93 [1] : vector<2x32xf32> to vector<2xf32>
    %252 = vector.shape_cast %251 : vector<2xf32> to vector<2x1xf32>
    %cst_94 = arith.constant 3.200000e+01 : f32
    %253 = vector.broadcast %cst_94 : f32 to vector<2x1xf32>
    %254 = arith.divf %252, %253 : vector<2x1xf32>
    %cst_95 = arith.constant 9.99999974E-6 : f32
    %255 = vector.broadcast %cst_95 : f32 to vector<2x1xf32>
    %256 = arith.addf %254, %255 : vector<2x1xf32>
    %257 = math.rsqrt %256 : vector<2x1xf32>
    %258 = vector.broadcast %257 : vector<2x1xf32> to vector<2x32xf32>
    %259 = arith.mulf %247, %258 : vector<2x32xf32>
    %260 = vector.broadcast %249 : vector<1x32xf32> to vector<2x32xf32>
    %261 = arith.mulf %259, %260 : vector<2x32xf32>
    %c0_96 = arith.constant 0 : index
    %c0_97 = arith.constant 0 : index
    %c0_98 = arith.constant 0 : index
    %262 = vector.load %arg11[%c0_96, %c0_97, %c0_98] : memref<2x32x96xf32, #tpu.memory_space<vmem>>, vector<1x32x96xf32>
    %263 = vector.shape_cast %262 : vector<1x32x96xf32> to vector<32x96xf32>
    %cst_99 = arith.constant dense<0.000000e+00> : vector<2x96xf32>
    %264 = tpu.matmul %261, %263, %cst_99 {dimension_numbers = #tpu.dot_dimension_numbers<[1], [0], [0], [1], [0, 0, 1, 1], [], []>} : vector<2x32xf32>, vector<32x96xf32>, vector<2x96xf32> -> vector<2x96xf32>
    %c0_100 = arith.constant 0 : index
    %c0_101 = arith.constant 0 : index
    %c0_102 = arith.constant 0 : index
    %265 = vector.load %arg12[%c0_100, %c0_101, %c0_102] : memref<2x32x96xf32, #tpu.memory_space<vmem>>, vector<1x32x96xf32>
    %266 = vector.shape_cast %265 : vector<1x32x96xf32> to vector<32x96xf32>
    %cst_103 = arith.constant dense<0.000000e+00> : vector<2x96xf32>
    %267 = tpu.matmul %261, %266, %cst_103 {dimension_numbers = #tpu.dot_dimension_numbers<[1], [0], [0], [1], [0, 0, 1, 1], [], []>} : vector<2x32xf32>, vector<32x96xf32>, vector<2x96xf32> -> vector<2x96xf32>
    %cst_104 = arith.constant 0.000000e+00 : f32
    %268 = vector.broadcast %cst_104 : f32 to vector<2x96xf32>
    %269 = arith.subf %268, %264 : vector<2x96xf32>
    %270 = math.exp %269 : vector<2x96xf32>
    %cst_105 = arith.constant 1.000000e+00 : f32
    %271 = vector.broadcast %cst_105 : f32 to vector<2x96xf32>
    %272 = arith.addf %271, %270 : vector<2x96xf32>
    %cst_106 = arith.constant 1.000000e+00 : f32
    %273 = vector.broadcast %cst_106 : f32 to vector<2x96xf32>
    %274 = arith.divf %273, %272 : vector<2x96xf32>
    %275 = arith.mulf %264, %274 : vector<2x96xf32>
    %276 = arith.mulf %275, %267 : vector<2x96xf32>
    %c0_107 = arith.constant 0 : index
    %c0_108 = arith.constant 0 : index
    %c0_109 = arith.constant 0 : index
    %277 = vector.load %arg13[%c0_107, %c0_108, %c0_109] : memref<2x96x32xf32, #tpu.memory_space<vmem>>, vector<1x96x32xf32>
    %278 = vector.shape_cast %277 : vector<1x96x32xf32> to vector<96x32xf32>
    %cst_110 = arith.constant dense<0.000000e+00> : vector<2x32xf32>
    %279 = tpu.matmul %276, %278, %cst_110 {dimension_numbers = #tpu.dot_dimension_numbers<[1], [0], [0], [1], [0, 0, 1, 1], [], []>} : vector<2x96xf32>, vector<96x32xf32>, vector<2x32xf32> -> vector<2x32xf32>
    %280 = arith.addf %247, %279 : vector<2x32xf32>
    %c1 = arith.constant 1 : index
    %c0_111 = arith.constant 0 : index
    %c0_112 = arith.constant 0 : index
    %281 = vector.load %arg7[%c1, %c0_111, %c0_112] : memref<2x1x32xf32, #tpu.memory_space<vmem>>, vector<1x1x32xf32>
    %282 = vector.shape_cast %281 : vector<1x1x32xf32> to vector<1x32xf32>
    %283 = arith.mulf %280, %280 : vector<2x32xf32>
    %cst_113 = arith.constant dense<0.000000e+00> : vector<2xf32>
    %284 = vector.multi_reduction <add>, %283, %cst_113 [1] : vector<2x32xf32> to vector<2xf32>
    %285 = vector.shape_cast %284 : vector<2xf32> to vector<2x1xf32>
    %cst_114 = arith.constant 3.200000e+01 : f32
    %286 = vector.broadcast %cst_114 : f32 to vector<2x1xf32>
    %287 = arith.divf %285, %286 : vector<2x1xf32>
    %cst_115 = arith.constant 9.99999974E-6 : f32
    %288 = vector.broadcast %cst_115 : f32 to vector<2x1xf32>
    %289 = arith.addf %287, %288 : vector<2x1xf32>
    %290 = math.rsqrt %289 : vector<2x1xf32>
    %291 = vector.broadcast %290 : vector<2x1xf32> to vector<2x32xf32>
    %292 = arith.mulf %280, %291 : vector<2x32xf32>
    %293 = vector.broadcast %282 : vector<1x32xf32> to vector<2x32xf32>
    %294 = arith.mulf %292, %293 : vector<2x32xf32>
    %c1_116 = arith.constant 1 : index
    %c0_117 = arith.constant 0 : index
    %c0_118 = arith.constant 0 : index
    %295 = vector.load %arg9[%c1_116, %c0_117, %c0_118] : memref<2x32x64xf32, #tpu.memory_space<vmem>>, vector<1x32x64xf32>
    %296 = vector.shape_cast %295 : vector<1x32x64xf32> to vector<32x64xf32>
    %cst_119 = arith.constant dense<0.000000e+00> : vector<2x64xf32>
    %297 = tpu.matmul %294, %296, %cst_119 {dimension_numbers = #tpu.dot_dimension_numbers<[1], [0], [0], [1], [0, 0, 1, 1], [], []>} : vector<2x32xf32>, vector<32x64xf32>, vector<2x64xf32> -> vector<2x64xf32>
    %298 = vector.extract_strided_slice %297 {offsets = [0, 0], sizes = [2, 32], strides = [1, 1]} : vector<2x64xf32> to vector<2x32xf32>
    %299 = vector.extract_strided_slice %297 {offsets = [0, 32], sizes = [2, 16], strides = [1, 1]} : vector<2x64xf32> to vector<2x16xf32>
    %300 = vector.extract_strided_slice %297 {offsets = [0, 48], sizes = [2, 16], strides = [1, 1]} : vector<2x64xf32> to vector<2x16xf32>
    %301 = vector.broadcast %10 : vector<1x32xf32> to vector<2x32xf32>
    %302 = arith.mulf %298, %301 : vector<2x32xf32>
    %cst_120 = arith.constant dense<0.000000e+00> : vector<2x32xf32>
    %303 = tpu.matmul %298, %15, %cst_120 {dimension_numbers = #tpu.dot_dimension_numbers<[1], [0], [0], [1], [0, 0, 1, 1], [], []>} : vector<2x32xf32>, vector<32x32xf32>, vector<2x32xf32> -> vector<2x32xf32>
    %304 = vector.broadcast %12 : vector<1x32xf32> to vector<2x32xf32>
    %305 = arith.mulf %303, %304 : vector<2x32xf32>
    %306 = arith.addf %302, %305 : vector<2x32xf32>
    %307 = vector.broadcast %13 : vector<1x16xf32> to vector<2x16xf32>
    %308 = arith.mulf %299, %307 : vector<2x16xf32>
    %cst_121 = arith.constant dense<0.000000e+00> : vector<2x16xf32>
    %309 = tpu.matmul %299, %16, %cst_121 {dimension_numbers = #tpu.dot_dimension_numbers<[1], [0], [0], [1], [0, 0, 1, 1], [], []>} : vector<2x16xf32>, vector<16x16xf32>, vector<2x16xf32> -> vector<2x16xf32>
    %310 = vector.broadcast %14 : vector<1x16xf32> to vector<2x16xf32>
    %311 = arith.mulf %309, %310 : vector<2x16xf32>
    %312 = arith.addf %308, %311 : vector<2x16xf32>
    %c1_122 = arith.constant 1 : index
    %c0_123 = arith.constant 0 : index
    %c0_124 = arith.constant 0 : index
    %c0_125 = arith.constant 0 : index
    %313 = vector.load %arg16[%c1_122, %c0_123, %c0_124, %c0_125] : memref<2x2x16x16xf32, #tpu.memory_space<vmem>>, vector<1x2x16x16xf32>
    %314 = vector.shape_cast %313 : vector<1x2x16x16xf32> to vector<2x16x16xf32>
    %c1_126 = arith.constant 1 : index
    %c0_127 = arith.constant 0 : index
    %c0_128 = arith.constant 0 : index
    %c0_129 = arith.constant 0 : index
    %315 = vector.load %arg17[%c1_126, %c0_127, %c0_128, %c0_129] : memref<2x2x16x16xf32, #tpu.memory_space<vmem>>, vector<1x2x16x16xf32>
    %316 = vector.shape_cast %315 : vector<1x2x16x16xf32> to vector<2x16x16xf32>
    %317 = vector.broadcast %0 : i32 to vector<2x16x16xi32>
    %318 = arith.cmpi eq, %18, %317 : vector<2x16x16xi32>
    %319 = vector.shape_cast %312 : vector<2x16xf32> to vector<2x1x16xf32>
    %320 = vector.shape_cast %319 : vector<2x1x16xf32> to vector<2x1x16xf32>
    %321 = vector.broadcast %320 : vector<2x1x16xf32> to vector<2x16x16xf32>
    %322 = arith.select %318, %321, %314 : vector<2x16x16xi1>, vector<2x16x16xf32>
    %323 = vector.broadcast %0 : i32 to vector<2x16x16xi32>
    %324 = arith.cmpi eq, %18, %323 : vector<2x16x16xi32>
    %325 = vector.shape_cast %300 : vector<2x16xf32> to vector<2x1x16xf32>
    %326 = vector.shape_cast %325 : vector<2x1x16xf32> to vector<2x1x16xf32>
    %327 = vector.broadcast %326 : vector<2x1x16xf32> to vector<2x16x16xf32>
    %328 = arith.select %324, %327, %316 : vector<2x16x16xi1>, vector<2x16x16xf32>
    %c1_130 = arith.constant 1 : index
    %c0_131 = arith.constant 0 : index
    %c0_132 = arith.constant 0 : index
    %c0_133 = arith.constant 0 : index
    %329 = vector.load %arg19[%c1_130, %c0_131, %c0_132, %c0_133] : memref<2x2x16x16xf32, #tpu.memory_space<vmem>>, vector<1x2x16x16xf32>
    %330 = vector.shape_cast %329 : vector<1x2x16x16xf32> to vector<2x16x16xf32>
    %331 = vector.shape_cast %322 : vector<2x16x16xf32> to vector<1x2x16x16xf32>
    tpu.vector_store %arg19[%c1_130, %c0_131, %c0_132, %c0_133], %331 {strides = array<i32>} : memref<2x2x16x16xf32, #tpu.memory_space<vmem>>, vector<1x2x16x16xf32>,
    %c1_134 = arith.constant 1 : index
    %c0_135 = arith.constant 0 : index
    %c0_136 = arith.constant 0 : index
    %c0_137 = arith.constant 0 : index
    %332 = vector.load %arg20[%c1_134, %c0_135, %c0_136, %c0_137] : memref<2x2x16x16xf32, #tpu.memory_space<vmem>>, vector<1x2x16x16xf32>
    %333 = vector.shape_cast %332 : vector<1x2x16x16xf32> to vector<2x16x16xf32>
    %334 = vector.shape_cast %328 : vector<2x16x16xf32> to vector<1x2x16x16xf32>
    tpu.vector_store %arg20[%c1_134, %c0_135, %c0_136, %c0_137], %334 {strides = array<i32>} : memref<2x2x16x16xf32, #tpu.memory_space<vmem>>, vector<1x2x16x16xf32>,
    %335 = vector.extract_strided_slice %322 {offsets = [0, 0, 0], sizes = [1, 16, 16], strides = [1, 1, 1]} : vector<2x16x16xf32> to vector<1x16x16xf32>
    %336 = vector.shape_cast %335 : vector<1x16x16xf32> to vector<16x16xf32>
    %337 = vector.extract_strided_slice %328 {offsets = [0, 0, 0], sizes = [1, 16, 16], strides = [1, 1, 1]} : vector<2x16x16xf32> to vector<1x16x16xf32>
    %338 = vector.shape_cast %337 : vector<1x16x16xf32> to vector<16x16xf32>
    %339 = vector.extract_strided_slice %306 {offsets = [0, 0], sizes = [1, 8], strides = [1, 1]} : vector<2x32xf32> to vector<1x8xf32>
    %340 = vector.extract_strided_slice %336 {offsets = [0, 0], sizes = [16, 8], strides = [1, 1]} : vector<16x16xf32> to vector<16x8xf32>
    %341 = vector.extract_strided_slice %338 {offsets = [0, 0], sizes = [16, 8], strides = [1, 1]} : vector<16x16xf32> to vector<16x8xf32>
    %cst_138 = arith.constant dense<0.000000e+00> : vector<1x16xf32>
    %342 = tpu.matmul %339, %340, %cst_138 {dimension_numbers = #tpu.dot_dimension_numbers<[1], [1], [0], [0], [0, 0, 1, 0], [], []>} : vector<1x8xf32>, vector<16x8xf32>, vector<1x16xf32> -> vector<1x16xf32>
    %cst_139 = arith.constant 0.353553385 : f32
    %343 = vector.broadcast %cst_139 : f32 to vector<1x16xf32>
    %344 = arith.mulf %342, %343 : vector<1x16xf32>
    %345 = vector.broadcast %0 : i32 to vector<1x16xi32>
    %346 = arith.cmpi sle, %17, %345 : vector<1x16xi32>
    %cst_140 = arith.constant -1.000000e+30 : f32
    %347 = vector.broadcast %cst_140 : f32 to vector<1x16xf32>
    %348 = arith.select %346, %344, %347 : vector<1x16xi1>, vector<1x16xf32>
    %cst_141 = arith.constant dense<0xFF800000> : vector<1xf32>
    %349 = vector.multi_reduction <maximumf>, %348, %cst_141 [1] : vector<1x16xf32> to vector<1xf32>
    %350 = vector.shape_cast %349 : vector<1xf32> to vector<1x1xf32>
    %351 = vector.broadcast %350 : vector<1x1xf32> to vector<1x16xf32>
    %352 = arith.subf %348, %351 : vector<1x16xf32>
    %353 = math.exp %352 : vector<1x16xf32>
    %cst_142 = arith.constant dense<0.000000e+00> : vector<1xf32>
    %354 = vector.multi_reduction <add>, %353, %cst_142 [1] : vector<1x16xf32> to vector<1xf32>
    %355 = vector.shape_cast %354 : vector<1xf32> to vector<1x1xf32>
    %356 = vector.broadcast %355 : vector<1x1xf32> to vector<1x16xf32>
    %357 = arith.divf %353, %356 : vector<1x16xf32>
    %cst_143 = arith.constant dense<0.000000e+00> : vector<1x8xf32>
    %358 = tpu.matmul %357, %341, %cst_143 {dimension_numbers = #tpu.dot_dimension_numbers<[1], [0], [0], [1], [0, 0, 1, 1], [], []>} : vector<1x16xf32>, vector<16x8xf32>, vector<1x8xf32> -> vector<1x8xf32>
    %359 = vector.extract_strided_slice %306 {offsets = [0, 8], sizes = [1, 8], strides = [1, 1]} : vector<2x32xf32> to vector<1x8xf32>
    %360 = vector.extract_strided_slice %336 {offsets = [0, 0], sizes = [16, 8], strides = [1, 1]} : vector<16x16xf32> to vector<16x8xf32>
    %361 = vector.extract_strided_slice %338 {offsets = [0, 0], sizes = [16, 8], strides = [1, 1]} : vector<16x16xf32> to vector<16x8xf32>
    %cst_144 = arith.constant dense<0.000000e+00> : vector<1x16xf32>
    %362 = tpu.matmul %359, %360, %cst_144 {dimension_numbers = #tpu.dot_dimension_numbers<[1], [1], [0], [0], [0, 0, 1, 0], [], []>} : vector<1x8xf32>, vector<16x8xf32>, vector<1x16xf32> -> vector<1x16xf32>
    %cst_145 = arith.constant 0.353553385 : f32
    %363 = vector.broadcast %cst_145 : f32 to vector<1x16xf32>
    %364 = arith.mulf %362, %363 : vector<1x16xf32>
    %365 = vector.broadcast %0 : i32 to vector<1x16xi32>
    %366 = arith.cmpi sle, %17, %365 : vector<1x16xi32>
    %cst_146 = arith.constant -1.000000e+30 : f32
    %367 = vector.broadcast %cst_146 : f32 to vector<1x16xf32>
    %368 = arith.select %366, %364, %367 : vector<1x16xi1>, vector<1x16xf32>
    %cst_147 = arith.constant dense<0xFF800000> : vector<1xf32>
    %369 = vector.multi_reduction <maximumf>, %368, %cst_147 [1] : vector<1x16xf32> to vector<1xf32>
    %370 = vector.shape_cast %369 : vector<1xf32> to vector<1x1xf32>
    %371 = vector.broadcast %370 : vector<1x1xf32> to vector<1x16xf32>
    %372 = arith.subf %368, %371 : vector<1x16xf32>
    %373 = math.exp %372 : vector<1x16xf32>
    %cst_148 = arith.constant dense<0.000000e+00> : vector<1xf32>
    %374 = vector.multi_reduction <add>, %373, %cst_148 [1] : vector<1x16xf32> to vector<1xf32>
    %375 = vector.shape_cast %374 : vector<1xf32> to vector<1x1xf32>
    %376 = vector.broadcast %375 : vector<1x1xf32> to vector<1x16xf32>
    %377 = arith.divf %373, %376 : vector<1x16xf32>
    %cst_149 = arith.constant dense<0.000000e+00> : vector<1x8xf32>
    %378 = tpu.matmul %377, %361, %cst_149 {dimension_numbers = #tpu.dot_dimension_numbers<[1], [0], [0], [1], [0, 0, 1, 1], [], []>} : vector<1x16xf32>, vector<16x8xf32>, vector<1x8xf32> -> vector<1x8xf32>
    %379 = vector.extract_strided_slice %306 {offsets = [0, 16], sizes = [1, 8], strides = [1, 1]} : vector<2x32xf32> to vector<1x8xf32>
    %380 = vector.extract_strided_slice %336 {offsets = [0, 8], sizes = [16, 8], strides = [1, 1]} : vector<16x16xf32> to vector<16x8xf32>
    %381 = vector.extract_strided_slice %338 {offsets = [0, 8], sizes = [16, 8], strides = [1, 1]} : vector<16x16xf32> to vector<16x8xf32>
    %cst_150 = arith.constant dense<0.000000e+00> : vector<1x16xf32>
    %382 = tpu.matmul %379, %380, %cst_150 {dimension_numbers = #tpu.dot_dimension_numbers<[1], [1], [0], [0], [0, 0, 1, 0], [], []>} : vector<1x8xf32>, vector<16x8xf32>, vector<1x16xf32> -> vector<1x16xf32>
    %cst_151 = arith.constant 0.353553385 : f32
    %383 = vector.broadcast %cst_151 : f32 to vector<1x16xf32>
    %384 = arith.mulf %382, %383 : vector<1x16xf32>
    %385 = vector.broadcast %0 : i32 to vector<1x16xi32>
    %386 = arith.cmpi sle, %17, %385 : vector<1x16xi32>
    %cst_152 = arith.constant -1.000000e+30 : f32
    %387 = vector.broadcast %cst_152 : f32 to vector<1x16xf32>
    %388 = arith.select %386, %384, %387 : vector<1x16xi1>, vector<1x16xf32>
    %cst_153 = arith.constant dense<0xFF800000> : vector<1xf32>
    %389 = vector.multi_reduction <maximumf>, %388, %cst_153 [1] : vector<1x16xf32> to vector<1xf32>
    %390 = vector.shape_cast %389 : vector<1xf32> to vector<1x1xf32>
    %391 = vector.broadcast %390 : vector<1x1xf32> to vector<1x16xf32>
    %392 = arith.subf %388, %391 : vector<1x16xf32>
    %393 = math.exp %392 : vector<1x16xf32>
    %cst_154 = arith.constant dense<0.000000e+00> : vector<1xf32>
    %394 = vector.multi_reduction <add>, %393, %cst_154 [1] : vector<1x16xf32> to vector<1xf32>
    %395 = vector.shape_cast %394 : vector<1xf32> to vector<1x1xf32>
    %396 = vector.broadcast %395 : vector<1x1xf32> to vector<1x16xf32>
    %397 = arith.divf %393, %396 : vector<1x16xf32>
    %cst_155 = arith.constant dense<0.000000e+00> : vector<1x8xf32>
    %398 = tpu.matmul %397, %381, %cst_155 {dimension_numbers = #tpu.dot_dimension_numbers<[1], [0], [0], [1], [0, 0, 1, 1], [], []>} : vector<1x16xf32>, vector<16x8xf32>, vector<1x8xf32> -> vector<1x8xf32>
    %399 = vector.extract_strided_slice %306 {offsets = [0, 24], sizes = [1, 8], strides = [1, 1]} : vector<2x32xf32> to vector<1x8xf32>
    %400 = vector.extract_strided_slice %336 {offsets = [0, 8], sizes = [16, 8], strides = [1, 1]} : vector<16x16xf32> to vector<16x8xf32>
    %401 = vector.extract_strided_slice %338 {offsets = [0, 8], sizes = [16, 8], strides = [1, 1]} : vector<16x16xf32> to vector<16x8xf32>
    %cst_156 = arith.constant dense<0.000000e+00> : vector<1x16xf32>
    %402 = tpu.matmul %399, %400, %cst_156 {dimension_numbers = #tpu.dot_dimension_numbers<[1], [1], [0], [0], [0, 0, 1, 0], [], []>} : vector<1x8xf32>, vector<16x8xf32>, vector<1x16xf32> -> vector<1x16xf32>
    %cst_157 = arith.constant 0.353553385 : f32
    %403 = vector.broadcast %cst_157 : f32 to vector<1x16xf32>
    %404 = arith.mulf %402, %403 : vector<1x16xf32>
    %405 = vector.broadcast %0 : i32 to vector<1x16xi32>
    %406 = arith.cmpi sle, %17, %405 : vector<1x16xi32>
    %cst_158 = arith.constant -1.000000e+30 : f32
    %407 = vector.broadcast %cst_158 : f32 to vector<1x16xf32>
    %408 = arith.select %406, %404, %407 : vector<1x16xi1>, vector<1x16xf32>
    %cst_159 = arith.constant dense<0xFF800000> : vector<1xf32>
    %409 = vector.multi_reduction <maximumf>, %408, %cst_159 [1] : vector<1x16xf32> to vector<1xf32>
    %410 = vector.shape_cast %409 : vector<1xf32> to vector<1x1xf32>
    %411 = vector.broadcast %410 : vector<1x1xf32> to vector<1x16xf32>
    %412 = arith.subf %408, %411 : vector<1x16xf32>
    %413 = math.exp %412 : vector<1x16xf32>
    %cst_160 = arith.constant dense<0.000000e+00> : vector<1xf32>
    %414 = vector.multi_reduction <add>, %413, %cst_160 [1] : vector<1x16xf32> to vector<1xf32>
    %415 = vector.shape_cast %414 : vector<1xf32> to vector<1x1xf32>
    %416 = vector.broadcast %415 : vector<1x1xf32> to vector<1x16xf32>
    %417 = arith.divf %413, %416 : vector<1x16xf32>
    %cst_161 = arith.constant dense<0.000000e+00> : vector<1x8xf32>
    %418 = tpu.matmul %417, %401, %cst_161 {dimension_numbers = #tpu.dot_dimension_numbers<[1], [0], [0], [1], [0, 0, 1, 1], [], []>} : vector<1x16xf32>, vector<16x8xf32>, vector<1x8xf32> -> vector<1x8xf32>
    %419 = tpu.concatenate %358, %378, %398, %418 in 1 : vector<1x8xf32>, vector<1x8xf32>, vector<1x8xf32>, vector<1x8xf32> -> vector<1x32xf32>
    %420 = vector.extract_strided_slice %322 {offsets = [1, 0, 0], sizes = [1, 16, 16], strides = [1, 1, 1]} : vector<2x16x16xf32> to vector<1x16x16xf32>
    %421 = vector.shape_cast %420 : vector<1x16x16xf32> to vector<16x16xf32>
    %422 = vector.extract_strided_slice %328 {offsets = [1, 0, 0], sizes = [1, 16, 16], strides = [1, 1, 1]} : vector<2x16x16xf32> to vector<1x16x16xf32>
    %423 = vector.shape_cast %422 : vector<1x16x16xf32> to vector<16x16xf32>
    %424 = vector.extract_strided_slice %306 {offsets = [1, 0], sizes = [1, 8], strides = [1, 1]} : vector<2x32xf32> to vector<1x8xf32>
    %425 = vector.extract_strided_slice %421 {offsets = [0, 0], sizes = [16, 8], strides = [1, 1]} : vector<16x16xf32> to vector<16x8xf32>
    %426 = vector.extract_strided_slice %423 {offsets = [0, 0], sizes = [16, 8], strides = [1, 1]} : vector<16x16xf32> to vector<16x8xf32>
    %cst_162 = arith.constant dense<0.000000e+00> : vector<1x16xf32>
    %427 = tpu.matmul %424, %425, %cst_162 {dimension_numbers = #tpu.dot_dimension_numbers<[1], [1], [0], [0], [0, 0, 1, 0], [], []>} : vector<1x8xf32>, vector<16x8xf32>, vector<1x16xf32> -> vector<1x16xf32>
    %cst_163 = arith.constant 0.353553385 : f32
    %428 = vector.broadcast %cst_163 : f32 to vector<1x16xf32>
    %429 = arith.mulf %427, %428 : vector<1x16xf32>
    %430 = vector.broadcast %0 : i32 to vector<1x16xi32>
    %431 = arith.cmpi sle, %17, %430 : vector<1x16xi32>
    %cst_164 = arith.constant -1.000000e+30 : f32
    %432 = vector.broadcast %cst_164 : f32 to vector<1x16xf32>
    %433 = arith.select %431, %429, %432 : vector<1x16xi1>, vector<1x16xf32>
    %cst_165 = arith.constant dense<0xFF800000> : vector<1xf32>
    %434 = vector.multi_reduction <maximumf>, %433, %cst_165 [1] : vector<1x16xf32> to vector<1xf32>
    %435 = vector.shape_cast %434 : vector<1xf32> to vector<1x1xf32>
    %436 = vector.broadcast %435 : vector<1x1xf32> to vector<1x16xf32>
    %437 = arith.subf %433, %436 : vector<1x16xf32>
    %438 = math.exp %437 : vector<1x16xf32>
    %cst_166 = arith.constant dense<0.000000e+00> : vector<1xf32>
    %439 = vector.multi_reduction <add>, %438, %cst_166 [1] : vector<1x16xf32> to vector<1xf32>
    %440 = vector.shape_cast %439 : vector<1xf32> to vector<1x1xf32>
    %441 = vector.broadcast %440 : vector<1x1xf32> to vector<1x16xf32>
    %442 = arith.divf %438, %441 : vector<1x16xf32>
    %cst_167 = arith.constant dense<0.000000e+00> : vector<1x8xf32>
    %443 = tpu.matmul %442, %426, %cst_167 {dimension_numbers = #tpu.dot_dimension_numbers<[1], [0], [0], [1], [0, 0, 1, 1], [], []>} : vector<1x16xf32>, vector<16x8xf32>, vector<1x8xf32> -> vector<1x8xf32>
    %444 = vector.extract_strided_slice %306 {offsets = [1, 8], sizes = [1, 8], strides = [1, 1]} : vector<2x32xf32> to vector<1x8xf32>
    %445 = vector.extract_strided_slice %421 {offsets = [0, 0], sizes = [16, 8], strides = [1, 1]} : vector<16x16xf32> to vector<16x8xf32>
    %446 = vector.extract_strided_slice %423 {offsets = [0, 0], sizes = [16, 8], strides = [1, 1]} : vector<16x16xf32> to vector<16x8xf32>
    %cst_168 = arith.constant dense<0.000000e+00> : vector<1x16xf32>
    %447 = tpu.matmul %444, %445, %cst_168 {dimension_numbers = #tpu.dot_dimension_numbers<[1], [1], [0], [0], [0, 0, 1, 0], [], []>} : vector<1x8xf32>, vector<16x8xf32>, vector<1x16xf32> -> vector<1x16xf32>
    %cst_169 = arith.constant 0.353553385 : f32
    %448 = vector.broadcast %cst_169 : f32 to vector<1x16xf32>
    %449 = arith.mulf %447, %448 : vector<1x16xf32>
    %450 = vector.broadcast %0 : i32 to vector<1x16xi32>
    %451 = arith.cmpi sle, %17, %450 : vector<1x16xi32>
    %cst_170 = arith.constant -1.000000e+30 : f32
    %452 = vector.broadcast %cst_170 : f32 to vector<1x16xf32>
    %453 = arith.select %451, %449, %452 : vector<1x16xi1>, vector<1x16xf32>
    %cst_171 = arith.constant dense<0xFF800000> : vector<1xf32>
    %454 = vector.multi_reduction <maximumf>, %453, %cst_171 [1] : vector<1x16xf32> to vector<1xf32>
    %455 = vector.shape_cast %454 : vector<1xf32> to vector<1x1xf32>
    %456 = vector.broadcast %455 : vector<1x1xf32> to vector<1x16xf32>
    %457 = arith.subf %453, %456 : vector<1x16xf32>
    %458 = math.exp %457 : vector<1x16xf32>
    %cst_172 = arith.constant dense<0.000000e+00> : vector<1xf32>
    %459 = vector.multi_reduction <add>, %458, %cst_172 [1] : vector<1x16xf32> to vector<1xf32>
    %460 = vector.shape_cast %459 : vector<1xf32> to vector<1x1xf32>
    %461 = vector.broadcast %460 : vector<1x1xf32> to vector<1x16xf32>
    %462 = arith.divf %458, %461 : vector<1x16xf32>
    %cst_173 = arith.constant dense<0.000000e+00> : vector<1x8xf32>
    %463 = tpu.matmul %462, %446, %cst_173 {dimension_numbers = #tpu.dot_dimension_numbers<[1], [0], [0], [1], [0, 0, 1, 1], [], []>} : vector<1x16xf32>, vector<16x8xf32>, vector<1x8xf32> -> vector<1x8xf32>
    %464 = vector.extract_strided_slice %306 {offsets = [1, 16], sizes = [1, 8], strides = [1, 1]} : vector<2x32xf32> to vector<1x8xf32>
    %465 = vector.extract_strided_slice %421 {offsets = [0, 8], sizes = [16, 8], strides = [1, 1]} : vector<16x16xf32> to vector<16x8xf32>
    %466 = vector.extract_strided_slice %423 {offsets = [0, 8], sizes = [16, 8], strides = [1, 1]} : vector<16x16xf32> to vector<16x8xf32>
    %cst_174 = arith.constant dense<0.000000e+00> : vector<1x16xf32>
    %467 = tpu.matmul %464, %465, %cst_174 {dimension_numbers = #tpu.dot_dimension_numbers<[1], [1], [0], [0], [0, 0, 1, 0], [], []>} : vector<1x8xf32>, vector<16x8xf32>, vector<1x16xf32> -> vector<1x16xf32>
    %cst_175 = arith.constant 0.353553385 : f32
    %468 = vector.broadcast %cst_175 : f32 to vector<1x16xf32>
    %469 = arith.mulf %467, %468 : vector<1x16xf32>
    %470 = vector.broadcast %0 : i32 to vector<1x16xi32>
    %471 = arith.cmpi sle, %17, %470 : vector<1x16xi32>
    %cst_176 = arith.constant -1.000000e+30 : f32
    %472 = vector.broadcast %cst_176 : f32 to vector<1x16xf32>
    %473 = arith.select %471, %469, %472 : vector<1x16xi1>, vector<1x16xf32>
    %cst_177 = arith.constant dense<0xFF800000> : vector<1xf32>
    %474 = vector.multi_reduction <maximumf>, %473, %cst_177 [1] : vector<1x16xf32> to vector<1xf32>
    %475 = vector.shape_cast %474 : vector<1xf32> to vector<1x1xf32>
    %476 = vector.broadcast %475 : vector<1x1xf32> to vector<1x16xf32>
    %477 = arith.subf %473, %476 : vector<1x16xf32>
    %478 = math.exp %477 : vector<1x16xf32>
    %cst_178 = arith.constant dense<0.000000e+00> : vector<1xf32>
    %479 = vector.multi_reduction <add>, %478, %cst_178 [1] : vector<1x16xf32> to vector<1xf32>
    %480 = vector.shape_cast %479 : vector<1xf32> to vector<1x1xf32>
    %481 = vector.broadcast %480 : vector<1x1xf32> to vector<1x16xf32>
    %482 = arith.divf %478, %481 : vector<1x16xf32>
    %cst_179 = arith.constant dense<0.000000e+00> : vector<1x8xf32>
    %483 = tpu.matmul %482, %466, %cst_179 {dimension_numbers = #tpu.dot_dimension_numbers<[1], [0], [0], [1], [0, 0, 1, 1], [], []>} : vector<1x16xf32>, vector<16x8xf32>, vector<1x8xf32> -> vector<1x8xf32>
    %484 = vector.extract_strided_slice %306 {offsets = [1, 24], sizes = [1, 8], strides = [1, 1]} : vector<2x32xf32> to vector<1x8xf32>
    %485 = vector.extract_strided_slice %421 {offsets = [0, 8], sizes = [16, 8], strides = [1, 1]} : vector<16x16xf32> to vector<16x8xf32>
    %486 = vector.extract_strided_slice %423 {offsets = [0, 8], sizes = [16, 8], strides = [1, 1]} : vector<16x16xf32> to vector<16x8xf32>
    %cst_180 = arith.constant dense<0.000000e+00> : vector<1x16xf32>
    %487 = tpu.matmul %484, %485, %cst_180 {dimension_numbers = #tpu.dot_dimension_numbers<[1], [1], [0], [0], [0, 0, 1, 0], [], []>} : vector<1x8xf32>, vector<16x8xf32>, vector<1x16xf32> -> vector<1x16xf32>
    %cst_181 = arith.constant 0.353553385 : f32
    %488 = vector.broadcast %cst_181 : f32 to vector<1x16xf32>
    %489 = arith.mulf %487, %488 : vector<1x16xf32>
    %490 = vector.broadcast %0 : i32 to vector<1x16xi32>
    %491 = arith.cmpi sle, %17, %490 : vector<1x16xi32>
    %cst_182 = arith.constant -1.000000e+30 : f32
    %492 = vector.broadcast %cst_182 : f32 to vector<1x16xf32>
    %493 = arith.select %491, %489, %492 : vector<1x16xi1>, vector<1x16xf32>
    %cst_183 = arith.constant dense<0xFF800000> : vector<1xf32>
    %494 = vector.multi_reduction <maximumf>, %493, %cst_183 [1] : vector<1x16xf32> to vector<1xf32>
    %495 = vector.shape_cast %494 : vector<1xf32> to vector<1x1xf32>
    %496 = vector.broadcast %495 : vector<1x1xf32> to vector<1x16xf32>
    %497 = arith.subf %493, %496 : vector<1x16xf32>
    %498 = math.exp %497 : vector<1x16xf32>
    %cst_184 = arith.constant dense<0.000000e+00> : vector<1xf32>
    %499 = vector.multi_reduction <add>, %498, %cst_184 [1] : vector<1x16xf32> to vector<1xf32>
    %500 = vector.shape_cast %499 : vector<1xf32> to vector<1x1xf32>
    %501 = vector.broadcast %500 : vector<1x1xf32> to vector<1x16xf32>
    %502 = arith.divf %498, %501 : vector<1x16xf32>
    %cst_185 = arith.constant dense<0.000000e+00> : vector<1x8xf32>
    %503 = tpu.matmul %502, %486, %cst_185 {dimension_numbers = #tpu.dot_dimension_numbers<[1], [0], [0], [1], [0, 0, 1, 1], [], []>} : vector<1x16xf32>, vector<16x8xf32>, vector<1x8xf32> -> vector<1x8xf32>
    %504 = tpu.concatenate %443, %463, %483, %503 in 1 : vector<1x8xf32>, vector<1x8xf32>, vector<1x8xf32>, vector<1x8xf32> -> vector<1x32xf32>
    %505 = tpu.concatenate %419, %504 in 0 : vector<1x32xf32>, vector<1x32xf32> -> vector<2x32xf32>
    %c1_186 = arith.constant 1 : index
    %c0_187 = arith.constant 0 : index
    %c0_188 = arith.constant 0 : index
    %506 = vector.load %arg10[%c1_186, %c0_187, %c0_188] : memref<2x32x32xf32, #tpu.memory_space<vmem>>, vector<1x32x32xf32>
    %507 = vector.shape_cast %506 : vector<1x32x32xf32> to vector<32x32xf32>
    %cst_189 = arith.constant dense<0.000000e+00> : vector<2x32xf32>
    %508 = tpu.matmul %505, %507, %cst_189 {dimension_numbers = #tpu.dot_dimension_numbers<[1], [0], [0], [1], [0, 0, 1, 1], [], []>} : vector<2x32xf32>, vector<32x32xf32>, vector<2x32xf32> -> vector<2x32xf32>
    %509 = arith.addf %280, %508 : vector<2x32xf32>
    %c1_190 = arith.constant 1 : index
    %c0_191 = arith.constant 0 : index
    %c0_192 = arith.constant 0 : index
    %510 = vector.load %arg8[%c1_190, %c0_191, %c0_192] : memref<2x1x32xf32, #tpu.memory_space<vmem>>, vector<1x1x32xf32>
    %511 = vector.shape_cast %510 : vector<1x1x32xf32> to vector<1x32xf32>
    %512 = arith.mulf %509, %509 : vector<2x32xf32>
    %cst_193 = arith.constant dense<0.000000e+00> : vector<2xf32>
    %513 = vector.multi_reduction <add>, %512, %cst_193 [1] : vector<2x32xf32> to vector<2xf32>
    %514 = vector.shape_cast %513 : vector<2xf32> to vector<2x1xf32>
    %cst_194 = arith.constant 3.200000e+01 : f32
    %515 = vector.broadcast %cst_194 : f32 to vector<2x1xf32>
    %516 = arith.divf %514, %515 : vector<2x1xf32>
    %cst_195 = arith.constant 9.99999974E-6 : f32
    %517 = vector.broadcast %cst_195 : f32 to vector<2x1xf32>
    %518 = arith.addf %516, %517 : vector<2x1xf32>
    %519 = math.rsqrt %518 : vector<2x1xf32>
    %520 = vector.broadcast %519 : vector<2x1xf32> to vector<2x32xf32>
    %521 = arith.mulf %509, %520 : vector<2x32xf32>
    %522 = vector.broadcast %511 : vector<1x32xf32> to vector<2x32xf32>
    %523 = arith.mulf %521, %522 : vector<2x32xf32>
    %c1_196 = arith.constant 1 : index
    %c0_197 = arith.constant 0 : index
    %c0_198 = arith.constant 0 : index
    %524 = vector.load %arg11[%c1_196, %c0_197, %c0_198] : memref<2x32x96xf32, #tpu.memory_space<vmem>>, vector<1x32x96xf32>
    %525 = vector.shape_cast %524 : vector<1x32x96xf32> to vector<32x96xf32>
    %cst_199 = arith.constant dense<0.000000e+00> : vector<2x96xf32>
    %526 = tpu.matmul %523, %525, %cst_199 {dimension_numbers = #tpu.dot_dimension_numbers<[1], [0], [0], [1], [0, 0, 1, 1], [], []>} : vector<2x32xf32>, vector<32x96xf32>, vector<2x96xf32> -> vector<2x96xf32>
    %c1_200 = arith.constant 1 : index
    %c0_201 = arith.constant 0 : index
    %c0_202 = arith.constant 0 : index
    %527 = vector.load %arg12[%c1_200, %c0_201, %c0_202] : memref<2x32x96xf32, #tpu.memory_space<vmem>>, vector<1x32x96xf32>
    %528 = vector.shape_cast %527 : vector<1x32x96xf32> to vector<32x96xf32>
    %cst_203 = arith.constant dense<0.000000e+00> : vector<2x96xf32>
    %529 = tpu.matmul %523, %528, %cst_203 {dimension_numbers = #tpu.dot_dimension_numbers<[1], [0], [0], [1], [0, 0, 1, 1], [], []>} : vector<2x32xf32>, vector<32x96xf32>, vector<2x96xf32> -> vector<2x96xf32>
    %cst_204 = arith.constant 0.000000e+00 : f32
    %530 = vector.broadcast %cst_204 : f32 to vector<2x96xf32>
    %531 = arith.subf %530, %526 : vector<2x96xf32>
    %532 = math.exp %531 : vector<2x96xf32>
    %cst_205 = arith.constant 1.000000e+00 : f32
    %533 = vector.broadcast %cst_205 : f32 to vector<2x96xf32>
    %534 = arith.addf %533, %532 : vector<2x96xf32>
    %cst_206 = arith.constant 1.000000e+00 : f32
    %535 = vector.broadcast %cst_206 : f32 to vector<2x96xf32>
    %536 = arith.divf %535, %534 : vector<2x96xf32>
    %537 = arith.mulf %526, %536 : vector<2x96xf32>
    %538 = arith.mulf %537, %529 : vector<2x96xf32>
    %c1_207 = arith.constant 1 : index
    %c0_208 = arith.constant 0 : index
    %c0_209 = arith.constant 0 : index
    %539 = vector.load %arg13[%c1_207, %c0_208, %c0_209] : memref<2x96x32xf32, #tpu.memory_space<vmem>>, vector<1x96x32xf32>
    %540 = vector.shape_cast %539 : vector<1x96x32xf32> to vector<96x32xf32>
    %cst_210 = arith.constant dense<0.000000e+00> : vector<2x32xf32>
    %541 = tpu.matmul %538, %540, %cst_210 {dimension_numbers = #tpu.dot_dimension_numbers<[1], [0], [0], [1], [0, 0, 1, 1], [], []>} : vector<2x96xf32>, vector<96x32xf32>, vector<2x32xf32> -> vector<2x32xf32>
    %542 = arith.addf %509, %541 : vector<2x32xf32>
    %c0_211 = arith.constant 0 : index
    %c0_212 = arith.constant 0 : index
    %543 = vector.load %arg14[%c0_211, %c0_212] : memref<1x32xf32, #tpu.memory_space<vmem>>, vector<1x32xf32>
    %544 = arith.mulf %542, %542 : vector<2x32xf32>
    %cst_213 = arith.constant dense<0.000000e+00> : vector<2xf32>
    %545 = vector.multi_reduction <add>, %544, %cst_213 [1] : vector<2x32xf32> to vector<2xf32>
    %546 = vector.shape_cast %545 : vector<2xf32> to vector<2x1xf32>
    %cst_214 = arith.constant 3.200000e+01 : f32
    %547 = vector.broadcast %cst_214 : f32 to vector<2x1xf32>
    %548 = arith.divf %546, %547 : vector<2x1xf32>
    %cst_215 = arith.constant 9.99999974E-6 : f32
    %549 = vector.broadcast %cst_215 : f32 to vector<2x1xf32>
    %550 = arith.addf %548, %549 : vector<2x1xf32>
    %551 = math.rsqrt %550 : vector<2x1xf32>
    %552 = vector.broadcast %551 : vector<2x1xf32> to vector<2x32xf32>
    %553 = arith.mulf %542, %552 : vector<2x32xf32>
    %554 = vector.broadcast %543 : vector<1x32xf32> to vector<2x32xf32>
    %555 = arith.mulf %553, %554 : vector<2x32xf32>
    %c0_216 = arith.constant 0 : index
    %c0_217 = arith.constant 0 : index
    %556 = vector.load %arg15[%c0_216, %c0_217] : memref<32x64xf32, #tpu.memory_space<vmem>>, vector<32x64xf32>
    %cst_218 = arith.constant dense<0.000000e+00> : vector<2x64xf32>
    %557 = tpu.matmul %555, %556, %cst_218 {dimension_numbers = #tpu.dot_dimension_numbers<[1], [0], [0], [1], [0, 0, 1, 1], [], []>} : vector<2x32xf32>, vector<32x64xf32>, vector<2x64xf32> -> vector<2x64xf32>
    %c0_219 = arith.constant 0 : index
    %c0_220 = arith.constant 0 : index
    %558 = vector.load %arg18[%c0_219, %c0_220] : memref<2x64xf32, #tpu.memory_space<vmem>>, vector<2x64xf32>
    tpu.vector_store %arg18[%c0_219, %c0_220], %557 {strides = array<i32>} : memref<2x64xf32, #tpu.memory_space<vmem>>, vector<2x64xf32>,
    return
  }
}

</mosaic_0001>

<llo_original>
// kernel: decode_step.1
$region0: #{decode_step.1}
  #allocation0 [shape = 'u32[]', space=smem, size = 0x4, offset = 0x4, fixed_abs, tag = 'smem constant byte address 0x4 - core index']
  #allocation1 [shape = 'u32[144,128]{1,0:T(1,128)}', space=vmem, size = 0x12000, scoped, tag = 'internal scratch']
  #allocation2 [shape = 's32[1]{0:T(128)S(6)}', space=smem, size = 0x200, scoped, tag = 'scoped memory for decode_step.1']
  %s0 = inlined_call_operand.<no memory space> [shape: s32[1], index: 0, kind: input, shape index: {}]
  %s1 = inlined_call_operand.vmem [shape: s32[2,1], index: 1, kind: input, shape index: {}]
  %s2 = inlined_call_operand.vmem [shape: f32[64,32], index: 2, kind: input, shape index: {}]
  %s3 = inlined_call_operand.hbm [shape: f32[32,32], index: 3, kind: input, shape index: {}]
  %s4 = inlined_call_operand.hbm [shape: f32[32,32], index: 4, kind: input, shape index: {}]
  %s5 = inlined_call_operand.hbm [shape: f32[32,32], index: 5, kind: input, shape index: {}]
  %s6 = inlined_call_operand.hbm [shape: f32[16,16], index: 6, kind: input, shape index: {}]
  %s7 = inlined_call_operand.hbm [shape: f32[2,1,32], index: 7, kind: input, shape index: {}]
  %s8 = inlined_call_operand.hbm [shape: f32[2,1,32], index: 8, kind: input, shape index: {}]
  %s9 = inlined_call_operand.vmem [shape: f32[2,32,64], index: 9, kind: input, shape index: {}]
  %s10 = inlined_call_operand.vmem [shape: f32[2,32,32], index: 10, kind: input, shape index: {}]
  %s11 = inlined_call_operand.vmem [shape: f32[2,32,96], index: 11, kind: input, shape index: {}]
  %s12 = inlined_call_operand.vmem [shape: f32[2,32,96], index: 12, kind: input, shape index: {}]
  %s13 = inlined_call_operand.vmem [shape: f32[2,96,32], index: 13, kind: input, shape index: {}]
  %s14 = inlined_call_operand.hbm [shape: f32[1,32], index: 14, kind: input, shape index: {}]
  %s15 = inlined_call_operand.hbm [shape: f32[32,64], index: 15, kind: input, shape index: {}]
  %s16 = inlined_call_operand.vmem [shape: f32[2,2,16,16], index: 16, kind: input, shape index: {}]
  %s17 = inlined_call_operand.hbm [shape: f32[2,2,16,16], index: 17, kind: input, shape index: {}]
  %s18 = inlined_call_operand.hbm [shape: f32[2,64], index: 18, kind: output, shape index: {0}]
  %s19 = inlined_call_operand.hbm [shape: f32[2,2,16,16], index: 19, kind: output, shape index: {1}]
  %s20 = inlined_call_operand.hbm [shape: f32[2,2,16,16], index: 20, kind: output, shape index: {2}]
  %21 = xla_tuple %s18, %s19, %s20
  %s22 = sld [smem:[#allocation0]]
  $region134: #{decode_step.1} parent=0
    _
  %s24 = ssub.s32 1, %s22
  %s25 = scalar_select 0, %s24, %s22
  %26 = sst [smem:[#allocation2]] %s0
  $region1: #{decode_step.1} parent=0
    #allocation3 [shape = 'u8[16384]{0}', space=vmem, size = 0x4000, scoped, tag = 'input window, operand 3, single buffered']
    #allocation4 [shape = 's32[1]{0}', space=sflag, size = 0x4, scoped, tag = 'scoped memory for decode_step.1']
    #allocation5 [shape = 's32[1]{0}', space=sflag, size = 0x4, scoped, tag = 'scoped memory for decode_step.1']
    #allocation6 [shape = 'u8[16384]{0}', space=vmem, size = 0x4000, scoped, tag = 'input window, operand 4, single buffered']
    #allocation7 [shape = 's32[1]{0}', space=sflag, size = 0x4, scoped, tag = 'scoped memory for decode_step.1']
    #allocation8 [shape = 'u8[16384]{0}', space=vmem, size = 0x4000, scoped, tag = 'input window, operand 5, single buffered']
    #allocation9 [shape = 'u8[8192]{0}', space=vmem, size = 0x2000, scoped, tag = 'input window, operand 6, single buffered']
    #allocation10 [shape = 's32[1]{0}', space=sflag, size = 0x4, scoped, tag = 'scoped memory for decode_step.1']
    #allocation11 [shape = 'u8[1024]{0}', space=vmem, size = 0x400, scoped, tag = 'input window, operand 7, single buffered']
    #allocation12 [shape = 'u8[1024]{0}', space=vmem, size = 0x400, scoped, tag = 'input window, operand 8, single buffered']
    #allocation13 [shape = 's32[1]{0}', space=sflag, size = 0x4, scoped, tag = 'scoped memory for decode_step.1']
    #allocation14 [shape = 'u8[512]{0}', space=vmem, size = 0x400, scoped, tag = 'input window, operand 14, single buffered']
    #allocation15 [shape = 'u8[16384]{0}', space=vmem, size = 0x4000, scoped, tag = 'input window, operand 15, single buffered']
    #allocation16 [shape = 's32[1]{0}', space=sflag, size = 0x4, scoped, tag = 'scoped memory for decode_step.1']
    #allocation17 [shape = 'u8[32768]{0}', space=vmem, size = 0x8000, scoped, tag = 'input window, operand 17, single buffered']
    #allocation18 [shape = 'u8[1024]{0}', space=vmem, size = 0x400, scoped, tag = 'output window, operand 0, single buffered']
    #allocation19 [shape = 'u8[32768]{0}', space=vmem, size = 0x8000, scoped, tag = 'output window, operand 1, single buffered']
    #allocation20 [shape = 's32[1]{0}', space=sflag, size = 0x4, scoped, tag = 'scoped memory for decode_step.1']
    #allocation21 [shape = 'u8[32768]{0}', space=vmem, size = 0x8000, scoped, tag = 'output window, operand 2, single buffered']
    %27 = vsyncpa [#allocation4], 0
    %28 = vsyncpa [#allocation7], 0
    %29 = vsyncpa [#allocation10], 0
    %30 = vsyncpa [#allocation13], 0
    %31 = vsyncpa [#allocation16], 0
    %32 = vsyncpa [#allocation5], 0
    %33 = vsyncpa [#allocation20], 0
    // Predicated region
    $region2: #{decode_step.1} parent=1 // pred_check
      _
    $region3: #{decode_step.1} parent=1 // pred_check_branch
      %35 = sbr.rel (0) target = $region5
    $region4: #{decode_step.1} parent=1 // pred_region
      _
    $region5: #{decode_step.1} parent=1 // pred_fallthru
      _
    // Predicated region
    $region6: #{decode_step.1} parent=1 // pred_check
      _
    $region7: #{decode_step.1} parent=1 // pred_check_branch
      %37 = sbr.rel (0) target = $region9
    $region8: #{decode_step.1} parent=1 // pred_region
      _
    $region9: #{decode_step.1} parent=1 // pred_fallthru
      _
    // Predicated region
    $region10: #{decode_step.1} parent=1 // pred_check
      _
    $region11: #{decode_step.1} parent=1 // pred_check_branch
      %39 = sbr.rel (0) target = $region13
    $region12: #{decode_step.1} parent=1 // pred_region
      _
    $region13: #{decode_step.1} parent=1 // pred_fallthru
      _
    // Predicated region
    $region14: #{decode_step.1} parent=1 // pred_check
      _
    $region15: #{decode_step.1} parent=1 // pred_check_branch
      %41 = sbr.rel (0) target = $region17
    $region16: #{decode_step.1} parent=1 // pred_region
      %s43 = ssub.s32 512, 512
      %44 = vsyncadd [#allocation4], %s43
      %s45 = sshll.u32 [#allocation3], 4
      %s46 = int_to_ptr.vmem [resolvable:$true] %s45
      %51 = dma.hbm_to_vmem [thread:$0]  %s3, 512, %s46, [#allocation4], 128, 128, 8
    $region17: #{decode_step.1} parent=1 // pred_fallthru
      _
    // Predicated region
    $region18: #{decode_step.1} parent=1 // pred_check
      _
    $region19: #{decode_step.1} parent=1 // pred_check_branch
      %53 = sbr.rel (0) target = $region21
    $region20: #{decode_step.1} parent=1 // pred_region
      %s55 = ssub.s32 512, 512
      %56 = vsyncadd [#allocation7], %s55
      %s57 = sshll.u32 [#allocation6], 4
      %s58 = int_to_ptr.vmem [resolvable:$true] %s57
      %63 = dma.hbm_to_vmem [thread:$0]  %s4, 512, %s58, [#allocation7], 128, 128, 8
    $region21: #{decode_step.1} parent=1 // pred_fallthru
      _
    // Predicated region
    $region22: #{decode_step.1} parent=1 // pred_check
      _
    $region23: #{decode_step.1} parent=1 // pred_check_branch
      %65 = sbr.rel (0) target = $region25
    $region24: #{decode_step.1} parent=1 // pred_region
      %s67 = ssub.s32 512, 512
      %68 = vsyncadd [#allocation7], %s67
      %s69 = sshll.u32 [#allocation8], 4
      %s70 = int_to_ptr.vmem [resolvable:$true] %s69
      %75 = dma.hbm_to_vmem [thread:$0]  %s5, 512, %s70, [#allocation7], 128, 128, 8
    $region25: #{decode_step.1} parent=1 // pred_fallthru
      _
    // Predicated region
    $region26: #{decode_step.1} parent=1 // pred_check
      _
    $region27: #{decode_step.1} parent=1 // pred_check_branch
      %77 = sbr.rel (0) target = $region29
    $region28: #{decode_step.1} parent=1 // pred_region
      %s79 = ssub.s32 256, 256
      %80 = vsyncadd [#allocation10], %s79
      %s81 = sshll.u32 [#allocation9], 4
      %s82 = int_to_ptr.vmem [resolvable:$true] %s81
      %87 = dma.hbm_to_vmem [thread:$0]  %s6, 256, %s82, [#allocation10], 128, 128, 8
    $region29: #{decode_step.1} parent=1 // pred_fallthru
      _
    // Predicated region
    $region30: #{decode_step.1} parent=1 // pred_check
      _
    $region31: #{decode_step.1} parent=1 // pred_check_branch
      %89 = sbr.rel (0) target = $region33
    $region32: #{decode_step.1} parent=1 // pred_region
      %s91 = ssub.s32 32, 32
      %92 = vsyncadd [#allocation10], %s91
      %s93 = sshll.u32 [#allocation11], 4
      %s94 = int_to_ptr.vmem [resolvable:$true] %s93
      %99 = dma.hbm_to_vmem [thread:$0]  %s7, 32, %s94, [#allocation10], 16, 16, 1
    $region33: #{decode_step.1} parent=1 // pred_fallthru
      _
    // Predicated region
    $region34: #{decode_step.1} parent=1 // pred_check
      _
    $region35: #{decode_step.1} parent=1 // pred_check_branch
      %101 = sbr.rel (0) target = $region37
    $region36: #{decode_step.1} parent=1 // pred_region
      %s103 = ssub.s32 32, 32
      %104 = vsyncadd [#allocation13], %s103
      %s105 = sshll.u32 [#allocation12], 4
      %s106 = int_to_ptr.vmem [resolvable:$true] %s105
      %111 = dma.hbm_to_vmem [thread:$0]  %s8, 32, %s106, [#allocation13], 16, 16, 1
    $region37: #{decode_step.1} parent=1 // pred_fallthru
      _
    // Predicated region
    $region38: #{decode_step.1} parent=1 // pred_check
      _
    $region39: #{decode_step.1} parent=1 // pred_check_branch
      %113 = sbr.rel (0) target = $region41
    $region40: #{decode_step.1} parent=1 // pred_region
      _
    $region41: #{decode_step.1} parent=1 // pred_fallthru
      _
    // Predicated region
    $region42: #{decode_step.1} parent=1 // pred_check
      _
    $region43: #{decode_step.1} parent=1 // pred_check_branch
      %115 = sbr.rel (0) target = $region45
    $region44: #{decode_step.1} parent=1 // pred_region
      _
    $region45: #{decode_step.1} parent=1 // pred_fallthru
      _
    // Predicated region
    $region46: #{decode_step.1} parent=1 // pred_check
      _
    $region47: #{decode_step.1} parent=1 // pred_check_branch
      %117 = sbr.rel (0) target = $region49
    $region48: #{decode_step.1} parent=1 // pred_region
      _
    $region49: #{decode_step.1} parent=1 // pred_fallthru
      _
    // Predicated region
    $region50: #{decode_step.1} parent=1 // pred_check
      _
    $region51: #{decode_step.1} parent=1 // pred_check_branch
      %119 = sbr.rel (0) target = $region53
    $region52: #{decode_step.1} parent=1 // pred_region
      _
    $region53: #{decode_step.1} parent=1 // pred_fallthru
      _
    // Predicated region
    $region54: #{decode_step.1} parent=1 // pred_check
      _
    $region55: #{decode_step.1} parent=1 // pred_check_branch
      %121 = sbr.rel (0) target = $region57
    $region56: #{decode_step.1} parent=1 // pred_region
      _
    $region57: #{decode_step.1} parent=1 // pred_fallthru
      _
    // Predicated region
    $region58: #{decode_step.1} parent=1 // pred_check
      _
    $region59: #{decode_step.1} parent=1 // pred_check_branch
      %123 = sbr.rel (0) target = $region61
    $region60: #{decode_step.1} parent=1 // pred_region
      %s125 = ssub.s32 16, 16
      %126 = vsyncadd [#allocation13], %s125
      %s128 = sshll.u32 [#allocation14], 4
      %s129 = int_to_ptr.vmem [resolvable:$true] %s128
      %131 = dma.hbm_to_vmem [thread:$0]  %s14, 16, %s129, [#allocation13]
    $region61: #{decode_step.1} parent=1 // pred_fallthru
      _
    // Predicated region
    $region62: #{decode_step.1} parent=1 // pred_check
      _
    $region63: #{decode_step.1} parent=1 // pred_check_branch
      %133 = sbr.rel (0) target = $region65
    $region64: #{decode_step.1} parent=1 // pred_region
      %s135 = ssub.s32 512, 512
      %136 = vsyncadd [#allocation16], %s135
      %s137 = sshll.u32 [#allocation15], 4
      %s138 = int_to_ptr.vmem [resolvable:$true] %s137
      %143 = dma.hbm_to_vmem [thread:$0]  %s15, 512, %s138, [#allocation16], 128, 128, 8
    $region65: #{decode_step.1} parent=1 // pred_fallthru
      _
    // Predicated region
    $region66: #{decode_step.1} parent=1 // pred_check
      _
    $region67: #{decode_step.1} parent=1 // pred_check_branch
      %145 = sbr.rel (0) target = $region69
    $region68: #{decode_step.1} parent=1 // pred_region
      _
    $region69: #{decode_step.1} parent=1 // pred_fallthru
      _
    // Predicated region
    $region70: #{decode_step.1} parent=1 // pred_check
      _
    $region71: #{decode_step.1} parent=1 // pred_check_branch
      %147 = sbr.rel (0) target = $region73
    $region72: #{decode_step.1} parent=1 // pred_region
      %s149 = ssub.s32 1024, 1024
      %150 = vsyncadd [#allocation16], %s149
      %s151 = sshll.u32 [#allocation17], 4
      %s152 = int_to_ptr.vmem [resolvable:$true] %s151
      %157 = dma.hbm_to_vmem [thread:$0]  %s17, 1024, %s152, [#allocation16], 128, 128, 8
    $region73: #{decode_step.1} parent=1 // pred_fallthru
      _
    // Predicated region
    $region74: #{decode_step.1} parent=1 // pred_check
      _
    $region75: #{decode_step.1} parent=1 // pred_check_branch
      %159 = sbr.rel (0) target = $region77
    $region76: #{decode_step.1} parent=1 // pred_region
      %160 = dma.done [#allocation4], 512
    $region77: #{decode_step.1} parent=1 // pred_fallthru
      _
    // Predicated region
    $region78: #{decode_step.1} parent=1 // pred_check
      _
    $region79: #{decode_step.1} parent=1 // pred_check_branch
      %162 = sbr.rel (0) target = $region81
    $region80: #{decode_step.1} parent=1 // pred_region
      %163 = dma.done [#allocation7], 512
    $region81: #{decode_step.1} parent=1 // pred_fallthru
      _
    // Predicated region
    $region82: #{decode_step.1} parent=1 // pred_check
      _
    $region83: #{decode_step.1} parent=1 // pred_check_branch
      %165 = sbr.rel (0) target = $region85
    $region84: #{decode_step.1} parent=1 // pred_region
      %166 = dma.done [#allocation7], 512
    $region85: #{decode_step.1} parent=1 // pred_fallthru
      _
    // Predicated region
    $region86: #{decode_step.1} parent=1 // pred_check
      _
    $region87: #{decode_step.1} parent=1 // pred_check_branch
      %168 = sbr.rel (0) target = $region89
    $region88: #{decode_step.1} parent=1 // pred_region
      %169 = dma.done [#allocation10], 256
    $region89: #{decode_step.1} parent=1 // pred_fallthru
      _
    // Predicated region
    $region90: #{decode_step.1} parent=1 // pred_check
      _
    $region91: #{decode_step.1} parent=1 // pred_check_branch
      %171 = sbr.rel (0) target = $region93
    $region92: #{decode_step.1} parent=1 // pred_region
      %172 = dma.done [#allocation10], 32
    $region93: #{decode_step.1} parent=1 // pred_fallthru
      _
    // Predicated region
    $region94: #{decode_step.1} parent=1 // pred_check
      _
    $region95: #{decode_step.1} parent=1 // pred_check_branch
      %174 = sbr.rel (0) target = $region97
    $region96: #{decode_step.1} parent=1 // pred_region
      %175 = dma.done [#allocation13], 32
    $region97: #{decode_step.1} parent=1 // pred_fallthru
      _
    // Predicated region
    $region98: #{decode_step.1} parent=1 // pred_check
      _
    $region99: #{decode_step.1} parent=1 // pred_check_branch
      %177 = sbr.rel (0) target = $region101
    $region100: #{decode_step.1} parent=1 // pred_region
      %178 = dma.done [#allocation13], 16
    $region101: #{decode_step.1} parent=1 // pred_fallthru
      _
    // Predicated region
    $region102: #{decode_step.1} parent=1 // pred_check
      _
    $region103: #{decode_step.1} parent=1 // pred_check_branch
      %180 = sbr.rel (0) target = $region105
    $region104: #{decode_step.1} parent=1 // pred_region
      %181 = dma.done [#allocation16], 512
    $region105: #{decode_step.1} parent=1 // pred_fallthru
      _
    // Predicated region
    $region106: #{decode_step.1} parent=1 // pred_check
      _
    $region107: #{decode_step.1} parent=1 // pred_check_branch
      %183 = sbr.rel (0) target = $region109
    $region108: #{decode_step.1} parent=1 // pred_region
      %184 = dma.done [#allocation16], 1024
    $region109: #{decode_step.1} parent=1 // pred_fallthru
      _
    %s185 = sld [smem:[#allocation2]]
    %v186 = vld [vmem:[%s1] sm:$0x3]
    %v187 = vlaneseq
    %v188 = vand.u32 %v187, 127
    %189 = vset.pattern.permute.xlu0 0
    %190 = vperm.xlu0 %189, %v186
    %v191 = vpop.permute.xlu0 %190
    %vm192 = vcmp.eq.s32.totalorder %v188, %v191
    %v193 = vsel %vm192, 1, 0
    %v194 = vcvt.s32.f32 %v193
    %v195 = vld [vmem:[%s2] sm:$0xff]
    %v196 = vld [vmem:[%s2 + $0x8] sm:$0xff]
    %v197 = vld [vmem:[%s2 + $0x10] sm:$0xff]
    %v198 = vld [vmem:[%s2 + $0x18] sm:$0xff]
    %v199 = vld [vmem:[%s2 + $0x20] sm:$0xff]
    %v200 = vld [vmem:[%s2 + $0x28] sm:$0xff]
    %v201 = vld [vmem:[%s2 + $0x30] sm:$0xff]
    %v202 = vld [vmem:[%s2 + $0x38] sm:$0xff]
    %vm203 = vcmask 523264
    %v205 = vsel %vm203, %v194, 0
    %207 = vmatprep.subr.mxu0 0.0
    %208 = vmatpush1.msra.mxu0 0.0
    %209 = vmatprep.subr.mxu0 0.0
    %210 = vmatpush1.msra.mxu0 0.0
    %211 = vmatprep.subr.mxu0 0.0
    %212 = vmatpush1.msra.mxu0 0.0
    %213 = vmatprep.subr.mxu0 0.0
    %214 = vmatpush1.msra.mxu0 0.0
    %215 = vmatprep.subr.mxu0 0.0
    %216 = vmatpush1.msra.mxu0 0.0
    %217 = vmatprep.subr.mxu0 0.0
    %218 = vmatpush1.msra.mxu0 0.0
    %219 = vmatprep.subr.mxu0 0.0
    %220 = vmatpush1.msra.mxu0 0.0
    %221 = vmatprep.subr.mxu0 0.0
    %222 = vmatpush1.msra.mxu0 0.0
    %223 = vmatprep.subr.mxu0 0.0
    %224 = vmatpush1.msra.mxu0 %v202
    %225 = vmatprep.subr.mxu0 0.0
    %226 = vmatpush1.msra.mxu0 %v201
    %227 = vmatprep.subr.mxu0 0.0
    %228 = vmatpush1.msra.mxu0 %v200
    %229 = vmatprep.subr.mxu0 0.0
    %230 = vmatpush1.msra.mxu0 %v199
    %231 = vmatprep.subr.mxu0 0.0
    %232 = vmatpush1.msra.mxu0 %v198
    %233 = vmatprep.subr.mxu0 0.0
    %234 = vmatpush1.msra.mxu0 %v197
    %235 = vmatprep.subr.mxu0 0.0
    %236 = vmatpush1.msra.mxu0 %v196
    %237 = vmatprep.subr.mxu0 0.0
    %238 = vmatpush1.msra.mxu0 %v195
    %239 = vmatprep.subr.mxu0 0.0
    %240 = vmatpush2.msra.mxu0 0.0
    %241 = vmatprep.subr.mxu0 0.0
    %242 = vmatpush2.msra.mxu0 0.0
    %243 = vmatprep.subr.mxu0 0.0
    %244 = vmatpush2.msra.mxu0 0.0
    %245 = vmatprep.subr.mxu0 0.0
    %246 = vmatpush2.msra.mxu0 0.0
    %247 = vmatprep.subr.mxu0 0.0
    %248 = vmatpush2.msra.mxu0 0.0
    %249 = vmatprep.subr.mxu0 0.0
    %250 = vmatpush2.msra.mxu0 0.0
    %251 = vmatprep.subr.mxu0 0.0
    %252 = vmatpush2.msra.mxu0 0.0
    %253 = vmatprep.subr.mxu0 0.0
    %254 = vmatpush2.msra.mxu0 0.0
    %255 = vmatprep.subr.mxu0 0.0
    %256 = vmatpush2.msra.mxu0 0.0
    %257 = vmatprep.subr.mxu0 0.0
    %258 = vmatpush2.msra.mxu0 0.0
    %259 = vmatprep.subr.mxu0 0.0
    %260 = vmatpush2.msra.mxu0 0.0
    %261 = vmatprep.subr.mxu0 0.0
    %262 = vmatpush2.msra.mxu0 0.0
    %263 = vmatprep.subr.mxu0 0.0
    %264 = vmatpush2.msra.mxu0 0.0
    %265 = vmatprep.subr.mxu0 0.0
    %266 = vmatpush2.msra.mxu0 0.0
    %267 = vmatprep.subr.mxu0 0.0
    %268 = vmatpush2.msra.mxu0 0.0
    %269 = vmatprep.subr.mxu0 0.0
    %270 = vmatpush2.msra.mxu0 0.0
    %271 = vmatprep.mubr.f32.mxu0 0.0
    %272 = vmatmul.mubr.f32.gmra.mxu0 %v205
    %v273 = vpop.f32.mrf.mxu0
    %v274 = vadd.f32 0.0, %v273
    %v275 = vpop.f32.mrf.mxu0
    %276 = vdwg.mxu0
    %s277 = scalar_lea.vmem [#allocation3], %s185
    %v278 = vld [vmem:[%s277] sm:$0x1]
    %s279 = scalar_lea.vmem [#allocation6], %s185
    %v280 = vld [vmem:[%s279] sm:$0x1]
    %v281 = vld [vmem:[#allocation8] sm:$0xff]
    %v282 = vld [vmem:[#allocation8 + $0x8] sm:$0xff]
    %v283 = vld [vmem:[#allocation8 + $0x10] sm:$0xff]
    %v284 = vld [vmem:[#allocation8 + $0x18] sm:$0xff]
    %v285 = vld [vmem:[#allocation9] sm:$0xff]
    %v286 = vld [vmem:[#allocation9 + $0x8] sm:$0xff]
    %v287 = vlaneseq
    %v288 = vshrl.u32 %v287, 7
    %v289 = vadd.s32 %v288, 8
    %v290 = vld [vmem:[#allocation11] sm:$0x1]
    %v291 = vmul.f32 %v274, %v274
    %vm292 = vcmask 254976
    %v293 = vsel %vm292, %v291, 0.0
    %294 = vadd.xlane.f32.xlu0 %v293
    %v295 = vpop.xlane.xlu0 %294
    %v296 = vrcp.pop 32.0
    %v297 = vmul.f32 %v295, %v296
    %v298 = vadd.f32 %v297, 1e-05
    %v299 = vrsqrt.pop %v298
    %v300 = vmul.f32 %v274, %v299
    %v302 = vlaneseq
    %v303 = vshrl.u32 %v302, 7
    %v304 = vsub.s32 0, %v303
    %v305 = vrot.slane %v290, %v304
    %v307 = vmul.f32 %v300, %v305
    %v308 = vld [vmem:[%s9] sm:$0xff]
    %v309 = vld [vmem:[%s9 + $0x8] sm:$0xff]
    %v310 = vld [vmem:[%s9 + $0x10] sm:$0xff]
    %v311 = vld [vmem:[%s9 + $0x18] sm:$0xff]
    %vm312 = vcmask 261120
    %v314 = vsel %vm312, %v307, 0
    %316 = vmatprep.subr.mxu0 0.0
    %317 = vmatpush1.msra.mxu0 0.0
    %318 = vmatprep.subr.mxu0 0.0
    %319 = vmatpush1.msra.mxu0 0.0
    %320 = vmatprep.subr.mxu0 0.0
    %321 = vmatpush1.msra.mxu0 0.0
    %322 = vmatprep.subr.mxu0 0.0
    %323 = vmatpush1.msra.mxu0 0.0
    %324 = vmatprep.subr.mxu0 0.0
    %325 = vmatpush1.msra.mxu0 0.0
    %326 = vmatprep.subr.mxu0 0.0
    %327 = vmatpush1.msra.mxu0 0.0
    %328 = vmatprep.subr.mxu0 0.0
    %329 = vmatpush1.msra.mxu0 0.0
    %330 = vmatprep.subr.mxu0 0.0
    %331 = vmatpush1.msra.mxu0 0.0
    %332 = vmatprep.subr.mxu0 0.0
    %333 = vmatpush1.msra.mxu0 0.0
    %334 = vmatprep.subr.mxu0 0.0
    %335 = vmatpush1.msra.mxu0 0.0
    %336 = vmatprep.subr.mxu0 0.0
    %337 = vmatpush1.msra.mxu0 0.0
    %338 = vmatprep.subr.mxu0 0.0
    %339 = vmatpush1.msra.mxu0 0.0
    %340 = vmatprep.subr.mxu0 0.0
    %341 = vmatpush1.msra.mxu0 %v311
    %342 = vmatprep.subr.mxu0 0.0
    %343 = vmatpush1.msra.mxu0 %v310
    %344 = vmatprep.subr.mxu0 0.0
    %345 = vmatpush1.msra.mxu0 %v309
    %346 = vmatprep.subr.mxu0 0.0
    %347 = vmatpush1.msra.mxu0 %v308
    %348 = vmatprep.subr.mxu0 0.0
    %349 = vmatpush2.msra.mxu0 0.0
    %350 = vmatprep.subr.mxu0 0.0
    %351 = vmatpush2.msra.mxu0 0.0
    %352 = vmatprep.subr.mxu0 0.0
    %353 = vmatpush2.msra.mxu0 0.0
    %354 = vmatprep.subr.mxu0 0.0
    %355 = vmatpush2.msra.mxu0 0.0
    %356 = vmatprep.subr.mxu0 0.0
    %357 = vmatpush2.msra.mxu0 0.0
    %358 = vmatprep.subr.mxu0 0.0
    %359 = vmatpush2.msra.mxu0 0.0
    %360 = vmatprep.subr.mxu0 0.0
    %361 = vmatpush2.msra.mxu0 0.0
    %362 = vmatprep.subr.mxu0 0.0
    %363 = vmatpush2.msra.mxu0 0.0
    %364 = vmatprep.subr.mxu0 0.0
    %365 = vmatpush2.msra.mxu0 0.0
    %366 = vmatprep.subr.mxu0 0.0
    %367 = vmatpush2.msra.mxu0 0.0
    %368 = vmatprep.subr.mxu0 0.0
    %369 = vmatpush2.msra.mxu0 0.0
    %370 = vmatprep.subr.mxu0 0.0
    %371 = vmatpush2.msra.mxu0 0.0
    %372 = vmatprep.subr.mxu0 0.0
    %373 = vmatpush2.msra.mxu0 0.0
    %374 = vmatprep.subr.mxu0 0.0
    %375 = vmatpush2.msra.mxu0 0.0
    %376 = vmatprep.subr.mxu0 0.0
    %377 = vmatpush2.msra.mxu0 0.0
    %378 = vmatprep.subr.mxu0 0.0
    %379 = vmatpush2.msra.mxu0 0.0
    %380 = vmatprep.mubr.f32.mxu0 0.0
    %381 = vmatmul.mubr.f32.gmra.mxu0 %v314
    %v382 = vpop.f32.mrf.mxu0
    %v383 = vadd.f32 0.0, %v382
    %v384 = vpop.f32.mrf.mxu0
    %385 = vdwg.mxu0
    %v386 = vlaneseq
    %v387 = vshrl.u32 %v386, 7
    %v388 = vsub.s32 0, %v387
    %v389 = vrot.slane %v278, %v388
    %v390 = vmul.f32 %v383, %v389
    %v392 = vsel %vm312, %v383, 0
    %394 = vmatprep.subr.mxu0 0.0
    %395 = vmatpush1.msra.mxu0 0.0
    %396 = vmatprep.subr.mxu0 0.0
    %397 = vmatpush1.msra.mxu0 0.0
    %398 = vmatprep.subr.mxu0 0.0
    %399 = vmatpush1.msra.mxu0 0.0
    %400 = vmatprep.subr.mxu0 0.0
    %401 = vmatpush1.msra.mxu0 0.0
    %402 = vmatprep.subr.mxu0 0.0
    %403 = vmatpush1.msra.mxu0 0.0
    %404 = vmatprep.subr.mxu0 0.0
    %405 = vmatpush1.msra.mxu0 0.0
    %406 = vmatprep.subr.mxu0 0.0
    %407 = vmatpush1.msra.mxu0 0.0
    %408 = vmatprep.subr.mxu0 0.0
    %409 = vmatpush1.msra.mxu0 0.0
    %410 = vmatprep.subr.mxu0 0.0
    %411 = vmatpush1.msra.mxu0 0.0
    %412 = vmatprep.subr.mxu0 0.0
    %413 = vmatpush1.msra.mxu0 0.0
    %414 = vmatprep.subr.mxu0 0.0
    %415 = vmatpush1.msra.mxu0 0.0
    %416 = vmatprep.subr.mxu0 0.0
    %417 = vmatpush1.msra.mxu0 0.0
    %418 = vmatprep.subr.mxu0 0.0
    %419 = vmatpush1.msra.mxu0 %v284
    %420 = vmatprep.subr.mxu0 0.0
    %421 = vmatpush1.msra.mxu0 %v283
    %422 = vmatprep.subr.mxu0 0.0
    %423 = vmatpush1.msra.mxu0 %v282
    %424 = vmatprep.subr.mxu0 0.0
    %425 = vmatpush1.msra.mxu0 %v281
    %426 = vmatprep.subr.mxu0 0.0
    %427 = vmatpush2.msra.mxu0 0.0
    %428 = vmatprep.subr.mxu0 0.0
    %429 = vmatpush2.msra.mxu0 0.0
    %430 = vmatprep.subr.mxu0 0.0
    %431 = vmatpush2.msra.mxu0 0.0
    %432 = vmatprep.subr.mxu0 0.0
    %433 = vmatpush2.msra.mxu0 0.0
    %434 = vmatprep.subr.mxu0 0.0
    %435 = vmatpush2.msra.mxu0 0.0
    %436 = vmatprep.subr.mxu0 0.0
    %437 = vmatpush2.msra.mxu0 0.0
    %438 = vmatprep.subr.mxu0 0.0
    %439 = vmatpush2.msra.mxu0 0.0
    %440 = vmatprep.subr.mxu0 0.0
    %441 = vmatpush2.msra.mxu0 0.0
    %442 = vmatprep.subr.mxu0 0.0
    %443 = vmatpush2.msra.mxu0 0.0
    %444 = vmatprep.subr.mxu0 0.0
    %445 = vmatpush2.msra.mxu0 0.0
    %446 = vmatprep.subr.mxu0 0.0
    %447 = vmatpush2.msra.mxu0 0.0
    %448 = vmatprep.subr.mxu0 0.0
    %449 = vmatpush2.msra.mxu0 0.0
    %450 = vmatprep.subr.mxu0 0.0
    %451 = vmatpush2.msra.mxu0 0.0
    %452 = vmatprep.subr.mxu0 0.0
    %453 = vmatpush2.msra.mxu0 0.0
    %454 = vmatprep.subr.mxu0 0.0
    %455 = vmatpush2.msra.mxu0 0.0
    %456 = vmatprep.subr.mxu0 0.0
    %457 = vmatpush2.msra.mxu0 0.0
    %458 = vmatprep.mubr.f32.mxu0 0.0
    %459 = vmatmul.mubr.f32.gmra.mxu0 %v392
    %v460 = vpop.f32.mrf.mxu0
    %v461 = vadd.f32 0.0, %v460
    %v462 = vpop.f32.mrf.mxu0
    %463 = vdwg.mxu0
    %v464 = vlaneseq
    %v465 = vshrl.u32 %v464, 7
    %v466 = vsub.s32 0, %v465
    %v467 = vrot.slane %v280, %v466
    %v468 = vmul.f32 %v461, %v467
    %v469 = vadd.f32 %v390, %v468
    %471 = vrot.lane.b32.xlu0 %v389, 32
    %v472 = vpop.permute.xlu0 %471
    %v474 = vmul.f32 %v383, %v472
    %475 = vrot.lane.b32.xlu0 %v383, 96
    %v476 = vpop.permute.xlu0 %475
    %vm477 = vcmask 130048
    %v478 = vsel %vm477, %v476, 0
    %480 = vmatprep.subr.mxu0 0.0
    %481 = vmatpush1.msra.mxu0 0.0
    %482 = vmatprep.subr.mxu0 0.0
    %483 = vmatpush1.msra.mxu0 0.0
    %484 = vmatprep.subr.mxu0 0.0
    %485 = vmatpush1.msra.mxu0 0.0
    %486 = vmatprep.subr.mxu0 0.0
    %487 = vmatpush1.msra.mxu0 0.0
    %488 = vmatprep.subr.mxu0 0.0
    %489 = vmatpush1.msra.mxu0 0.0
    %490 = vmatprep.subr.mxu0 0.0
    %491 = vmatpush1.msra.mxu0 0.0
    %492 = vmatprep.subr.mxu0 0.0
    %493 = vmatpush1.msra.mxu0 0.0
    %494 = vmatprep.subr.mxu0 0.0
    %495 = vmatpush1.msra.mxu0 0.0
    %496 = vmatprep.subr.mxu0 0.0
    %497 = vmatpush1.msra.mxu0 0.0
    %498 = vmatprep.subr.mxu0 0.0
    %499 = vmatpush1.msra.mxu0 0.0
    %500 = vmatprep.subr.mxu0 0.0
    %501 = vmatpush1.msra.mxu0 0.0
    %502 = vmatprep.subr.mxu0 0.0
    %503 = vmatpush1.msra.mxu0 0.0
    %504 = vmatprep.subr.mxu0 0.0
    %505 = vmatpush1.msra.mxu0 0.0
    %506 = vmatprep.subr.mxu0 0.0
    %507 = vmatpush1.msra.mxu0 0.0
    %508 = vmatprep.subr.mxu0 0.0
    %509 = vmatpush1.msra.mxu0 %v286
    %510 = vmatprep.subr.mxu0 0.0
    %511 = vmatpush1.msra.mxu0 %v285
    %512 = vmatprep.subr.mxu0 0.0
    %513 = vmatpush2.msra.mxu0 0.0
    %514 = vmatprep.subr.mxu0 0.0
    %515 = vmatpush2.msra.mxu0 0.0
    %516 = vmatprep.subr.mxu0 0.0
    %517 = vmatpush2.msra.mxu0 0.0
    %518 = vmatprep.subr.mxu0 0.0
    %519 = vmatpush2.msra.mxu0 0.0
    %520 = vmatprep.subr.mxu0 0.0
    %521 = vmatpush2.msra.mxu0 0.0
    %522 = vmatprep.subr.mxu0 0.0
    %523 = vmatpush2.msra.mxu0 0.0
    %524 = vmatprep.subr.mxu0 0.0
    %525 = vmatpush2.msra.mxu0 0.0
    %526 = vmatprep.subr.mxu0 0.0
    %527 = vmatpush2.msra.mxu0 0.0
    %528 = vmatprep.subr.mxu0 0.0
    %529 = vmatpush2.msra.mxu0 0.0
    %530 = vmatprep.subr.mxu0 0.0
    %531 = vmatpush2.msra.mxu0 0.0
    %532 = vmatprep.subr.mxu0 0.0
    %533 = vmatpush2.msra.mxu0 0.0
    %534 = vmatprep.subr.mxu0 0.0
    %535 = vmatpush2.msra.mxu0 0.0
    %536 = vmatprep.subr.mxu0 0.0
    %537 = vmatpush2.msra.mxu0 0.0
    %538 = vmatprep.subr.mxu0 0.0
    %539 = vmatpush2.msra.mxu0 0.0
    %540 = vmatprep.subr.mxu0 0.0
    %541 = vmatpush2.msra.mxu0 0.0
    %542 = vmatprep.subr.mxu0 0.0
    %543 = vmatpush2.msra.mxu0 0.0
    %544 = vmatprep.mubr.f32.mxu0 0.0
    %545 = vmatmul.mubr.f32.gmra.mxu0 %v478
    %v546 = vpop.f32.mrf.mxu0
    %v547 = vadd.f32 0.0, %v546
    %v548 = vpop.f32.mrf.mxu0
    %549 = vdwg.mxu0
    %v550 = vmul.f32 %v547, %v467
    %552 = vrot.lane.b32.xlu0 %v550, 32
    %v553 = vpop.permute.xlu0 %552
    %v555 = vadd.f32 %v474, %v553
    %v556 = vld [vmem:[%s16] sm:$0xff]
    %v557 = vld [vmem:[%s16 + $0x8] sm:$0xff]
    %v558 = vld [vmem:[%s16 + $0x10] sm:$0xff]
    %v559 = vld [vmem:[%s16 + $0x18] sm:$0xff]
    %v560 = vld [vmem:[#allocation17] sm:$0xff]
    %v561 = vld [vmem:[#allocation17 + $0x8] sm:$0xff]
    %v562 = vld [vmem:[#allocation17 + $0x10] sm:$0xff]
    %v563 = vld [vmem:[#allocation17 + $0x18] sm:$0xff]
    %v564 = vstv %s185
    %vm565 = vcmp.eq.s32.totalorder %v288, %v564
    %vm566 = vcmp.eq.s32.totalorder %v289, %v564
    %v569 = vunpack.c.l.s4 1966171168
    %v570 = vunpack.c.0.s8 %v569
    %v571 = vlaneseq
    %v572 = vshrl.u32 %v571, 7
    %v573 = vsub.s32 %v570, %v572
    %v574 = vrot.slane %v555, %v573
    %v575 = vcombine.high %v574, %v574
    %v577 = vunpack.c.l.s4 1966171168
    %v578 = vunpack.c.0.s8 %v577
    %v579 = vlaneseq
    %v580 = vshrl.u32 %v579, 7
    %v581 = vsub.s32 %v578, %v580
    %v582 = vrot.slane %v574, %v581
    %v584 = vunpack.c.l.s4 1966171168
    %v585 = vunpack.c.0.s8 %v584
    %v586 = vlaneseq
    %v587 = vshrl.u32 %v586, 7
    %v588 = vsub.s32 %v585, %v587
    %v589 = vrot.slane %v575, %v588
    %v590 = vlaneseq
    %v591 = vshrl.u32 %v590, 7
    %v592 = vsub.s32 0, %v591
    %v593 = vrot.slane %v582, %v592
    %v594 = vlaneseq
    %v595 = vshrl.u32 %v594, 7
    %v596 = vsub.s32 0, %v595
    %v597 = vrot.slane %v589, %v596
    %604 = vrot.lane.b32.xlu0 %v556, 32
    %v605 = vpop.permute.xlu0 %604
    %606 = vrot.lane.b32.xlu0 %v557, 32
    %v607 = vpop.permute.xlu0 %606
    %608 = vrot.lane.b32.xlu0 %v558, 32
    %v609 = vpop.permute.xlu0 %608
    %610 = vrot.lane.b32.xlu0 %v559, 32
    %v611 = vpop.permute.xlu0 %610
    %v616 = vsel %vm565, %v593, %v605
    %v617 = vsel %vm566, %v593, %v607
    %v618 = vsel %vm565, %v597, %v609
    %v619 = vsel %vm566, %v597, %v611
    %v621 = vunpack.c.l.s4 1966171168
    %v622 = vunpack.c.0.s8 %v621
    %v623 = vlaneseq
    %v624 = vshrl.u32 %v623, 7
    %v625 = vsub.s32 %v622, %v624
    %v626 = vrot.slane %v383, %v625
    %v627 = vcombine.high %v626, %v626
    %v629 = vunpack.c.l.s4 1966171168
    %v630 = vunpack.c.0.s8 %v629
    %v631 = vlaneseq
    %v632 = vshrl.u32 %v631, 7
    %v633 = vsub.s32 %v630, %v632
    %v634 = vrot.slane %v626, %v633
    %v636 = vunpack.c.l.s4 1966171168
    %v637 = vunpack.c.0.s8 %v636
    %v638 = vlaneseq
    %v639 = vshrl.u32 %v638, 7
    %v640 = vsub.s32 %v637, %v639
    %v641 = vrot.slane %v627, %v640
    %v642 = vlaneseq
    %v643 = vshrl.u32 %v642, 7
    %v644 = vsub.s32 0, %v643
    %v645 = vrot.slane %v634, %v644
    %v646 = vlaneseq
    %v647 = vshrl.u32 %v646, 7
    %v648 = vsub.s32 0, %v647
    %v649 = vrot.slane %v641, %v648
    %656 = vrot.lane.b32.xlu0 %v560, 48
    %v657 = vpop.permute.xlu0 %656
    %658 = vrot.lane.b32.xlu0 %v561, 48
    %v659 = vpop.permute.xlu0 %658
    %660 = vrot.lane.b32.xlu0 %v562, 48
    %v661 = vpop.permute.xlu0 %660
    %662 = vrot.lane.b32.xlu0 %v563, 48
    %v663 = vpop.permute.xlu0 %662
    %v668 = vsel %vm565, %v645, %v657
    %v669 = vsel %vm566, %v645, %v659
    %v670 = vsel %vm565, %v649, %v661
    %v671 = vsel %vm566, %v649, %v663
    %676 = vrot.lane.b32.xlu0 %v616, 96
    %v677 = vpop.permute.xlu0 %676
    %678 = vrot.lane.b32.xlu0 %v617, 96
    %v679 = vpop.permute.xlu0 %678
    %680 = vrot.lane.b32.xlu0 %v618, 96
    %v681 = vpop.permute.xlu0 %680
    %682 = vrot.lane.b32.xlu0 %v619, 96
    %v683 = vpop.permute.xlu0 %682
    %688 = vst.msk [vmem:[#allocation19] sm:$0xff] %vm477, %v677
    %689 = vst.msk [vmem:[#allocation19 + $0x8] sm:$0xff] %vm477, %v679
    %690 = vst.msk [vmem:[#allocation19 + $0x10] sm:$0xff] %vm477, %v681
    %691 = vst.msk [vmem:[#allocation19 + $0x18] sm:$0xff] %vm477, %v683
    %696 = vrot.lane.b32.xlu0 %v668, 80
    %v697 = vpop.permute.xlu0 %696
    %698 = vrot.lane.b32.xlu0 %v669, 80
    %v699 = vpop.permute.xlu0 %698
    %700 = vrot.lane.b32.xlu0 %v670, 80
    %v701 = vpop.permute.xlu0 %700
    %702 = vrot.lane.b32.xlu0 %v671, 80
    %v703 = vpop.permute.xlu0 %702
    %708 = vst.msk [vmem:[#allocation21] sm:$0xff] %vm477, %v697
    %709 = vst.msk [vmem:[#allocation21 + $0x8] sm:$0xff] %vm477, %v699
    %710 = vst.msk [vmem:[#allocation21 + $0x10] sm:$0xff] %vm477, %v701
    %711 = vst.msk [vmem:[#allocation21 + $0x18] sm:$0xff] %vm477, %v703
    %vm712 = vcmask 64512
    %v714 = vsel %vm712, %v469, 0
    %v716 = vsel %vm712, %v677, 0
    %v718 = vsel %vm712, %v679, 0
    %720 = vmatprep.subr.mxu0 0.0
    %721 = vmatpush1.xpose.msra.mxu0 0.0
    %722 = vmatprep.subr.mxu0 0.0
    %723 = vmatpush1.xpose.msra.mxu0 0.0
    %724 = vmatprep.subr.mxu0 0.0
    %725 = vmatpush1.xpose.msra.mxu0 0.0
    %726 = vmatprep.subr.mxu0 0.0
    %727 = vmatpush1.xpose.msra.mxu0 0.0
    %728 = vmatprep.subr.mxu0 0.0
    %729 = vmatpush1.xpose.msra.mxu0 0.0
    %730 = vmatprep.subr.mxu0 0.0
    %731 = vmatpush1.xpose.msra.mxu0 0.0
    %732 = vmatprep.subr.mxu0 0.0
    %733 = vmatpush1.xpose.msra.mxu0 0.0
    %734 = vmatprep.subr.mxu0 0.0
    %735 = vmatpush1.xpose.msra.mxu0 0.0
    %736 = vmatprep.subr.mxu0 0.0
    %737 = vmatpush1.xpose.msra.mxu0 0.0
    %738 = vmatprep.subr.mxu0 0.0
    %739 = vmatpush1.xpose.msra.mxu0 0.0
    %740 = vmatprep.subr.mxu0 0.0
    %741 = vmatpush1.xpose.msra.mxu0 0.0
    %742 = vmatprep.subr.mxu0 0.0
    %743 = vmatpush1.xpose.msra.mxu0 0.0
    %744 = vmatprep.subr.mxu0 0.0
    %745 = vmatpush1.xpose.msra.mxu0 0.0
    %746 = vmatprep.subr.mxu0 0.0
    %747 = vmatpush1.xpose.msra.mxu0 0.0
    %748 = vmatprep.subr.mxu0 0.0
    %749 = vmatpush1.xpose.msra.mxu0 %v718
    %750 = vmatprep.subr.mxu0 0.0
    %751 = vmatpush1.xpose.msra.mxu0 %v716
    %752 = vmatprep.subr.mxu0 0.0
    %753 = vmatpush2.xpose.msra.mxu0 0.0
    %754 = vmatprep.subr.mxu0 0.0
    %755 = vmatpush2.xpose.msra.mxu0 0.0
    %756 = vmatprep.subr.mxu0 0.0
    %757 = vmatpush2.xpose.msra.mxu0 0.0
    %758 = vmatprep.subr.mxu0 0.0
    %759 = vmatpush2.xpose.msra.mxu0 0.0
    %760 = vmatprep.subr.mxu0 0.0
    %761 = vmatpush2.xpose.msra.mxu0 0.0
    %762 = vmatprep.subr.mxu0 0.0
    %763 = vmatpush2.xpose.msra.mxu0 0.0
    %764 = vmatprep.subr.mxu0 0.0
    %765 = vmatpush2.xpose.msra.mxu0 0.0
    %766 = vmatprep.subr.mxu0 0.0
    %767 = vmatpush2.xpose.msra.mxu0 0.0
    %768 = vmatprep.subr.mxu0 0.0
    %769 = vmatpush2.xpose.msra.mxu0 0.0
    %770 = vmatprep.subr.mxu0 0.0
    %771 = vmatpush2.xpose.msra.mxu0 0.0
    %772 = vmatprep.subr.mxu0 0.0
    %773 = vmatpush2.xpose.msra.mxu0 0.0
    %774 = vmatprep.subr.mxu0 0.0
    %775 = vmatpush2.xpose.msra.mxu0 0.0
    %776 = vmatprep.subr.mxu0 0.0
    %777 = vmatpush2.xpose.msra.mxu0 0.0
    %778 = vmatprep.subr.mxu0 0.0
    %779 = vmatpush2.xpose.msra.mxu0 0.0
    %780 = vmatprep.subr.mxu0 0.0
    %781 = vmatpush2.xpose.msra.mxu0 0.0
    %782 = vmatprep.subr.mxu0 0.0
    %783 = vmatpush2.xpose.msra.mxu0 0.0
    %784 = vmatprep.mubr.f32.mxu0 0.0
    %785 = vmatmul.mubr.f32.gmra.mxu0 %v714
    %v786 = vpop.f32.mrf.mxu0
    %v787 = vadd.f32 0.0, %v786
    %v788 = vpop.f32.mrf.mxu0
    %789 = vdwg.mxu0
    %v790 = vmul.f32 %v787, 0.35355338
    %vm791 = vcmp.le.s32.totalorder %v188, %v564
    %v792 = vsel %vm791, %v790, -1e+30
    %vm793 = vcmask 122880
    %v794 = vsel %vm793, %v792, -inf
    %795 = vmax.xlane.f32.xlu0 %v794
    %v796 = vpop.xlane.xlu0 %795
    %v797 = vsub.f32 %v792, %v796
    %v798 = vmul.f32 %v797, 1.442695
    %v799 = vpow.pop %v798
    %v800 = vsel %vm793, %v799, 0.0
    %801 = vadd.xlane.f32.xlu0 %v800
    %v802 = vpop.xlane.xlu0 %801
    %v803 = vrcp.pop %v802
    %v804 = vmul.f32 %v799, %v803
    %v806 = vsel %vm477, %v804, 0
    %808 = vmatprep.subr.mxu0 0.0
    %809 = vmatpush1.msra.mxu0 0.0
    %810 = vmatprep.subr.mxu0 0.0
    %811 = vmatpush1.msra.mxu0 0.0
    %812 = vmatprep.subr.mxu0 0.0
    %813 = vmatpush1.msra.mxu0 0.0
    %814 = vmatprep.subr.mxu0 0.0
    %815 = vmatpush1.msra.mxu0 0.0
    %816 = vmatprep.subr.mxu0 0.0
    %817 = vmatpush1.msra.mxu0 0.0
    %818 = vmatprep.subr.mxu0 0.0
    %819 = vmatpush1.msra.mxu0 0.0
    %820 = vmatprep.subr.mxu0 0.0
    %821 = vmatpush1.msra.mxu0 0.0
    %822 = vmatprep.subr.mxu0 0.0
    %823 = vmatpush1.msra.mxu0 0.0
    %824 = vmatprep.subr.mxu0 0.0
    %825 = vmatpush1.msra.mxu0 0.0
    %826 = vmatprep.subr.mxu0 0.0
    %827 = vmatpush1.msra.mxu0 0.0
    %828 = vmatprep.subr.mxu0 0.0
    %829 = vmatpush1.msra.mxu0 0.0
    %830 = vmatprep.subr.mxu0 0.0
    %831 = vmatpush1.msra.mxu0 0.0
    %832 = vmatprep.subr.mxu0 0.0
    %833 = vmatpush1.msra.mxu0 0.0
    %834 = vmatprep.subr.mxu0 0.0
    %835 = vmatpush1.msra.mxu0 0.0
    %836 = vmatprep.subr.mxu0 0.0
    %837 = vmatpush1.msra.mxu0 %v699
    %838 = vmatprep.subr.mxu0 0.0
    %839 = vmatpush1.msra.mxu0 %v697
    %840 = vmatprep.subr.mxu0 0.0
    %841 = vmatpush2.msra.mxu0 0.0
    %842 = vmatprep.subr.mxu0 0.0
    %843 = vmatpush2.msra.mxu0 0.0
    %844 = vmatprep.subr.mxu0 0.0
    %845 = vmatpush2.msra.mxu0 0.0
    %846 = vmatprep.subr.mxu0 0.0
    %847 = vmatpush2.msra.mxu0 0.0
    %848 = vmatprep.subr.mxu0 0.0
    %849 = vmatpush2.msra.mxu0 0.0
    %850 = vmatprep.subr.mxu0 0.0
    %851 = vmatpush2.msra.mxu0 0.0
    %852 = vmatprep.subr.mxu0 0.0
    %853 = vmatpush2.msra.mxu0 0.0
    %854 = vmatprep.subr.mxu0 0.0
    %855 = vmatpush2.msra.mxu0 0.0
    %856 = vmatprep.subr.mxu0 0.0
    %857 = vmatpush2.msra.mxu0 0.0
    %858 = vmatprep.subr.mxu0 0.0
    %859 = vmatpush2.msra.mxu0 0.0
    %860 = vmatprep.subr.mxu0 0.0
    %861 = vmatpush2.msra.mxu0 0.0
    %862 = vmatprep.subr.mxu0 0.0
    %863 = vmatpush2.msra.mxu0 0.0
    %864 = vmatprep.subr.mxu0 0.0
    %865 = vmatpush2.msra.mxu0 0.0
    %866 = vmatprep.subr.mxu0 0.0
    %867 = vmatpush2.msra.mxu0 0.0
    %868 = vmatprep.subr.mxu0 0.0
    %869 = vmatpush2.msra.mxu0 0.0
    %870 = vmatprep.subr.mxu0 0.0
    %871 = vmatpush2.msra.mxu0 0.0
    %872 = vmatprep.mubr.f32.mxu0 0.0
    %873 = vmatmul.mubr.f32.gmra.mxu0 %v806
    %v874 = vpop.f32.mrf.mxu0
    %v875 = vadd.f32 0.0, %v874
    %v876 = vpop.f32.mrf.mxu0
    %877 = vdwg.mxu0
    %878 = vrot.lane.b32.xlu0 %v469, 120
    %v879 = vpop.permute.xlu0 %878
    %v880 = vsel %vm712, %v879, 0
    %882 = vmatprep.subr.mxu0 0.0
    %883 = vmatpush1.xpose.msra.mxu0 0.0
    %884 = vmatprep.subr.mxu0 0.0
    %885 = vmatpush1.xpose.msra.mxu0 0.0
    %886 = vmatprep.subr.mxu0 0.0
    %887 = vmatpush1.xpose.msra.mxu0 0.0
    %888 = vmatprep.subr.mxu0 0.0
    %889 = vmatpush1.xpose.msra.mxu0 0.0
    %890 = vmatprep.subr.mxu0 0.0
    %891 = vmatpush1.xpose.msra.mxu0 0.0
    %892 = vmatprep.subr.mxu0 0.0
    %893 = vmatpush1.xpose.msra.mxu0 0.0
    %894 = vmatprep.subr.mxu0 0.0
    %895 = vmatpush1.xpose.msra.mxu0 0.0
    %896 = vmatprep.subr.mxu0 0.0
    %897 = vmatpush1.xpose.msra.mxu0 0.0
    %898 = vmatprep.subr.mxu0 0.0
    %899 = vmatpush1.xpose.msra.mxu0 0.0
    %900 = vmatprep.subr.mxu0 0.0
    %901 = vmatpush1.xpose.msra.mxu0 0.0
    %902 = vmatprep.subr.mxu0 0.0
    %903 = vmatpush1.xpose.msra.mxu0 0.0
    %904 = vmatprep.subr.mxu0 0.0
    %905 = vmatpush1.xpose.msra.mxu0 0.0
    %906 = vmatprep.subr.mxu0 0.0
    %907 = vmatpush1.xpose.msra.mxu0 0.0
    %908 = vmatprep.subr.mxu0 0.0
    %909 = vmatpush1.xpose.msra.mxu0 0.0
    %910 = vmatprep.subr.mxu0 0.0
    %911 = vmatpush1.xpose.msra.mxu0 %v718
    %912 = vmatprep.subr.mxu0 0.0
    %913 = vmatpush1.xpose.msra.mxu0 %v716
    %914 = vmatprep.subr.mxu0 0.0
    %915 = vmatpush2.xpose.msra.mxu0 0.0
    %916 = vmatprep.subr.mxu0 0.0
    %917 = vmatpush2.xpose.msra.mxu0 0.0
    %918 = vmatprep.subr.mxu0 0.0
    %919 = vmatpush2.xpose.msra.mxu0 0.0
    %920 = vmatprep.subr.mxu0 0.0
    %921 = vmatpush2.xpose.msra.mxu0 0.0
    %922 = vmatprep.subr.mxu0 0.0
    %923 = vmatpush2.xpose.msra.mxu0 0.0
    %924 = vmatprep.subr.mxu0 0.0
    %925 = vmatpush2.xpose.msra.mxu0 0.0
    %926 = vmatprep.subr.mxu0 0.0
    %927 = vmatpush2.xpose.msra.mxu0 0.0
    %928 = vmatprep.subr.mxu0 0.0
    %929 = vmatpush2.xpose.msra.mxu0 0.0
    %930 = vmatprep.subr.mxu0 0.0
    %931 = vmatpush2.xpose.msra.mxu0 0.0
    %932 = vmatprep.subr.mxu0 0.0
    %933 = vmatpush2.xpose.msra.mxu0 0.0
    %934 = vmatprep.subr.mxu0 0.0
    %935 = vmatpush2.xpose.msra.mxu0 0.0
    %936 = vmatprep.subr.mxu0 0.0
    %937 = vmatpush2.xpose.msra.mxu0 0.0
    %938 = vmatprep.subr.mxu0 0.0
    %939 = vmatpush2.xpose.msra.mxu0 0.0
    %940 = vmatprep.subr.mxu0 0.0
    %941 = vmatpush2.xpose.msra.mxu0 0.0
    %942 = vmatprep.subr.mxu0 0.0
    %943 = vmatpush2.xpose.msra.mxu0 0.0
    %944 = vmatprep.subr.mxu0 0.0
    %945 = vmatpush2.xpose.msra.mxu0 0.0
    %946 = vmatprep.mubr.f32.mxu0 0.0
    %947 = vmatmul.mubr.f32.gmra.mxu0 %v880
    %v948 = vpop.f32.mrf.mxu0
    %v949 = vadd.f32 0.0, %v948
    %v950 = vpop.f32.mrf.mxu0
    %951 = vdwg.mxu0
    %v952 = vmul.f32 %v949, 0.35355338
    %v953 = vsel %vm791, %v952, -1e+30
    %v954 = vsel %vm793, %v953, -inf
    %955 = vmax.xlane.f32.xlu0 %v954
    %v956 = vpop.xlane.xlu0 %955
    %v957 = vsub.f32 %v953, %v956
    %v958 = vmul.f32 %v957, 1.442695
    %v959 = vpow.pop %v958
    %v960 = vsel %vm793, %v959, 0.0
    %961 = vadd.xlane.f32.xlu0 %v960
    %v962 = vpop.xlane.xlu0 %961
    %v963 = vrcp.pop %v962
    %v964 = vmul.f32 %v959, %v963
    %v966 = vsel %vm477, %v964, 0
    %968 = vmatprep.subr.mxu0 0.0
    %969 = vmatpush1.msra.mxu0 0.0
    %970 = vmatprep.subr.mxu0 0.0
    %971 = vmatpush1.msra.mxu0 0.0
    %972 = vmatprep.subr.mxu0 0.0
    %973 = vmatpush1.msra.mxu0 0.0
    %974 = vmatprep.subr.mxu0 0.0
    %975 = vmatpush1.msra.mxu0 0.0
    %976 = vmatprep.subr.mxu0 0.0
    %977 = vmatpush1.msra.mxu0 0.0
    %978 = vmatprep.subr.mxu0 0.0
    %979 = vmatpush1.msra.mxu0 0.0
    %980 = vmatprep.subr.mxu0 0.0
    %981 = vmatpush1.msra.mxu0 0.0
    %982 = vmatprep.subr.mxu0 0.0
    %983 = vmatpush1.msra.mxu0 0.0
    %984 = vmatprep.subr.mxu0 0.0
    %985 = vmatpush1.msra.mxu0 0.0
    %986 = vmatprep.subr.mxu0 0.0
    %987 = vmatpush1.msra.mxu0 0.0
    %988 = vmatprep.subr.mxu0 0.0
    %989 = vmatpush1.msra.mxu0 0.0
    %990 = vmatprep.subr.mxu0 0.0
    %991 = vmatpush1.msra.mxu0 0.0
    %992 = vmatprep.subr.mxu0 0.0
    %993 = vmatpush1.msra.mxu0 0.0
    %994 = vmatprep.subr.mxu0 0.0
    %995 = vmatpush1.msra.mxu0 0.0
    %996 = vmatprep.subr.mxu0 0.0
    %997 = vmatpush1.msra.mxu0 %v699
    %998 = vmatprep.subr.mxu0 0.0
    %999 = vmatpush1.msra.mxu0 %v697
    %1000 = vmatprep.subr.mxu0 0.0
    %1001 = vmatpush2.msra.mxu0 0.0
    %1002 = vmatprep.subr.mxu0 0.0
    %1003 = vmatpush2.msra.mxu0 0.0
    %1004 = vmatprep.subr.mxu0 0.0
    %1005 = vmatpush2.msra.mxu0 0.0
    %1006 = vmatprep.subr.mxu0 0.0
    %1007 = vmatpush2.msra.mxu0 0.0
    %1008 = vmatprep.subr.mxu0 0.0
    %1009 = vmatpush2.msra.mxu0 0.0
    %1010 = vmatprep.subr.mxu0 0.0
    %1011 = vmatpush2.msra.mxu0 0.0
    %1012 = vmatprep.subr.mxu0 0.0
    %1013 = vmatpush2.msra.mxu0 0.0
    %1014 = vmatprep.subr.mxu0 0.0
    %1015 = vmatpush2.msra.mxu0 0.0
    %1016 = vmatprep.subr.mxu0 0.0
    %1017 = vmatpush2.msra.mxu0 0.0
    %1018 = vmatprep.subr.mxu0 0.0
    %1019 = vmatpush2.msra.mxu0 0.0
    %1020 = vmatprep.subr.mxu0 0.0
    %1021 = vmatpush2.msra.mxu0 0.0
    %1022 = vmatprep.subr.mxu0 0.0
    %1023 = vmatpush2.msra.mxu0 0.0
    %1024 = vmatprep.subr.mxu0 0.0
    %1025 = vmatpush2.msra.mxu0 0.0
    %1026 = vmatprep.subr.mxu0 0.0
    %1027 = vmatpush2.msra.mxu0 0.0
    %1028 = vmatprep.subr.mxu0 0.0
    %1029 = vmatpush2.msra.mxu0 0.0
    %1030 = vmatprep.subr.mxu0 0.0
    %1031 = vmatpush2.msra.mxu0 0.0
    %1032 = vmatprep.mubr.f32.mxu0 0.0
    %1033 = vmatmul.mubr.f32.gmra.mxu0 %v966
    %v1034 = vpop.f32.mrf.mxu0
    %v1035 = vadd.f32 0.0, %v1034
    %v1036 = vpop.f32.mrf.mxu0
    %1037 = vdwg.mxu0
    %1038 = vrot.lane.b32.xlu0 %v469, 112
    %v1039 = vpop.permute.xlu0 %1038
    %1040 = vrot.lane.b32.xlu0 %v616, 88
    %v1041 = vpop.permute.xlu0 %1040
    %1042 = vrot.lane.b32.xlu0 %v617, 88
    %v1043 = vpop.permute.xlu0 %1042
    %v1044 = vsel %vm712, %v1039, 0
    %v1046 = vsel %vm712, %v1041, 0
    %v1048 = vsel %vm712, %v1043, 0
    %1050 = vmatprep.subr.mxu0 0.0
    %1051 = vmatpush1.xpose.msra.mxu0 0.0
    %1052 = vmatprep.subr.mxu0 0.0
    %1053 = vmatpush1.xpose.msra.mxu0 0.0
    %1054 = vmatprep.subr.mxu0 0.0
    %1055 = vmatpush1.xpose.msra.mxu0 0.0
    %1056 = vmatprep.subr.mxu0 0.0
    %1057 = vmatpush1.xpose.msra.mxu0 0.0
    %1058 = vmatprep.subr.mxu0 0.0
    %1059 = vmatpush1.xpose.msra.mxu0 0.0
    %1060 = vmatprep.subr.mxu0 0.0
    %1061 = vmatpush1.xpose.msra.mxu0 0.0
    %1062 = vmatprep.subr.mxu0 0.0
    %1063 = vmatpush1.xpose.msra.mxu0 0.0
    %1064 = vmatprep.subr.mxu0 0.0
    %1065 = vmatpush1.xpose.msra.mxu0 0.0
    %1066 = vmatprep.subr.mxu0 0.0
    %1067 = vmatpush1.xpose.msra.mxu0 0.0
    %1068 = vmatprep.subr.mxu0 0.0
    %1069 = vmatpush1.xpose.msra.mxu0 0.0
    %1070 = vmatprep.subr.mxu0 0.0
    %1071 = vmatpush1.xpose.msra.mxu0 0.0
    %1072 = vmatprep.subr.mxu0 0.0
    %1073 = vmatpush1.xpose.msra.mxu0 0.0
    %1074 = vmatprep.subr.mxu0 0.0
    %1075 = vmatpush1.xpose.msra.mxu0 0.0
    %1076 = vmatprep.subr.mxu0 0.0
    %1077 = vmatpush1.xpose.msra.mxu0 0.0
    %1078 = vmatprep.subr.mxu0 0.0
    %1079 = vmatpush1.xpose.msra.mxu0 %v1048
    %1080 = vmatprep.subr.mxu0 0.0
    %1081 = vmatpush1.xpose.msra.mxu0 %v1046
    %1082 = vmatprep.subr.mxu0 0.0
    %1083 = vmatpush2.xpose.msra.mxu0 0.0
    %1084 = vmatprep.subr.mxu0 0.0
    %1085 = vmatpush2.xpose.msra.mxu0 0.0
    %1086 = vmatprep.subr.mxu0 0.0
    %1087 = vmatpush2.xpose.msra.mxu0 0.0
    %1088 = vmatprep.subr.mxu0 0.0
    %1089 = vmatpush2.xpose.msra.mxu0 0.0
    %1090 = vmatprep.subr.mxu0 0.0
    %1091 = vmatpush2.xpose.msra.mxu0 0.0
    %1092 = vmatprep.subr.mxu0 0.0
    %1093 = vmatpush2.xpose.msra.mxu0 0.0
    %1094 = vmatprep.subr.mxu0 0.0
    %1095 = vmatpush2.xpose.msra.mxu0 0.0
    %1096 = vmatprep.subr.mxu0 0.0
    %1097 = vmatpush2.xpose.msra.mxu0 0.0
    %1098 = vmatprep.subr.mxu0 0.0
    %1099 = vmatpush2.xpose.msra.mxu0 0.0
    %1100 = vmatprep.subr.mxu0 0.0
    %1101 = vmatpush2.xpose.msra.mxu0 0.0
    %1102 = vmatprep.subr.mxu0 0.0
    %1103 = vmatpush2.xpose.msra.mxu0 0.0
    %1104 = vmatprep.subr.mxu0 0.0
    %1105 = vmatpush2.xpose.msra.mxu0 0.0
    %1106 = vmatprep.subr.mxu0 0.0
    %1107 = vmatpush2.xpose.msra.mxu0 0.0
    %1108 = vmatprep.subr.mxu0 0.0
    %1109 = vmatpush2.xpose.msra.mxu0 0.0
    %1110 = vmatprep.subr.mxu0 0.0
    %1111 = vmatpush2.xpose.msra.mxu0 0.0
    %1112 = vmatprep.subr.mxu0 0.0
    %1113 = vmatpush2.xpose.msra.mxu0 0.0
    %1114 = vmatprep.mubr.f32.mxu0 0.0
    %1115 = vmatmul.mubr.f32.gmra.mxu0 %v1044
    %v1116 = vpop.f32.mrf.mxu0
    %v1117 = vadd.f32 0.0, %v1116
    %v1118 = vpop.f32.mrf.mxu0
    %1119 = vdwg.mxu0
    %v1120 = vmul.f32 %v1117, 0.35355338
    %v1121 = vsel %vm791, %v1120, -1e+30
    %v1122 = vsel %vm793, %v1121, -inf
    %1123 = vmax.xlane.f32.xlu0 %v1122
    %v1124 = vpop.xlane.xlu0 %1123
    %v1125 = vsub.f32 %v1121, %v1124
    %v1126 = vmul.f32 %v1125, 1.442695
    %v1127 = vpow.pop %v1126
    %v1128 = vsel %vm793, %v1127, 0.0
    %1129 = vadd.xlane.f32.xlu0 %v1128
    %v1130 = vpop.xlane.xlu0 %1129
    %v1131 = vrcp.pop %v1130
    %v1132 = vmul.f32 %v1127, %v1131
    %1133 = vrot.lane.b32.xlu0 %v668, 72
    %v1134 = vpop.permute.xlu0 %1133
    %1135 = vrot.lane.b32.xlu0 %v669, 72
    %v1136 = vpop.permute.xlu0 %1135
    %v1140 = vsel %vm477, %v1132, 0
    %1142 = vmatprep.subr.mxu0 0.0
    %1143 = vmatpush1.msra.mxu0 0.0
    %1144 = vmatprep.subr.mxu0 0.0
    %1145 = vmatpush1.msra.mxu0 0.0
    %1146 = vmatprep.subr.mxu0 0.0
    %1147 = vmatpush1.msra.mxu0 0.0
    %1148 = vmatprep.subr.mxu0 0.0
    %1149 = vmatpush1.msra.mxu0 0.0
    %1150 = vmatprep.subr.mxu0 0.0
    %1151 = vmatpush1.msra.mxu0 0.0
    %1152 = vmatprep.subr.mxu0 0.0
    %1153 = vmatpush1.msra.mxu0 0.0
    %1154 = vmatprep.subr.mxu0 0.0
    %1155 = vmatpush1.msra.mxu0 0.0
    %1156 = vmatprep.subr.mxu0 0.0
    %1157 = vmatpush1.msra.mxu0 0.0
    %1158 = vmatprep.subr.mxu0 0.0
    %1159 = vmatpush1.msra.mxu0 0.0
    %1160 = vmatprep.subr.mxu0 0.0
    %1161 = vmatpush1.msra.mxu0 0.0
    %1162 = vmatprep.subr.mxu0 0.0
    %1163 = vmatpush1.msra.mxu0 0.0
    %1164 = vmatprep.subr.mxu0 0.0
    %1165 = vmatpush1.msra.mxu0 0.0
    %1166 = vmatprep.subr.mxu0 0.0
    %1167 = vmatpush1.msra.mxu0 0.0
    %1168 = vmatprep.subr.mxu0 0.0
    %1169 = vmatpush1.msra.mxu0 0.0
    %1170 = vmatprep.subr.mxu0 0.0
    %1171 = vmatpush1.msra.mxu0 %v1136
    %1172 = vmatprep.subr.mxu0 0.0
    %1173 = vmatpush1.msra.mxu0 %v1134
    %1174 = vmatprep.subr.mxu0 0.0
    %1175 = vmatpush2.msra.mxu0 0.0
    %1176 = vmatprep.subr.mxu0 0.0
    %1177 = vmatpush2.msra.mxu0 0.0
    %1178 = vmatprep.subr.mxu0 0.0
    %1179 = vmatpush2.msra.mxu0 0.0
    %1180 = vmatprep.subr.mxu0 0.0
    %1181 = vmatpush2.msra.mxu0 0.0
    %1182 = vmatprep.subr.mxu0 0.0
    %1183 = vmatpush2.msra.mxu0 0.0
    %1184 = vmatprep.subr.mxu0 0.0
    %1185 = vmatpush2.msra.mxu0 0.0
    %1186 = vmatprep.subr.mxu0 0.0
    %1187 = vmatpush2.msra.mxu0 0.0
    %1188 = vmatprep.subr.mxu0 0.0
    %1189 = vmatpush2.msra.mxu0 0.0
    %1190 = vmatprep.subr.mxu0 0.0
    %1191 = vmatpush2.msra.mxu0 0.0
    %1192 = vmatprep.subr.mxu0 0.0
    %1193 = vmatpush2.msra.mxu0 0.0
    %1194 = vmatprep.subr.mxu0 0.0
    %1195 = vmatpush2.msra.mxu0 0.0
    %1196 = vmatprep.subr.mxu0 0.0
    %1197 = vmatpush2.msra.mxu0 0.0
    %1198 = vmatprep.subr.mxu0 0.0
    %1199 = vmatpush2.msra.mxu0 0.0
    %1200 = vmatprep.subr.mxu0 0.0
    %1201 = vmatpush2.msra.mxu0 0.0
    %1202 = vmatprep.subr.mxu0 0.0
    %1203 = vmatpush2.msra.mxu0 0.0
    %1204 = vmatprep.subr.mxu0 0.0
    %1205 = vmatpush2.msra.mxu0 0.0
    %1206 = vmatprep.mubr.f32.mxu0 0.0
    %1207 = vmatmul.mubr.f32.gmra.mxu0 %v1140
    %v1208 = vpop.f32.mrf.mxu0
    %v1209 = vadd.f32 0.0, %v1208
    %v1210 = vpop.f32.mrf.mxu0
    %1211 = vdwg.mxu0
    %1212 = vrot.lane.b32.xlu0 %v469, 104
    %v1213 = vpop.permute.xlu0 %1212
    %v1214 = vsel %vm712, %v1213, 0
    %1216 = vmatprep.subr.mxu0 0.0
    %1217 = vmatpush1.xpose.msra.mxu0 0.0
    %1218 = vmatprep.subr.mxu0 0.0
    %1219 = vmatpush1.xpose.msra.mxu0 0.0
    %1220 = vmatprep.subr.mxu0 0.0
    %1221 = vmatpush1.xpose.msra.mxu0 0.0
    %1222 = vmatprep.subr.mxu0 0.0
    %1223 = vmatpush1.xpose.msra.mxu0 0.0
    %1224 = vmatprep.subr.mxu0 0.0
    %1225 = vmatpush1.xpose.msra.mxu0 0.0
    %1226 = vmatprep.subr.mxu0 0.0
    %1227 = vmatpush1.xpose.msra.mxu0 0.0
    %1228 = vmatprep.subr.mxu0 0.0
    %1229 = vmatpush1.xpose.msra.mxu0 0.0
    %1230 = vmatprep.subr.mxu0 0.0
    %1231 = vmatpush1.xpose.msra.mxu0 0.0
    %1232 = vmatprep.subr.mxu0 0.0
    %1233 = vmatpush1.xpose.msra.mxu0 0.0
    %1234 = vmatprep.subr.mxu0 0.0
    %1235 = vmatpush1.xpose.msra.mxu0 0.0
    %1236 = vmatprep.subr.mxu0 0.0
    %1237 = vmatpush1.xpose.msra.mxu0 0.0
    %1238 = vmatprep.subr.mxu0 0.0
    %1239 = vmatpush1.xpose.msra.mxu0 0.0
    %1240 = vmatprep.subr.mxu0 0.0
    %1241 = vmatpush1.xpose.msra.mxu0 0.0
    %1242 = vmatprep.subr.mxu0 0.0
    %1243 = vmatpush1.xpose.msra.mxu0 0.0
    %1244 = vmatprep.subr.mxu0 0.0
    %1245 = vmatpush1.xpose.msra.mxu0 %v1048
    %1246 = vmatprep.subr.mxu0 0.0
    %1247 = vmatpush1.xpose.msra.mxu0 %v1046
    %1248 = vmatprep.subr.mxu0 0.0
    %1249 = vmatpush2.xpose.msra.mxu0 0.0
    %1250 = vmatprep.subr.mxu0 0.0
    %1251 = vmatpush2.xpose.msra.mxu0 0.0
    %1252 = vmatprep.subr.mxu0 0.0
    %1253 = vmatpush2.xpose.msra.mxu0 0.0
    %1254 = vmatprep.subr.mxu0 0.0
    %1255 = vmatpush2.xpose.msra.mxu0 0.0
    %1256 = vmatprep.subr.mxu0 0.0
    %1257 = vmatpush2.xpose.msra.mxu0 0.0
    %1258 = vmatprep.subr.mxu0 0.0
    %1259 = vmatpush2.xpose.msra.mxu0 0.0
    %1260 = vmatprep.subr.mxu0 0.0
    %1261 = vmatpush2.xpose.msra.mxu0 0.0
    %1262 = vmatprep.subr.mxu0 0.0
    %1263 = vmatpush2.xpose.msra.mxu0 0.0
    %1264 = vmatprep.subr.mxu0 0.0
    %1265 = vmatpush2.xpose.msra.mxu0 0.0
    %1266 = vmatprep.subr.mxu0 0.0
    %1267 = vmatpush2.xpose.msra.mxu0 0.0
    %1268 = vmatprep.subr.mxu0 0.0
    %1269 = vmatpush2.xpose.msra.mxu0 0.0
    %1270 = vmatprep.subr.mxu0 0.0
    %1271 = vmatpush2.xpose.msra.mxu0 0.0
    %1272 = vmatprep.subr.mxu0 0.0
    %1273 = vmatpush2.xpose.msra.mxu0 0.0
    %1274 = vmatprep.subr.mxu0 0.0
    %1275 = vmatpush2.xpose.msra.mxu0 0.0
    %1276 = vmatprep.subr.mxu0 0.0
    %1277 = vmatpush2.xpose.msra.mxu0 0.0
    %1278 = vmatprep.subr.mxu0 0.0
    %1279 = vmatpush2.xpose.msra.mxu0 0.0
    %1280 = vmatprep.mubr.f32.mxu0 0.0
    %1281 = vmatmul.mubr.f32.gmra.mxu0 %v1214
    %v1282 = vpop.f32.mrf.mxu0
    %v1283 = vadd.f32 0.0, %v1282
    %v1284 = vpop.f32.mrf.mxu0
    %1285 = vdwg.mxu0
    %v1286 = vmul.f32 %v1283, 0.35355338
    %v1287 = vsel %vm791, %v1286, -1e+30
    %v1288 = vsel %vm793, %v1287, -inf
    %1289 = vmax.xlane.f32.xlu0 %v1288
    %v1290 = vpop.xlane.xlu0 %1289
    %v1291 = vsub.f32 %v1287, %v1290
    %v1292 = vmul.f32 %v1291, 1.442695
    %v1293 = vpow.pop %v1292
    %v1294 = vsel %vm793, %v1293, 0.0
    %1295 = vadd.xlane.f32.xlu0 %v1294
    %v1296 = vpop.xlane.xlu0 %1295
    %v1297 = vrcp.pop %v1296
    %v1298 = vmul.f32 %v1293, %v1297
    %v1300 = vsel %vm477, %v1298, 0
    %1302 = vmatprep.subr.mxu0 0.0
    %1303 = vmatpush1.msra.mxu0 0.0
    %1304 = vmatprep.subr.mxu0 0.0
    %1305 = vmatpush1.msra.mxu0 0.0
    %1306 = vmatprep.subr.mxu0 0.0
    %1307 = vmatpush1.msra.mxu0 0.0
    %1308 = vmatprep.subr.mxu0 0.0
    %1309 = vmatpush1.msra.mxu0 0.0
    %1310 = vmatprep.subr.mxu0 0.0
    %1311 = vmatpush1.msra.mxu0 0.0
    %1312 = vmatprep.subr.mxu0 0.0
    %1313 = vmatpush1.msra.mxu0 0.0
    %1314 = vmatprep.subr.mxu0 0.0
    %1315 = vmatpush1.msra.mxu0 0.0
    %1316 = vmatprep.subr.mxu0 0.0
    %1317 = vmatpush1.msra.mxu0 0.0
    %1318 = vmatprep.subr.mxu0 0.0
    %1319 = vmatpush1.msra.mxu0 0.0
    %1320 = vmatprep.subr.mxu0 0.0
    %1321 = vmatpush1.msra.mxu0 0.0
    %1322 = vmatprep.subr.mxu0 0.0
    %1323 = vmatpush1.msra.mxu0 0.0
    %1324 = vmatprep.subr.mxu0 0.0
    %1325 = vmatpush1.msra.mxu0 0.0
    %1326 = vmatprep.subr.mxu0 0.0
    %1327 = vmatpush1.msra.mxu0 0.0
    %1328 = vmatprep.subr.mxu0 0.0
    %1329 = vmatpush1.msra.mxu0 0.0
    %1330 = vmatprep.subr.mxu0 0.0
    %1331 = vmatpush1.msra.mxu0 %v1136
    %1332 = vmatprep.subr.mxu0 0.0
    %1333 = vmatpush1.msra.mxu0 %v1134
    %1334 = vmatprep.subr.mxu0 0.0
    %1335 = vmatpush2.msra.mxu0 0.0
    %1336 = vmatprep.subr.mxu0 0.0
    %1337 = vmatpush2.msra.mxu0 0.0
    %1338 = vmatprep.subr.mxu0 0.0
    %1339 = vmatpush2.msra.mxu0 0.0
    %1340 = vmatprep.subr.mxu0 0.0
    %1341 = vmatpush2.msra.mxu0 0.0
    %1342 = vmatprep.subr.mxu0 0.0
    %1343 = vmatpush2.msra.mxu0 0.0
    %1344 = vmatprep.subr.mxu0 0.0
    %1345 = vmatpush2.msra.mxu0 0.0
    %1346 = vmatprep.subr.mxu0 0.0
    %1347 = vmatpush2.msra.mxu0 0.0
    %1348 = vmatprep.subr.mxu0 0.0
    %1349 = vmatpush2.msra.mxu0 0.0
    %1350 = vmatprep.subr.mxu0 0.0
    %1351 = vmatpush2.msra.mxu0 0.0
    %1352 = vmatprep.subr.mxu0 0.0
    %1353 = vmatpush2.msra.mxu0 0.0
    %1354 = vmatprep.subr.mxu0 0.0
    %1355 = vmatpush2.msra.mxu0 0.0
    %1356 = vmatprep.subr.mxu0 0.0
    %1357 = vmatpush2.msra.mxu0 0.0
    %1358 = vmatprep.subr.mxu0 0.0
    %1359 = vmatpush2.msra.mxu0 0.0
    %1360 = vmatprep.subr.mxu0 0.0
    %1361 = vmatpush2.msra.mxu0 0.0
    %1362 = vmatprep.subr.mxu0 0.0
    %1363 = vmatpush2.msra.mxu0 0.0
    %1364 = vmatprep.subr.mxu0 0.0
    %1365 = vmatpush2.msra.mxu0 0.0
    %1366 = vmatprep.mubr.f32.mxu0 0.0
    %1367 = vmatmul.mubr.f32.gmra.mxu0 %v1300
    %v1368 = vpop.f32.mrf.mxu0
    %v1369 = vadd.f32 0.0, %v1368
    %v1370 = vpop.f32.mrf.mxu0
    %1371 = vdwg.mxu0
    %1373 = vrot.lane.b32.xlu0 %v1035, 8
    %v1374 = vpop.permute.xlu0 %1373
    %1377 = vrot.lane.b32.xlu0 %v1209, 16
    %v1378 = vpop.permute.xlu0 %1377
    %1381 = vrot.lane.b32.xlu0 %v1369, 24
    %v1382 = vpop.permute.xlu0 %1381
    %v1384 = vsel %vm712, %v875, %v1374
    %v1385 = vsel %vm477, %v1384, %v1378
    %vm1386 = vcmask 195584
    %v1387 = vsel %vm1386, %v1385, %v1382
    %v1388 = vrot.slane %v469, 1
    %v1389 = vsel %vm712, %v1388, 0
    %v1391 = vsel %vm712, %v681, 0
    %v1393 = vsel %vm712, %v683, 0
    %1395 = vmatprep.subr.mxu0 0.0
    %1396 = vmatpush1.xpose.msra.mxu0 0.0
    %1397 = vmatprep.subr.mxu0 0.0
    %1398 = vmatpush1.xpose.msra.mxu0 0.0
    %1399 = vmatprep.subr.mxu0 0.0
    %1400 = vmatpush1.xpose.msra.mxu0 0.0
    %1401 = vmatprep.subr.mxu0 0.0
    %1402 = vmatpush1.xpose.msra.mxu0 0.0
    %1403 = vmatprep.subr.mxu0 0.0
    %1404 = vmatpush1.xpose.msra.mxu0 0.0
    %1405 = vmatprep.subr.mxu0 0.0
    %1406 = vmatpush1.xpose.msra.mxu0 0.0
    %1407 = vmatprep.subr.mxu0 0.0
    %1408 = vmatpush1.xpose.msra.mxu0 0.0
    %1409 = vmatprep.subr.mxu0 0.0
    %1410 = vmatpush1.xpose.msra.mxu0 0.0
    %1411 = vmatprep.subr.mxu0 0.0
    %1412 = vmatpush1.xpose.msra.mxu0 0.0
    %1413 = vmatprep.subr.mxu0 0.0
    %1414 = vmatpush1.xpose.msra.mxu0 0.0
    %1415 = vmatprep.subr.mxu0 0.0
    %1416 = vmatpush1.xpose.msra.mxu0 0.0
    %1417 = vmatprep.subr.mxu0 0.0
    %1418 = vmatpush1.xpose.msra.mxu0 0.0
    %1419 = vmatprep.subr.mxu0 0.0
    %1420 = vmatpush1.xpose.msra.mxu0 0.0
    %1421 = vmatprep.subr.mxu0 0.0
    %1422 = vmatpush1.xpose.msra.mxu0 0.0
    %1423 = vmatprep.subr.mxu0 0.0
    %1424 = vmatpush1.xpose.msra.mxu0 %v1393
    %1425 = vmatprep.subr.mxu0 0.0
    %1426 = vmatpush1.xpose.msra.mxu0 %v1391
    %1427 = vmatprep.subr.mxu0 0.0
    %1428 = vmatpush2.xpose.msra.mxu0 0.0
    %1429 = vmatprep.subr.mxu0 0.0
    %1430 = vmatpush2.xpose.msra.mxu0 0.0
    %1431 = vmatprep.subr.mxu0 0.0
    %1432 = vmatpush2.xpose.msra.mxu0 0.0
    %1433 = vmatprep.subr.mxu0 0.0
    %1434 = vmatpush2.xpose.msra.mxu0 0.0
    %1435 = vmatprep.subr.mxu0 0.0
    %1436 = vmatpush2.xpose.msra.mxu0 0.0
    %1437 = vmatprep.subr.mxu0 0.0
    %1438 = vmatpush2.xpose.msra.mxu0 0.0
    %1439 = vmatprep.subr.mxu0 0.0
    %1440 = vmatpush2.xpose.msra.mxu0 0.0
    %1441 = vmatprep.subr.mxu0 0.0
    %1442 = vmatpush2.xpose.msra.mxu0 0.0
    %1443 = vmatprep.subr.mxu0 0.0
    %1444 = vmatpush2.xpose.msra.mxu0 0.0
    %1445 = vmatprep.subr.mxu0 0.0
    %1446 = vmatpush2.xpose.msra.mxu0 0.0
    %1447 = vmatprep.subr.mxu0 0.0
    %1448 = vmatpush2.xpose.msra.mxu0 0.0
    %1449 = vmatprep.subr.mxu0 0.0
    %1450 = vmatpush2.xpose.msra.mxu0 0.0
    %1451 = vmatprep.subr.mxu0 0.0
    %1452 = vmatpush2.xpose.msra.mxu0 0.0
    %1453 = vmatprep.subr.mxu0 0.0
    %1454 = vmatpush2.xpose.msra.mxu0 0.0
    %1455 = vmatprep.subr.mxu0 0.0
    %1456 = vmatpush2.xpose.msra.mxu0 0.0
    %1457 = vmatprep.subr.mxu0 0.0
    %1458 = vmatpush2.xpose.msra.mxu0 0.0
    %1459 = vmatprep.mubr.f32.mxu0 0.0
    %1460 = vmatmul.mubr.f32.gmra.mxu0 %v1389
    %v1461 = vpop.f32.mrf.mxu0
    %v1462 = vadd.f32 0.0, %v1461
    %v1463 = vpop.f32.mrf.mxu0
    %1464 = vdwg.mxu0
    %v1465 = vmul.f32 %v1462, 0.35355338
    %v1466 = vsel %vm791, %v1465, -1e+30
    %v1467 = vsel %vm793, %v1466, -inf
    %1468 = vmax.xlane.f32.xlu0 %v1467
    %v1469 = vpop.xlane.xlu0 %1468
    %v1470 = vsub.f32 %v1466, %v1469
    %v1471 = vmul.f32 %v1470, 1.442695
    %v1472 = vpow.pop %v1471
    %v1473 = vsel %vm793, %v1472, 0.0
    %1474 = vadd.xlane.f32.xlu0 %v1473
    %v1475 = vpop.xlane.xlu0 %1474
    %v1476 = vrcp.pop %v1475
    %v1477 = vmul.f32 %v1472, %v1476
    %v1479 = vsel %vm477, %v1477, 0
    %1481 = vmatprep.subr.mxu0 0.0
    %1482 = vmatpush1.msra.mxu0 0.0
    %1483 = vmatprep.subr.mxu0 0.0
    %1484 = vmatpush1.msra.mxu0 0.0
    %1485 = vmatprep.subr.mxu0 0.0
    %1486 = vmatpush1.msra.mxu0 0.0
    %1487 = vmatprep.subr.mxu0 0.0
    %1488 = vmatpush1.msra.mxu0 0.0
    %1489 = vmatprep.subr.mxu0 0.0
    %1490 = vmatpush1.msra.mxu0 0.0
    %1491 = vmatprep.subr.mxu0 0.0
    %1492 = vmatpush1.msra.mxu0 0.0
    %1493 = vmatprep.subr.mxu0 0.0
    %1494 = vmatpush1.msra.mxu0 0.0
    %1495 = vmatprep.subr.mxu0 0.0
    %1496 = vmatpush1.msra.mxu0 0.0
    %1497 = vmatprep.subr.mxu0 0.0
    %1498 = vmatpush1.msra.mxu0 0.0
    %1499 = vmatprep.subr.mxu0 0.0
    %1500 = vmatpush1.msra.mxu0 0.0
    %1501 = vmatprep.subr.mxu0 0.0
    %1502 = vmatpush1.msra.mxu0 0.0
    %1503 = vmatprep.subr.mxu0 0.0
    %1504 = vmatpush1.msra.mxu0 0.0
    %1505 = vmatprep.subr.mxu0 0.0
    %1506 = vmatpush1.msra.mxu0 0.0
    %1507 = vmatprep.subr.mxu0 0.0
    %1508 = vmatpush1.msra.mxu0 0.0
    %1509 = vmatprep.subr.mxu0 0.0
    %1510 = vmatpush1.msra.mxu0 %v703
    %1511 = vmatprep.subr.mxu0 0.0
    %1512 = vmatpush1.msra.mxu0 %v701
    %1513 = vmatprep.subr.mxu0 0.0
    %1514 = vmatpush2.msra.mxu0 0.0
    %1515 = vmatprep.subr.mxu0 0.0
    %1516 = vmatpush2.msra.mxu0 0.0
    %1517 = vmatprep.subr.mxu0 0.0
    %1518 = vmatpush2.msra.mxu0 0.0
    %1519 = vmatprep.subr.mxu0 0.0
    %1520 = vmatpush2.msra.mxu0 0.0
    %1521 = vmatprep.subr.mxu0 0.0
    %1522 = vmatpush2.msra.mxu0 0.0
    %1523 = vmatprep.subr.mxu0 0.0
    %1524 = vmatpush2.msra.mxu0 0.0
    %1525 = vmatprep.subr.mxu0 0.0
    %1526 = vmatpush2.msra.mxu0 0.0
    %1527 = vmatprep.subr.mxu0 0.0
    %1528 = vmatpush2.msra.mxu0 0.0
    %1529 = vmatprep.subr.mxu0 0.0
    %1530 = vmatpush2.msra.mxu0 0.0
    %1531 = vmatprep.subr.mxu0 0.0
    %1532 = vmatpush2.msra.mxu0 0.0
    %1533 = vmatprep.subr.mxu0 0.0
    %1534 = vmatpush2.msra.mxu0 0.0
    %1535 = vmatprep.subr.mxu0 0.0
    %1536 = vmatpush2.msra.mxu0 0.0
    %1537 = vmatprep.subr.mxu0 0.0
    %1538 = vmatpush2.msra.mxu0 0.0
    %1539 = vmatprep.subr.mxu0 0.0
    %1540 = vmatpush2.msra.mxu0 0.0
    %1541 = vmatprep.subr.mxu0 0.0
    %1542 = vmatpush2.msra.mxu0 0.0
    %1543 = vmatprep.subr.mxu0 0.0
    %1544 = vmatpush2.msra.mxu0 0.0
    %1545 = vmatprep.mubr.f32.mxu0 0.0
    %1546 = vmatmul.mubr.f32.gmra.mxu0 %v1479
    %v1547 = vpop.f32.mrf.mxu0
    %v1548 = vadd.f32 0.0, %v1547
    %v1549 = vpop.f32.mrf.mxu0
    %1550 = vdwg.mxu0
    %1551 = vrot.lane.b32.xlu0 %v1388, 120
    %v1552 = vpop.permute.xlu0 %1551
    %v1553 = vsel %vm712, %v1552, 0
    %1555 = vmatprep.subr.mxu0 0.0
    %1556 = vmatpush1.xpose.msra.mxu0 0.0
    %1557 = vmatprep.subr.mxu0 0.0
    %1558 = vmatpush1.xpose.msra.mxu0 0.0
    %1559 = vmatprep.subr.mxu0 0.0
    %1560 = vmatpush1.xpose.msra.mxu0 0.0
    %1561 = vmatprep.subr.mxu0 0.0
    %1562 = vmatpush1.xpose.msra.mxu0 0.0
    %1563 = vmatprep.subr.mxu0 0.0
    %1564 = vmatpush1.xpose.msra.mxu0 0.0
    %1565 = vmatprep.subr.mxu0 0.0
    %1566 = vmatpush1.xpose.msra.mxu0 0.0
    %1567 = vmatprep.subr.mxu0 0.0
    %1568 = vmatpush1.xpose.msra.mxu0 0.0
    %1569 = vmatprep.subr.mxu0 0.0
    %1570 = vmatpush1.xpose.msra.mxu0 0.0
    %1571 = vmatprep.subr.mxu0 0.0
    %1572 = vmatpush1.xpose.msra.mxu0 0.0
    %1573 = vmatprep.subr.mxu0 0.0
    %1574 = vmatpush1.xpose.msra.mxu0 0.0
    %1575 = vmatprep.subr.mxu0 0.0
    %1576 = vmatpush1.xpose.msra.mxu0 0.0
    %1577 = vmatprep.subr.mxu0 0.0
    %1578 = vmatpush1.xpose.msra.mxu0 0.0
    %1579 = vmatprep.subr.mxu0 0.0
    %1580 = vmatpush1.xpose.msra.mxu0 0.0
    %1581 = vmatprep.subr.mxu0 0.0
    %1582 = vmatpush1.xpose.msra.mxu0 0.0
    %1583 = vmatprep.subr.mxu0 0.0
    %1584 = vmatpush1.xpose.msra.mxu0 %v1393
    %1585 = vmatprep.subr.mxu0 0.0
    %1586 = vmatpush1.xpose.msra.mxu0 %v1391
    %1587 = vmatprep.subr.mxu0 0.0
    %1588 = vmatpush2.xpose.msra.mxu0 0.0
    %1589 = vmatprep.subr.mxu0 0.0
    %1590 = vmatpush2.xpose.msra.mxu0 0.0
    %1591 = vmatprep.subr.mxu0 0.0
    %1592 = vmatpush2.xpose.msra.mxu0 0.0
    %1593 = vmatprep.subr.mxu0 0.0
    %1594 = vmatpush2.xpose.msra.mxu0 0.0
    %1595 = vmatprep.subr.mxu0 0.0
    %1596 = vmatpush2.xpose.msra.mxu0 0.0
    %1597 = vmatprep.subr.mxu0 0.0
    %1598 = vmatpush2.xpose.msra.mxu0 0.0
    %1599 = vmatprep.subr.mxu0 0.0
    %1600 = vmatpush2.xpose.msra.mxu0 0.0
    %1601 = vmatprep.subr.mxu0 0.0
    %1602 = vmatpush2.xpose.msra.mxu0 0.0
    %1603 = vmatprep.subr.mxu0 0.0
    %1604 = vmatpush2.xpose.msra.mxu0 0.0
    %1605 = vmatprep.subr.mxu0 0.0
    %1606 = vmatpush2.xpose.msra.mxu0 0.0
    %1607 = vmatprep.subr.mxu0 0.0
    %1608 = vmatpush2.xpose.msra.mxu0 0.0
    %1609 = vmatprep.subr.mxu0 0.0
    %1610 = vmatpush2.xpose.msra.mxu0 0.0
    %1611 = vmatprep.subr.mxu0 0.0
    %1612 = vmatpush2.xpose.msra.mxu0 0.0
    %1613 = vmatprep.subr.mxu0 0.0
    %1614 = vmatpush2.xpose.msra.mxu0 0.0
    %1615 = vmatprep.subr.mxu0 0.0
    %1616 = vmatpush2.xpose.msra.mxu0 0.0
    %1617 = vmatprep.subr.mxu0 0.0
    %1618 = vmatpush2.xpose.msra.mxu0 0.0
    %1619 = vmatprep.mubr.f32.mxu0 0.0
    %1620 = vmatmul.mubr.f32.gmra.mxu0 %v1553
    %v1621 = vpop.f32.mrf.mxu0
    %v1622 = vadd.f32 0.0, %v1621
    %v1623 = vpop.f32.mrf.mxu0
    %1624 = vdwg.mxu0
    %v1625 = vmul.f32 %v1622, 0.35355338
    %v1626 = vsel %vm791, %v1625, -1e+30
    %v1627 = vsel %vm793, %v1626, -inf
    %1628 = vmax.xlane.f32.xlu0 %v1627
    %v1629 = vpop.xlane.xlu0 %1628
    %v1630 = vsub.f32 %v1626, %v1629
    %v1631 = vmul.f32 %v1630, 1.442695
    %v1632 = vpow.pop %v1631
    %v1633 = vsel %vm793, %v1632, 0.0
    %1634 = vadd.xlane.f32.xlu0 %v1633
    %v1635 = vpop.xlane.xlu0 %1634
    %v1636 = vrcp.pop %v1635
    %v1637 = vmul.f32 %v1632, %v1636
    %v1639 = vsel %vm477, %v1637, 0
    %1641 = vmatprep.subr.mxu0 0.0
    %1642 = vmatpush1.msra.mxu0 0.0
    %1643 = vmatprep.subr.mxu0 0.0
    %1644 = vmatpush1.msra.mxu0 0.0
    %1645 = vmatprep.subr.mxu0 0.0
    %1646 = vmatpush1.msra.mxu0 0.0
    %1647 = vmatprep.subr.mxu0 0.0
    %1648 = vmatpush1.msra.mxu0 0.0
    %1649 = vmatprep.subr.mxu0 0.0
    %1650 = vmatpush1.msra.mxu0 0.0
    %1651 = vmatprep.subr.mxu0 0.0
    %1652 = vmatpush1.msra.mxu0 0.0
    %1653 = vmatprep.subr.mxu0 0.0
    %1654 = vmatpush1.msra.mxu0 0.0
    %1655 = vmatprep.subr.mxu0 0.0
    %1656 = vmatpush1.msra.mxu0 0.0
    %1657 = vmatprep.subr.mxu0 0.0
    %1658 = vmatpush1.msra.mxu0 0.0
    %1659 = vmatprep.subr.mxu0 0.0
    %1660 = vmatpush1.msra.mxu0 0.0
    %1661 = vmatprep.subr.mxu0 0.0
    %1662 = vmatpush1.msra.mxu0 0.0
    %1663 = vmatprep.subr.mxu0 0.0
    %1664 = vmatpush1.msra.mxu0 0.0
    %1665 = vmatprep.subr.mxu0 0.0
    %1666 = vmatpush1.msra.mxu0 0.0
    %1667 = vmatprep.subr.mxu0 0.0
    %1668 = vmatpush1.msra.mxu0 0.0
    %1669 = vmatprep.subr.mxu0 0.0
    %1670 = vmatpush1.msra.mxu0 %v703
    %1671 = vmatprep.subr.mxu0 0.0
    %1672 = vmatpush1.msra.mxu0 %v701
    %1673 = vmatprep.subr.mxu0 0.0
    %1674 = vmatpush2.msra.mxu0 0.0
    %1675 = vmatprep.subr.mxu0 0.0
    %1676 = vmatpush2.msra.mxu0 0.0
    %1677 = vmatprep.subr.mxu0 0.0
    %1678 = vmatpush2.msra.mxu0 0.0
    %1679 = vmatprep.subr.mxu0 0.0
    %1680 = vmatpush2.msra.mxu0 0.0
    %1681 = vmatprep.subr.mxu0 0.0
    %1682 = vmatpush2.msra.mxu0 0.0
    %1683 = vmatprep.subr.mxu0 0.0
    %1684 = vmatpush2.msra.mxu0 0.0
    %1685 = vmatprep.subr.mxu0 0.0
    %1686 = vmatpush2.msra.mxu0 0.0
    %1687 = vmatprep.subr.mxu0 0.0
    %1688 = vmatpush2.msra.mxu0 0.0
    %1689 = vmatprep.subr.mxu0 0.0
    %1690 = vmatpush2.msra.mxu0 0.0
    %1691 = vmatprep.subr.mxu0 0.0
    %1692 = vmatpush2.msra.mxu0 0.0
    %1693 = vmatprep.subr.mxu0 0.0
    %1694 = vmatpush2.msra.mxu0 0.0
    %1695 = vmatprep.subr.mxu0 0.0
    %1696 = vmatpush2.msra.mxu0 0.0
    %1697 = vmatprep.subr.mxu0 0.0
    %1698 = vmatpush2.msra.mxu0 0.0
    %1699 = vmatprep.subr.mxu0 0.0
    %1700 = vmatpush2.msra.mxu0 0.0
    %1701 = vmatprep.subr.mxu0 0.0
    %1702 = vmatpush2.msra.mxu0 0.0
    %1703 = vmatprep.subr.mxu0 0.0
    %1704 = vmatpush2.msra.mxu0 0.0
    %1705 = vmatprep.mubr.f32.mxu0 0.0
    %1706 = vmatmul.mubr.f32.gmra.mxu0 %v1639
    %v1707 = vpop.f32.mrf.mxu0
    %v1708 = vadd.f32 0.0, %v1707
    %v1709 = vpop.f32.mrf.mxu0
    %1710 = vdwg.mxu0
    %1711 = vrot.lane.b32.xlu0 %v1388, 112
    %v1712 = vpop.permute.xlu0 %1711
    %1713 = vrot.lane.b32.xlu0 %v618, 88
    %v1714 = vpop.permute.xlu0 %1713
    %1715 = vrot.lane.b32.xlu0 %v619, 88
    %v1716 = vpop.permute.xlu0 %1715
    %v1717 = vsel %vm712, %v1712, 0
    %v1719 = vsel %vm712, %v1714, 0
    %v1721 = vsel %vm712, %v1716, 0
    %1723 = vmatprep.subr.mxu0 0.0
    %1724 = vmatpush1.xpose.msra.mxu0 0.0
    %1725 = vmatprep.subr.mxu0 0.0
    %1726 = vmatpush1.xpose.msra.mxu0 0.0
    %1727 = vmatprep.subr.mxu0 0.0
    %1728 = vmatpush1.xpose.msra.mxu0 0.0
    %1729 = vmatprep.subr.mxu0 0.0
    %1730 = vmatpush1.xpose.msra.mxu0 0.0
    %1731 = vmatprep.subr.mxu0 0.0
    %1732 = vmatpush1.xpose.msra.mxu0 0.0
    %1733 = vmatprep.subr.mxu0 0.0
    %1734 = vmatpush1.xpose.msra.mxu0 0.0
    %1735 = vmatprep.subr.mxu0 0.0
    %1736 = vmatpush1.xpose.msra.mxu0 0.0
    %1737 = vmatprep.subr.mxu0 0.0
    %1738 = vmatpush1.xpose.msra.mxu0 0.0
    %1739 = vmatprep.subr.mxu0 0.0
    %1740 = vmatpush1.xpose.msra.mxu0 0.0
    %1741 = vmatprep.subr.mxu0 0.0
    %1742 = vmatpush1.xpose.msra.mxu0 0.0
    %1743 = vmatprep.subr.mxu0 0.0
    %1744 = vmatpush1.xpose.msra.mxu0 0.0
    %1745 = vmatprep.subr.mxu0 0.0
    %1746 = vmatpush1.xpose.msra.mxu0 0.0
    %1747 = vmatprep.subr.mxu0 0.0
    %1748 = vmatpush1.xpose.msra.mxu0 0.0
    %1749 = vmatprep.subr.mxu0 0.0
    %1750 = vmatpush1.xpose.msra.mxu0 0.0
    %1751 = vmatprep.subr.mxu0 0.0
    %1752 = vmatpush1.xpose.msra.mxu0 %v1721
    %1753 = vmatprep.subr.mxu0 0.0
    %1754 = vmatpush1.xpose.msra.mxu0 %v1719
    %1755 = vmatprep.subr.mxu0 0.0
    %1756 = vmatpush2.xpose.msra.mxu0 0.0
    %1757 = vmatprep.subr.mxu0 0.0
    %1758 = vmatpush2.xpose.msra.mxu0 0.0
    %1759 = vmatprep.subr.mxu0 0.0
    %1760 = vmatpush2.xpose.msra.mxu0 0.0
    %1761 = vmatprep.subr.mxu0 0.0
    %1762 = vmatpush2.xpose.msra.mxu0 0.0
    %1763 = vmatprep.subr.mxu0 0.0
    %1764 = vmatpush2.xpose.msra.mxu0 0.0
    %1765 = vmatprep.subr.mxu0 0.0
    %1766 = vmatpush2.xpose.msra.mxu0 0.0
    %1767 = vmatprep.subr.mxu0 0.0
    %1768 = vmatpush2.xpose.msra.mxu0 0.0
    %1769 = vmatprep.subr.mxu0 0.0
    %1770 = vmatpush2.xpose.msra.mxu0 0.0
    %1771 = vmatprep.subr.mxu0 0.0
    %1772 = vmatpush2.xpose.msra.mxu0 0.0
    %1773 = vmatprep.subr.mxu0 0.0
    %1774 = vmatpush2.xpose.msra.mxu0 0.0
    %1775 = vmatprep.subr.mxu0 0.0
    %1776 = vmatpush2.xpose.msra.mxu0 0.0
    %1777 = vmatprep.subr.mxu0 0.0
    %1778 = vmatpush2.xpose.msra.mxu0 0.0
    %1779 = vmatprep.subr.mxu0 0.0
    %1780 = vmatpush2.xpose.msra.mxu0 0.0
    %1781 = vmatprep.subr.mxu0 0.0
    %1782 = vmatpush2.xpose.msra.mxu0 0.0
    %1783 = vmatprep.subr.mxu0 0.0
    %1784 = vmatpush2.xpose.msra.mxu0 0.0
    %1785 = vmatprep.subr.mxu0 0.0
    %1786 = vmatpush2.xpose.msra.mxu0 0.0
    %1787 = vmatprep.mubr.f32.mxu0 0.0
    %1788 = vmatmul.mubr.f32.gmra.mxu0 %v1717
    %v1789 = vpop.f32.mrf.mxu0
    %v1790 = vadd.f32 0.0, %v1789
    %v1791 = vpop.f32.mrf.mxu0
    %1792 = vdwg.mxu0
    %v1793 = vmul.f32 %v1790, 0.35355338
    %v1794 = vsel %vm791, %v1793, -1e+30
    %v1795 = vsel %vm793, %v1794, -inf
    %1796 = vmax.xlane.f32.xlu0 %v1795
    %v1797 = vpop.xlane.xlu0 %1796
    %v1798 = vsub.f32 %v1794, %v1797
    %v1799 = vmul.f32 %v1798, 1.442695
    %v1800 = vpow.pop %v1799
    %v1801 = vsel %vm793, %v1800, 0.0
    %1802 = vadd.xlane.f32.xlu0 %v1801
    %v1803 = vpop.xlane.xlu0 %1802
    %v1804 = vrcp.pop %v1803
    %v1805 = vmul.f32 %v1800, %v1804
    %1806 = vrot.lane.b32.xlu0 %v670, 72
    %v1807 = vpop.permute.xlu0 %1806
    %1808 = vrot.lane.b32.xlu0 %v671, 72
    %v1809 = vpop.permute.xlu0 %1808
    %v1813 = vsel %vm477, %v1805, 0
    %1815 = vmatprep.subr.mxu0 0.0
    %1816 = vmatpush1.msra.mxu0 0.0
    %1817 = vmatprep.subr.mxu0 0.0
    %1818 = vmatpush1.msra.mxu0 0.0
    %1819 = vmatprep.subr.mxu0 0.0
    %1820 = vmatpush1.msra.mxu0 0.0
    %1821 = vmatprep.subr.mxu0 0.0
    %1822 = vmatpush1.msra.mxu0 0.0
    %1823 = vmatprep.subr.mxu0 0.0
    %1824 = vmatpush1.msra.mxu0 0.0
    %1825 = vmatprep.subr.mxu0 0.0
    %1826 = vmatpush1.msra.mxu0 0.0
    %1827 = vmatprep.subr.mxu0 0.0
    %1828 = vmatpush1.msra.mxu0 0.0
    %1829 = vmatprep.subr.mxu0 0.0
    %1830 = vmatpush1.msra.mxu0 0.0
    %1831 = vmatprep.subr.mxu0 0.0
    %1832 = vmatpush1.msra.mxu0 0.0
    %1833 = vmatprep.subr.mxu0 0.0
    %1834 = vmatpush1.msra.mxu0 0.0
    %1835 = vmatprep.subr.mxu0 0.0
    %1836 = vmatpush1.msra.mxu0 0.0
    %1837 = vmatprep.subr.mxu0 0.0
    %1838 = vmatpush1.msra.mxu0 0.0
    %1839 = vmatprep.subr.mxu0 0.0
    %1840 = vmatpush1.msra.mxu0 0.0
    %1841 = vmatprep.subr.mxu0 0.0
    %1842 = vmatpush1.msra.mxu0 0.0
    %1843 = vmatprep.subr.mxu0 0.0
    %1844 = vmatpush1.msra.mxu0 %v1809
    %1845 = vmatprep.subr.mxu0 0.0
    %1846 = vmatpush1.msra.mxu0 %v1807
    %1847 = vmatprep.subr.mxu0 0.0
    %1848 = vmatpush2.msra.mxu0 0.0
    %1849 = vmatprep.subr.mxu0 0.0
    %1850 = vmatpush2.msra.mxu0 0.0
    %1851 = vmatprep.subr.mxu0 0.0
    %1852 = vmatpush2.msra.mxu0 0.0
    %1853 = vmatprep.subr.mxu0 0.0
    %1854 = vmatpush2.msra.mxu0 0.0
    %1855 = vmatprep.subr.mxu0 0.0
    %1856 = vmatpush2.msra.mxu0 0.0
    %1857 = vmatprep.subr.mxu0 0.0
    %1858 = vmatpush2.msra.mxu0 0.0
    %1859 = vmatprep.subr.mxu0 0.0
    %1860 = vmatpush2.msra.mxu0 0.0
    %1861 = vmatprep.subr.mxu0 0.0
    %1862 = vmatpush2.msra.mxu0 0.0
    %1863 = vmatprep.subr.mxu0 0.0
    %1864 = vmatpush2.msra.mxu0 0.0
    %1865 = vmatprep.subr.mxu0 0.0
    %1866 = vmatpush2.msra.mxu0 0.0
    %1867 = vmatprep.subr.mxu0 0.0
    %1868 = vmatpush2.msra.mxu0 0.0
    %1869 = vmatprep.subr.mxu0 0.0
    %1870 = vmatpush2.msra.mxu0 0.0
    %1871 = vmatprep.subr.mxu0 0.0
    %1872 = vmatpush2.msra.mxu0 0.0
    %1873 = vmatprep.subr.mxu0 0.0
    %1874 = vmatpush2.msra.mxu0 0.0
    %1875 = vmatprep.subr.mxu0 0.0
    %1876 = vmatpush2.msra.mxu0 0.0
    %1877 = vmatprep.subr.mxu0 0.0
    %1878 = vmatpush2.msra.mxu0 0.0
    %1879 = vmatprep.mubr.f32.mxu0 0.0
    %1880 = vmatmul.mubr.f32.gmra.mxu0 %v1813
    %v1881 = vpop.f32.mrf.mxu0
    %v1882 = vadd.f32 0.0, %v1881
    %v1883 = vpop.f32.mrf.mxu0
    %1884 = vdwg.mxu0
    %1885 = vrot.lane.b32.xlu0 %v1388, 104
    %v1886 = vpop.permute.xlu0 %1885
    %v1887 = vsel %vm712, %v1886, 0
    %1889 = vmatprep.subr.mxu0 0.0
    %1890 = vmatpush1.xpose.msra.mxu0 0.0
    %1891 = vmatprep.subr.mxu0 0.0
    %1892 = vmatpush1.xpose.msra.mxu0 0.0
    %1893 = vmatprep.subr.mxu0 0.0
    %1894 = vmatpush1.xpose.msra.mxu0 0.0
    %1895 = vmatprep.subr.mxu0 0.0
    %1896 = vmatpush1.xpose.msra.mxu0 0.0
    %1897 = vmatprep.subr.mxu0 0.0
    %1898 = vmatpush1.xpose.msra.mxu0 0.0
    %1899 = vmatprep.subr.mxu0 0.0
    %1900 = vmatpush1.xpose.msra.mxu0 0.0
    %1901 = vmatprep.subr.mxu0 0.0
    %1902 = vmatpush1.xpose.msra.mxu0 0.0
    %1903 = vmatprep.subr.mxu0 0.0
    %1904 = vmatpush1.xpose.msra.mxu0 0.0
    %1905 = vmatprep.subr.mxu0 0.0
    %1906 = vmatpush1.xpose.msra.mxu0 0.0
    %1907 = vmatprep.subr.mxu0 0.0
    %1908 = vmatpush1.xpose.msra.mxu0 0.0
    %1909 = vmatprep.subr.mxu0 0.0
    %1910 = vmatpush1.xpose.msra.mxu0 0.0
    %1911 = vmatprep.subr.mxu0 0.0
    %1912 = vmatpush1.xpose.msra.mxu0 0.0
    %1913 = vmatprep.subr.mxu0 0.0
    %1914 = vmatpush1.xpose.msra.mxu0 0.0
    %1915 = vmatprep.subr.mxu0 0.0
    %1916 = vmatpush1.xpose.msra.mxu0 0.0
    %1917 = vmatprep.subr.mxu0 0.0
    %1918 = vmatpush1.xpose.msra.mxu0 %v1721
    %1919 = vmatprep.subr.mxu0 0.0
    %1920 = vmatpush1.xpose.msra.mxu0 %v1719
    %1921 = vmatprep.subr.mxu0 0.0
    %1922 = vmatpush2.xpose.msra.mxu0 0.0
    %1923 = vmatprep.subr.mxu0 0.0
    %1924 = vmatpush2.xpose.msra.mxu0 0.0
    %1925 = vmatprep.subr.mxu0 0.0
    %1926 = vmatpush2.xpose.msra.mxu0 0.0
    %1927 = vmatprep.subr.mxu0 0.0
    %1928 = vmatpush2.xpose.msra.mxu0 0.0
    %1929 = vmatprep.subr.mxu0 0.0
    %1930 = vmatpush2.xpose.msra.mxu0 0.0
    %1931 = vmatprep.subr.mxu0 0.0
    %1932 = vmatpush2.xpose.msra.mxu0 0.0
    %1933 = vmatprep.subr.mxu0 0.0
    %1934 = vmatpush2.xpose.msra.mxu0 0.0
    %1935 = vmatprep.subr.mxu0 0.0
    %1936 = vmatpush2.xpose.msra.mxu0 0.0
    %1937 = vmatprep.subr.mxu0 0.0
    %1938 = vmatpush2.xpose.msra.mxu0 0.0
    %1939 = vmatprep.subr.mxu0 0.0
    %1940 = vmatpush2.xpose.msra.mxu0 0.0
    %1941 = vmatprep.subr.mxu0 0.0
    %1942 = vmatpush2.xpose.msra.mxu0 0.0
    %1943 = vmatprep.subr.mxu0 0.0
    %1944 = vmatpush2.xpose.msra.mxu0 0.0
    %1945 = vmatprep.subr.mxu0 0.0
    %1946 = vmatpush2.xpose.msra.mxu0 0.0
    %1947 = vmatprep.subr.mxu0 0.0
    %1948 = vmatpush2.xpose.msra.mxu0 0.0
    %1949 = vmatprep.subr.mxu0 0.0
    %1950 = vmatpush2.xpose.msra.mxu0 0.0
    %1951 = vmatprep.subr.mxu0 0.0
    %1952 = vmatpush2.xpose.msra.mxu0 0.0
    %1953 = vmatprep.mubr.f32.mxu0 0.0
    %1954 = vmatmul.mubr.f32.gmra.mxu0 %v1887
    %v1955 = vpop.f32.mrf.mxu0
    %v1956 = vadd.f32 0.0, %v1955
    %v1957 = vpop.f32.mrf.mxu0
    %1958 = vdwg.mxu0
    %v1959 = vmul.f32 %v1956, 0.35355338
    %v1960 = vsel %vm791, %v1959, -1e+30
    %v1961 = vsel %vm793, %v1960, -inf
    %1962 = vmax.xlane.f32.xlu0 %v1961
    %v1963 = vpop.xlane.xlu0 %1962
    %v1964 = vsub.f32 %v1960, %v1963
    %v1965 = vmul.f32 %v1964, 1.442695
    %v1966 = vpow.pop %v1965
    %v1967 = vsel %vm793, %v1966, 0.0
    %1968 = vadd.xlane.f32.xlu0 %v1967
    %v1969 = vpop.xlane.xlu0 %1968
    %v1970 = vrcp.pop %v1969
    %v1971 = vmul.f32 %v1966, %v1970
    %v1973 = vsel %vm477, %v1971, 0
    %1975 = vmatprep.subr.mxu0 0.0
    %1976 = vmatpush1.msra.mxu0 0.0
    %1977 = vmatprep.subr.mxu0 0.0
    %1978 = vmatpush1.msra.mxu0 0.0
    %1979 = vmatprep.subr.mxu0 0.0
    %1980 = vmatpush1.msra.mxu0 0.0
    %1981 = vmatprep.subr.mxu0 0.0
    %1982 = vmatpush1.msra.mxu0 0.0
    %1983 = vmatprep.subr.mxu0 0.0
    %1984 = vmatpush1.msra.mxu0 0.0
    %1985 = vmatprep.subr.mxu0 0.0
    %1986 = vmatpush1.msra.mxu0 0.0
    %1987 = vmatprep.subr.mxu0 0.0
    %1988 = vmatpush1.msra.mxu0 0.0
    %1989 = vmatprep.subr.mxu0 0.0
    %1990 = vmatpush1.msra.mxu0 0.0
    %1991 = vmatprep.subr.mxu0 0.0
    %1992 = vmatpush1.msra.mxu0 0.0
    %1993 = vmatprep.subr.mxu0 0.0
    %1994 = vmatpush1.msra.mxu0 0.0
    %1995 = vmatprep.subr.mxu0 0.0
    %1996 = vmatpush1.msra.mxu0 0.0
    %1997 = vmatprep.subr.mxu0 0.0
    %1998 = vmatpush1.msra.mxu0 0.0
    %1999 = vmatprep.subr.mxu0 0.0
    %2000 = vmatpush1.msra.mxu0 0.0
    %2001 = vmatprep.subr.mxu0 0.0
    %2002 = vmatpush1.msra.mxu0 0.0
    %2003 = vmatprep.subr.mxu0 0.0
    %2004 = vmatpush1.msra.mxu0 %v1809
    %2005 = vmatprep.subr.mxu0 0.0
    %2006 = vmatpush1.msra.mxu0 %v1807
    %2007 = vmatprep.subr.mxu0 0.0
    %2008 = vmatpush2.msra.mxu0 0.0
    %2009 = vmatprep.subr.mxu0 0.0
    %2010 = vmatpush2.msra.mxu0 0.0
    %2011 = vmatprep.subr.mxu0 0.0
    %2012 = vmatpush2.msra.mxu0 0.0
    %2013 = vmatprep.subr.mxu0 0.0
    %2014 = vmatpush2.msra.mxu0 0.0
    %2015 = vmatprep.subr.mxu0 0.0
    %2016 = vmatpush2.msra.mxu0 0.0
    %2017 = vmatprep.subr.mxu0 0.0
    %2018 = vmatpush2.msra.mxu0 0.0
    %2019 = vmatprep.subr.mxu0 0.0
    %2020 = vmatpush2.msra.mxu0 0.0
    %2021 = vmatprep.subr.mxu0 0.0
    %2022 = vmatpush2.msra.mxu0 0.0
    %2023 = vmatprep.subr.mxu0 0.0
    %2024 = vmatpush2.msra.mxu0 0.0
    %2025 = vmatprep.subr.mxu0 0.0
    %2026 = vmatpush2.msra.mxu0 0.0
    %2027 = vmatprep.subr.mxu0 0.0
    %2028 = vmatpush2.msra.mxu0 0.0
    %2029 = vmatprep.subr.mxu0 0.0
    %2030 = vmatpush2.msra.mxu0 0.0
    %2031 = vmatprep.subr.mxu0 0.0
    %2032 = vmatpush2.msra.mxu0 0.0
    %2033 = vmatprep.subr.mxu0 0.0
    %2034 = vmatpush2.msra.mxu0 0.0
    %2035 = vmatprep.subr.mxu0 0.0
    %2036 = vmatpush2.msra.mxu0 0.0
    %2037 = vmatprep.subr.mxu0 0.0
    %2038 = vmatpush2.msra.mxu0 0.0
    %2039 = vmatprep.mubr.f32.mxu0 0.0
    %2040 = vmatmul.mubr.f32.gmra.mxu0 %v1973
    %v2041 = vpop.f32.mrf.mxu0
    %v2042 = vadd.f32 0.0, %v2041
    %v2043 = vpop.f32.mrf.mxu0
    %2044 = vdwg.mxu0
    %2046 = vrot.lane.b32.xlu0 %v1708, 8
    %v2047 = vpop.permute.xlu0 %2046
    %2050 = vrot.lane.b32.xlu0 %v1882, 16
    %v2051 = vpop.permute.xlu0 %2050
    %2054 = vrot.lane.b32.xlu0 %v2042, 24
    %v2055 = vpop.permute.xlu0 %2054
    %v2057 = vsel %vm712, %v1548, %v2047
    %v2058 = vsel %vm477, %v2057, %v2051
    %v2059 = vsel %vm1386, %v2058, %v2055
    %v2061 = vrot.slane %v2059, 7
    %vm2063 = vcmask 1040384
    %v2064 = vsel %vm2063, %v1387, %v2061
    %v2065 = vld [vmem:[%s10] sm:$0xff]
    %v2066 = vld [vmem:[%s10 + $0x8] sm:$0xff]
    %v2067 = vld [vmem:[%s10 + $0x10] sm:$0xff]
    %v2068 = vld [vmem:[%s10 + $0x18] sm:$0xff]
    %v2070 = vsel %vm312, %v2064, 0
    %2072 = vmatprep.subr.mxu0 0.0
    %2073 = vmatpush1.msra.mxu0 0.0
    %2074 = vmatprep.subr.mxu0 0.0
    %2075 = vmatpush1.msra.mxu0 0.0
    %2076 = vmatprep.subr.mxu0 0.0
    %2077 = vmatpush1.msra.mxu0 0.0
    %2078 = vmatprep.subr.mxu0 0.0
    %2079 = vmatpush1.msra.mxu0 0.0
    %2080 = vmatprep.subr.mxu0 0.0
    %2081 = vmatpush1.msra.mxu0 0.0
    %2082 = vmatprep.subr.mxu0 0.0
    %2083 = vmatpush1.msra.mxu0 0.0
    %2084 = vmatprep.subr.mxu0 0.0
    %2085 = vmatpush1.msra.mxu0 0.0
    %2086 = vmatprep.subr.mxu0 0.0
    %2087 = vmatpush1.msra.mxu0 0.0
    %2088 = vmatprep.subr.mxu0 0.0
    %2089 = vmatpush1.msra.mxu0 0.0
    %2090 = vmatprep.subr.mxu0 0.0
    %2091 = vmatpush1.msra.mxu0 0.0
    %2092 = vmatprep.subr.mxu0 0.0
    %2093 = vmatpush1.msra.mxu0 0.0
    %2094 = vmatprep.subr.mxu0 0.0
    %2095 = vmatpush1.msra.mxu0 0.0
    %2096 = vmatprep.subr.mxu0 0.0
    %2097 = vmatpush1.msra.mxu0 %v2068
    %2098 = vmatprep.subr.mxu0 0.0
    %2099 = vmatpush1.msra.mxu0 %v2067
    %2100 = vmatprep.subr.mxu0 0.0
    %2101 = vmatpush1.msra.mxu0 %v2066
    %2102 = vmatprep.subr.mxu0 0.0
    %2103 = vmatpush1.msra.mxu0 %v2065
    %2104 = vmatprep.subr.mxu0 0.0
    %2105 = vmatpush2.msra.mxu0 0.0
    %2106 = vmatprep.subr.mxu0 0.0
    %2107 = vmatpush2.msra.mxu0 0.0
    %2108 = vmatprep.subr.mxu0 0.0
    %2109 = vmatpush2.msra.mxu0 0.0
    %2110 = vmatprep.subr.mxu0 0.0
    %2111 = vmatpush2.msra.mxu0 0.0
    %2112 = vmatprep.subr.mxu0 0.0
    %2113 = vmatpush2.msra.mxu0 0.0
    %2114 = vmatprep.subr.mxu0 0.0
    %2115 = vmatpush2.msra.mxu0 0.0
    %2116 = vmatprep.subr.mxu0 0.0
    %2117 = vmatpush2.msra.mxu0 0.0
    %2118 = vmatprep.subr.mxu0 0.0
    %2119 = vmatpush2.msra.mxu0 0.0
    %2120 = vmatprep.subr.mxu0 0.0
    %2121 = vmatpush2.msra.mxu0 0.0
    %2122 = vmatprep.subr.mxu0 0.0
    %2123 = vmatpush2.msra.mxu0 0.0
    %2124 = vmatprep.subr.mxu0 0.0
    %2125 = vmatpush2.msra.mxu0 0.0
    %2126 = vmatprep.subr.mxu0 0.0
    %2127 = vmatpush2.msra.mxu0 0.0
    %2128 = vmatprep.subr.mxu0 0.0
    %2129 = vmatpush2.msra.mxu0 0.0
    %2130 = vmatprep.subr.mxu0 0.0
    %2131 = vmatpush2.msra.mxu0 0.0
    %2132 = vmatprep.subr.mxu0 0.0
    %2133 = vmatpush2.msra.mxu0 0.0
    %2134 = vmatprep.subr.mxu0 0.0
    %2135 = vmatpush2.msra.mxu0 0.0
    %2136 = vmatprep.mubr.f32.mxu0 0.0
    %2137 = vmatmul.mubr.f32.gmra.mxu0 %v2070
    %v2138 = vpop.f32.mrf.mxu0
    %v2139 = vadd.f32 0.0, %v2138
    %v2140 = vpop.f32.mrf.mxu0
    %2141 = vdwg.mxu0
    %v2142 = vadd.f32 %v274, %v2139
    %v2143 = vld [vmem:[#allocation12] sm:$0x1]
    %v2144 = vmul.f32 %v2142, %v2142
    %v2145 = vsel %vm292, %v2144, 0.0
    %2146 = vadd.xlane.f32.xlu0 %v2145
    %v2147 = vpop.xlane.xlu0 %2146
    %v2148 = vmul.f32 %v2147, %v296
    %v2149 = vadd.f32 %v2148, 1e-05
    %v2150 = vrsqrt.pop %v2149
    %v2151 = vmul.f32 %v2142, %v2150
    %v2153 = vlaneseq
    %v2154 = vshrl.u32 %v2153, 7
    %v2155 = vsub.s32 0, %v2154
    %v2156 = vrot.slane %v2143, %v2155
    %v2158 = vmul.f32 %v2151, %v2156
    %v2159 = vld [vmem:[%s11] sm:$0xff]
    %v2160 = vld [vmem:[%s11 + $0x8] sm:$0xff]
    %v2161 = vld [vmem:[%s11 + $0x10] sm:$0xff]
    %v2162 = vld [vmem:[%s11 + $0x18] sm:$0xff]
    %v2164 = vsel %vm312, %v2158, 0
    %2166 = vmatprep.subr.mxu0 0.0
    %2167 = vmatpush1.msra.mxu0 0.0
    %2168 = vmatprep.subr.mxu0 0.0
    %2169 = vmatpush1.msra.mxu0 0.0
    %2170 = vmatprep.subr.mxu0 0.0
    %2171 = vmatpush1.msra.mxu0 0.0
    %2172 = vmatprep.subr.mxu0 0.0
    %2173 = vmatpush1.msra.mxu0 0.0
    %2174 = vmatprep.subr.mxu0 0.0
    %2175 = vmatpush1.msra.mxu0 0.0
    %2176 = vmatprep.subr.mxu0 0.0
    %2177 = vmatpush1.msra.mxu0 0.0
    %2178 = vmatprep.subr.mxu0 0.0
    %2179 = vmatpush1.msra.mxu0 0.0
    %2180 = vmatprep.subr.mxu0 0.0
    %2181 = vmatpush1.msra.mxu0 0.0
    %2182 = vmatprep.subr.mxu0 0.0
    %2183 = vmatpush1.msra.mxu0 0.0
    %2184 = vmatprep.subr.mxu0 0.0
    %2185 = vmatpush1.msra.mxu0 0.0
    %2186 = vmatprep.subr.mxu0 0.0
    %2187 = vmatpush1.msra.mxu0 0.0
    %2188 = vmatprep.subr.mxu0 0.0
    %2189 = vmatpush1.msra.mxu0 0.0
    %2190 = vmatprep.subr.mxu0 0.0
    %2191 = vmatpush1.msra.mxu0 %v2162
    %2192 = vmatprep.subr.mxu0 0.0
    %2193 = vmatpush1.msra.mxu0 %v2161
    %2194 = vmatprep.subr.mxu0 0.0
    %2195 = vmatpush1.msra.mxu0 %v2160
    %2196 = vmatprep.subr.mxu0 0.0
    %2197 = vmatpush1.msra.mxu0 %v2159
    %2198 = vmatprep.subr.mxu0 0.0
    %2199 = vmatpush2.msra.mxu0 0.0
    %2200 = vmatprep.subr.mxu0 0.0
    %2201 = vmatpush2.msra.mxu0 0.0
    %2202 = vmatprep.subr.mxu0 0.0
    %2203 = vmatpush2.msra.mxu0 0.0
    %2204 = vmatprep.subr.mxu0 0.0
    %2205 = vmatpush2.msra.mxu0 0.0
    %2206 = vmatprep.subr.mxu0 0.0
    %2207 = vmatpush2.msra.mxu0 0.0
    %2208 = vmatprep.subr.mxu0 0.0
    %2209 = vmatpush2.msra.mxu0 0.0
    %2210 = vmatprep.subr.mxu0 0.0
    %2211 = vmatpush2.msra.mxu0 0.0
    %2212 = vmatprep.subr.mxu0 0.0
    %2213 = vmatpush2.msra.mxu0 0.0
    %2214 = vmatprep.subr.mxu0 0.0
    %2215 = vmatpush2.msra.mxu0 0.0
    %2216 = vmatprep.subr.mxu0 0.0
    %2217 = vmatpush2.msra.mxu0 0.0
    %2218 = vmatprep.subr.mxu0 0.0
    %2219 = vmatpush2.msra.mxu0 0.0
    %2220 = vmatprep.subr.mxu0 0.0
    %2221 = vmatpush2.msra.mxu0 0.0
    %2222 = vmatprep.subr.mxu0 0.0
    %2223 = vmatpush2.msra.mxu0 0.0
    %2224 = vmatprep.subr.mxu0 0.0
    %2225 = vmatpush2.msra.mxu0 0.0
    %2226 = vmatprep.subr.mxu0 0.0
    %2227 = vmatpush2.msra.mxu0 0.0
    %2228 = vmatprep.subr.mxu0 0.0
    %2229 = vmatpush2.msra.mxu0 0.0
    %2230 = vmatprep.mubr.f32.mxu0 0.0
    %2231 = vmatmul.mubr.f32.gmra.mxu0 %v2164
    %v2232 = vpop.f32.mrf.mxu0
    %v2233 = vadd.f32 0.0, %v2232
    %v2234 = vpop.f32.mrf.mxu0
    %2235 = vdwg.mxu0
    %v2236 = vld [vmem:[%s12] sm:$0xff]
    %v2237 = vld [vmem:[%s12 + $0x8] sm:$0xff]
    %v2238 = vld [vmem:[%s12 + $0x10] sm:$0xff]
    %v2239 = vld [vmem:[%s12 + $0x18] sm:$0xff]
    %2240 = vmatprep.subr.mxu0 0.0
    %2241 = vmatpush1.msra.mxu0 0.0
    %2242 = vmatprep.subr.mxu0 0.0
    %2243 = vmatpush1.msra.mxu0 0.0
    %2244 = vmatprep.subr.mxu0 0.0
    %2245 = vmatpush1.msra.mxu0 0.0
    %2246 = vmatprep.subr.mxu0 0.0
    %2247 = vmatpush1.msra.mxu0 0.0
    %2248 = vmatprep.subr.mxu0 0.0
    %2249 = vmatpush1.msra.mxu0 0.0
    %2250 = vmatprep.subr.mxu0 0.0
    %2251 = vmatpush1.msra.mxu0 0.0
    %2252 = vmatprep.subr.mxu0 0.0
    %2253 = vmatpush1.msra.mxu0 0.0
    %2254 = vmatprep.subr.mxu0 0.0
    %2255 = vmatpush1.msra.mxu0 0.0
    %2256 = vmatprep.subr.mxu0 0.0
    %2257 = vmatpush1.msra.mxu0 0.0
    %2258 = vmatprep.subr.mxu0 0.0
    %2259 = vmatpush1.msra.mxu0 0.0
    %2260 = vmatprep.subr.mxu0 0.0
    %2261 = vmatpush1.msra.mxu0 0.0
    %2262 = vmatprep.subr.mxu0 0.0
    %2263 = vmatpush1.msra.mxu0 0.0
    %2264 = vmatprep.subr.mxu0 0.0
    %2265 = vmatpush1.msra.mxu0 %v2239
    %2266 = vmatprep.subr.mxu0 0.0
    %2267 = vmatpush1.msra.mxu0 %v2238
    %2268 = vmatprep.subr.mxu0 0.0
    %2269 = vmatpush1.msra.mxu0 %v2237
    %2270 = vmatprep.subr.mxu0 0.0
    %2271 = vmatpush1.msra.mxu0 %v2236
    %2272 = vmatprep.subr.mxu0 0.0
    %2273 = vmatpush2.msra.mxu0 0.0
    %2274 = vmatprep.subr.mxu0 0.0
    %2275 = vmatpush2.msra.mxu0 0.0
    %2276 = vmatprep.subr.mxu0 0.0
    %2277 = vmatpush2.msra.mxu0 0.0
    %2278 = vmatprep.subr.mxu0 0.0
    %2279 = vmatpush2.msra.mxu0 0.0
    %2280 = vmatprep.subr.mxu0 0.0
    %2281 = vmatpush2.msra.mxu0 0.0
    %2282 = vmatprep.subr.mxu0 0.0
    %2283 = vmatpush2.msra.mxu0 0.0
    %2284 = vmatprep.subr.mxu0 0.0
    %2285 = vmatpush2.msra.mxu0 0.0
    %2286 = vmatprep.subr.mxu0 0.0
    %2287 = vmatpush2.msra.mxu0 0.0
    %2288 = vmatprep.subr.mxu0 0.0
    %2289 = vmatpush2.msra.mxu0 0.0
    %2290 = vmatprep.subr.mxu0 0.0
    %2291 = vmatpush2.msra.mxu0 0.0
    %2292 = vmatprep.subr.mxu0 0.0
    %2293 = vmatpush2.msra.mxu0 0.0
    %2294 = vmatprep.subr.mxu0 0.0
    %2295 = vmatpush2.msra.mxu0 0.0
    %2296 = vmatprep.subr.mxu0 0.0
    %2297 = vmatpush2.msra.mxu0 0.0
    %2298 = vmatprep.subr.mxu0 0.0
    %2299 = vmatpush2.msra.mxu0 0.0
    %2300 = vmatprep.subr.mxu0 0.0
    %2301 = vmatpush2.msra.mxu0 0.0
    %2302 = vmatprep.subr.mxu0 0.0
    %2303 = vmatpush2.msra.mxu0 0.0
    %2304 = vmatprep.mubr.f32.mxu0 0.0
    %2305 = vmatmul.mubr.f32.gmra.mxu0 %v2164
    %v2306 = vpop.f32.mrf.mxu0
    %v2307 = vadd.f32 0.0, %v2306
    %v2308 = vpop.f32.mrf.mxu0
    %2309 = vdwg.mxu0
    %v2310 = vsub.f32 0.0, %v2233
    %v2311 = vmul.f32 %v2310, 1.442695
    %v2312 = vpow.pop %v2311
    %v2313 = vadd.f32 %v2312, 1.0
    %v2314 = vrcp.pop %v2313
    %v2315 = vmul.f32 1.0, %v2314
    %v2316 = vmul.f32 %v2233, %v2315
    %v2317 = vmul.f32 %v2316, %v2307
    %v2318 = vld [vmem:[%s13] sm:$0xff]
    %v2319 = vld [vmem:[%s13 + $0x8] sm:$0xff]
    %v2320 = vld [vmem:[%s13 + $0x10] sm:$0xff]
    %v2321 = vld [vmem:[%s13 + $0x18] sm:$0xff]
    %v2322 = vld [vmem:[%s13 + $0x20] sm:$0xff]
    %v2323 = vld [vmem:[%s13 + $0x28] sm:$0xff]
    %v2324 = vld [vmem:[%s13 + $0x30] sm:$0xff]
    %v2325 = vld [vmem:[%s13 + $0x38] sm:$0xff]
    %v2326 = vld [vmem:[%s13 + $0x40] sm:$0xff]
    %v2327 = vld [vmem:[%s13 + $0x48] sm:$0xff]
    %v2328 = vld [vmem:[%s13 + $0x50] sm:$0xff]
    %v2329 = vld [vmem:[%s13 + $0x58] sm:$0xff]
    %vm2330 = vcmask 785408
    %v2332 = vsel %vm2330, %v2317, 0
    %2334 = vmatprep.subr.mxu0 0.0
    %2335 = vmatpush1.msra.mxu0 0.0
    %2336 = vmatprep.subr.mxu0 0.0
    %2337 = vmatpush1.msra.mxu0 0.0
    %2338 = vmatprep.subr.mxu0 0.0
    %2339 = vmatpush1.msra.mxu0 0.0
    %2340 = vmatprep.subr.mxu0 0.0
    %2341 = vmatpush1.msra.mxu0 0.0
    %2342 = vmatprep.subr.mxu0 0.0
    %2343 = vmatpush1.msra.mxu0 %v2329
    %2344 = vmatprep.subr.mxu0 0.0
    %2345 = vmatpush1.msra.mxu0 %v2328
    %2346 = vmatprep.subr.mxu0 0.0
    %2347 = vmatpush1.msra.mxu0 %v2327
    %2348 = vmatprep.subr.mxu0 0.0
    %2349 = vmatpush1.msra.mxu0 %v2326
    %2350 = vmatprep.subr.mxu0 0.0
    %2351 = vmatpush1.msra.mxu0 %v2325
    %2352 = vmatprep.subr.mxu0 0.0
    %2353 = vmatpush1.msra.mxu0 %v2324
    %2354 = vmatprep.subr.mxu0 0.0
    %2355 = vmatpush1.msra.mxu0 %v2323
    %2356 = vmatprep.subr.mxu0 0.0
    %2357 = vmatpush1.msra.mxu0 %v2322
    %2358 = vmatprep.subr.mxu0 0.0
    %2359 = vmatpush1.msra.mxu0 %v2321
    %2360 = vmatprep.subr.mxu0 0.0
    %2361 = vmatpush1.msra.mxu0 %v2320
    %2362 = vmatprep.subr.mxu0 0.0
    %2363 = vmatpush1.msra.mxu0 %v2319
    %2364 = vmatprep.subr.mxu0 0.0
    %2365 = vmatpush1.msra.mxu0 %v2318
    %2366 = vmatprep.subr.mxu0 0.0
    %2367 = vmatpush2.msra.mxu0 0.0
    %2368 = vmatprep.subr.mxu0 0.0
    %2369 = vmatpush2.msra.mxu0 0.0
    %2370 = vmatprep.subr.mxu0 0.0
    %2371 = vmatpush2.msra.mxu0 0.0
    %2372 = vmatprep.subr.mxu0 0.0
    %2373 = vmatpush2.msra.mxu0 0.0
    %2374 = vmatprep.subr.mxu0 0.0
    %2375 = vmatpush2.msra.mxu0 0.0
    %2376 = vmatprep.subr.mxu0 0.0
    %2377 = vmatpush2.msra.mxu0 0.0
    %2378 = vmatprep.subr.mxu0 0.0
    %2379 = vmatpush2.msra.mxu0 0.0
    %2380 = vmatprep.subr.mxu0 0.0
    %2381 = vmatpush2.msra.mxu0 0.0
    %2382 = vmatprep.subr.mxu0 0.0
    %2383 = vmatpush2.msra.mxu0 0.0
    %2384 = vmatprep.subr.mxu0 0.0
    %2385 = vmatpush2.msra.mxu0 0.0
    %2386 = vmatprep.subr.mxu0 0.0
    %2387 = vmatpush2.msra.mxu0 0.0
    %2388 = vmatprep.subr.mxu0 0.0
    %2389 = vmatpush2.msra.mxu0 0.0
    %2390 = vmatprep.subr.mxu0 0.0
    %2391 = vmatpush2.msra.mxu0 0.0
    %2392 = vmatprep.subr.mxu0 0.0
    %2393 = vmatpush2.msra.mxu0 0.0
    %2394 = vmatprep.subr.mxu0 0.0
    %2395 = vmatpush2.msra.mxu0 0.0
    %2396 = vmatprep.subr.mxu0 0.0
    %2397 = vmatpush2.msra.mxu0 0.0
    %2398 = vmatprep.mubr.f32.mxu0 0.0
    %2399 = vmatmul.mubr.f32.gmra.mxu0 %v2332
    %v2400 = vpop.f32.mrf.mxu0
    %v2401 = vadd.f32 0.0, %v2400
    %v2402 = vpop.f32.mrf.mxu0
    %2403 = vdwg.mxu0
    %v2404 = vadd.f32 %v2142, %v2401
    %s2405 = scalar_lea.vmem [#allocation11], 1
    %v2406 = vld [vmem:[%s2405] sm:$0x1]
    %v2407 = vmul.f32 %v2404, %v2404
    %v2408 = vsel %vm292, %v2407, 0.0
    %2409 = vadd.xlane.f32.xlu0 %v2408
    %v2410 = vpop.xlane.xlu0 %2409
    %v2411 = vmul.f32 %v2410, %v296
    %v2412 = vadd.f32 %v2411, 1e-05
    %v2413 = vrsqrt.pop %v2412
    %v2414 = vmul.f32 %v2404, %v2413
    %v2416 = vlaneseq
    %v2417 = vshrl.u32 %v2416, 7
    %v2418 = vsub.s32 0, %v2417
    %v2419 = vrot.slane %v2406, %v2418
    %v2421 = vmul.f32 %v2414, %v2419
    %s2422 = scalar_lea.vmem %s9, 32
    %v2423 = vld [vmem:[%s2422] sm:$0xff]
    %v2424 = vld [vmem:[%s2422 + $0x8] sm:$0xff]
    %v2425 = vld [vmem:[%s2422 + $0x10] sm:$0xff]
    %v2426 = vld [vmem:[%s2422 + $0x18] sm:$0xff]
    %v2428 = vsel %vm312, %v2421, 0
    %2430 = vmatprep.subr.mxu0 0.0
    %2431 = vmatpush1.msra.mxu0 0.0
    %2432 = vmatprep.subr.mxu0 0.0
    %2433 = vmatpush1.msra.mxu0 0.0
    %2434 = vmatprep.subr.mxu0 0.0
    %2435 = vmatpush1.msra.mxu0 0.0
    %2436 = vmatprep.subr.mxu0 0.0
    %2437 = vmatpush1.msra.mxu0 0.0
    %2438 = vmatprep.subr.mxu0 0.0
    %2439 = vmatpush1.msra.mxu0 0.0
    %2440 = vmatprep.subr.mxu0 0.0
    %2441 = vmatpush1.msra.mxu0 0.0
    %2442 = vmatprep.subr.mxu0 0.0
    %2443 = vmatpush1.msra.mxu0 0.0
    %2444 = vmatprep.subr.mxu0 0.0
    %2445 = vmatpush1.msra.mxu0 0.0
    %2446 = vmatprep.subr.mxu0 0.0
    %2447 = vmatpush1.msra.mxu0 0.0
    %2448 = vmatprep.subr.mxu0 0.0
    %2449 = vmatpush1.msra.mxu0 0.0
    %2450 = vmatprep.subr.mxu0 0.0
    %2451 = vmatpush1.msra.mxu0 0.0
    %2452 = vmatprep.subr.mxu0 0.0
    %2453 = vmatpush1.msra.mxu0 0.0
    %2454 = vmatprep.subr.mxu0 0.0
    %2455 = vmatpush1.msra.mxu0 %v2426
    %2456 = vmatprep.subr.mxu0 0.0
    %2457 = vmatpush1.msra.mxu0 %v2425
    %2458 = vmatprep.subr.mxu0 0.0
    %2459 = vmatpush1.msra.mxu0 %v2424
    %2460 = vmatprep.subr.mxu0 0.0
    %2461 = vmatpush1.msra.mxu0 %v2423
    %2462 = vmatprep.subr.mxu0 0.0
    %2463 = vmatpush2.msra.mxu0 0.0
    %2464 = vmatprep.subr.mxu0 0.0
    %2465 = vmatpush2.msra.mxu0 0.0
    %2466 = vmatprep.subr.mxu0 0.0
    %2467 = vmatpush2.msra.mxu0 0.0
    %2468 = vmatprep.subr.mxu0 0.0
    %2469 = vmatpush2.msra.mxu0 0.0
    %2470 = vmatprep.subr.mxu0 0.0
    %2471 = vmatpush2.msra.mxu0 0.0
    %2472 = vmatprep.subr.mxu0 0.0
    %2473 = vmatpush2.msra.mxu0 0.0
    %2474 = vmatprep.subr.mxu0 0.0
    %2475 = vmatpush2.msra.mxu0 0.0
    %2476 = vmatprep.subr.mxu0 0.0
    %2477 = vmatpush2.msra.mxu0 0.0
    %2478 = vmatprep.subr.mxu0 0.0
    %2479 = vmatpush2.msra.mxu0 0.0
    %2480 = vmatprep.subr.mxu0 0.0
    %2481 = vmatpush2.msra.mxu0 0.0
    %2482 = vmatprep.subr.mxu0 0.0
    %2483 = vmatpush2.msra.mxu0 0.0
    %2484 = vmatprep.subr.mxu0 0.0
    %2485 = vmatpush2.msra.mxu0 0.0
    %2486 = vmatprep.subr.mxu0 0.0
    %2487 = vmatpush2.msra.mxu0 0.0
    %2488 = vmatprep.subr.mxu0 0.0
    %2489 = vmatpush2.msra.mxu0 0.0
    %2490 = vmatprep.subr.mxu0 0.0
    %2491 = vmatpush2.msra.mxu0 0.0
    %2492 = vmatprep.subr.mxu0 0.0
    %2493 = vmatpush2.msra.mxu0 0.0
    %2494 = vmatprep.mubr.f32.mxu0 0.0
    %2495 = vmatmul.mubr.f32.gmra.mxu0 %v2428
    %v2496 = vpop.f32.mrf.mxu0
    %v2497 = vadd.f32 0.0, %v2496
    %v2498 = vpop.f32.mrf.mxu0
    %2499 = vdwg.mxu0
    %v2500 = vmul.f32 %v2497, %v389
    %v2502 = vsel %vm312, %v2497, 0
    %2504 = vmatprep.subr.mxu0 0.0
    %2505 = vmatpush1.msra.mxu0 0.0
    %2506 = vmatprep.subr.mxu0 0.0
    %2507 = vmatpush1.msra.mxu0 0.0
    %2508 = vmatprep.subr.mxu0 0.0
    %2509 = vmatpush1.msra.mxu0 0.0
    %2510 = vmatprep.subr.mxu0 0.0
    %2511 = vmatpush1.msra.mxu0 0.0
    %2512 = vmatprep.subr.mxu0 0.0
    %2513 = vmatpush1.msra.mxu0 0.0
    %2514 = vmatprep.subr.mxu0 0.0
    %2515 = vmatpush1.msra.mxu0 0.0
    %2516 = vmatprep.subr.mxu0 0.0
    %2517 = vmatpush1.msra.mxu0 0.0
    %2518 = vmatprep.subr.mxu0 0.0
    %2519 = vmatpush1.msra.mxu0 0.0
    %2520 = vmatprep.subr.mxu0 0.0
    %2521 = vmatpush1.msra.mxu0 0.0
    %2522 = vmatprep.subr.mxu0 0.0
    %2523 = vmatpush1.msra.mxu0 0.0
    %2524 = vmatprep.subr.mxu0 0.0
    %2525 = vmatpush1.msra.mxu0 0.0
    %2526 = vmatprep.subr.mxu0 0.0
    %2527 = vmatpush1.msra.mxu0 0.0
    %2528 = vmatprep.subr.mxu0 0.0
    %2529 = vmatpush1.msra.mxu0 %v284
    %2530 = vmatprep.subr.mxu0 0.0
    %2531 = vmatpush1.msra.mxu0 %v283
    %2532 = vmatprep.subr.mxu0 0.0
    %2533 = vmatpush1.msra.mxu0 %v282
    %2534 = vmatprep.subr.mxu0 0.0
    %2535 = vmatpush1.msra.mxu0 %v281
    %2536 = vmatprep.subr.mxu0 0.0
    %2537 = vmatpush2.msra.mxu0 0.0
    %2538 = vmatprep.subr.mxu0 0.0
    %2539 = vmatpush2.msra.mxu0 0.0
    %2540 = vmatprep.subr.mxu0 0.0
    %2541 = vmatpush2.msra.mxu0 0.0
    %2542 = vmatprep.subr.mxu0 0.0
    %2543 = vmatpush2.msra.mxu0 0.0
    %2544 = vmatprep.subr.mxu0 0.0
    %2545 = vmatpush2.msra.mxu0 0.0
    %2546 = vmatprep.subr.mxu0 0.0
    %2547 = vmatpush2.msra.mxu0 0.0
    %2548 = vmatprep.subr.mxu0 0.0
    %2549 = vmatpush2.msra.mxu0 0.0
    %2550 = vmatprep.subr.mxu0 0.0
    %2551 = vmatpush2.msra.mxu0 0.0
    %2552 = vmatprep.subr.mxu0 0.0
    %2553 = vmatpush2.msra.mxu0 0.0
    %2554 = vmatprep.subr.mxu0 0.0
    %2555 = vmatpush2.msra.mxu0 0.0
    %2556 = vmatprep.subr.mxu0 0.0
    %2557 = vmatpush2.msra.mxu0 0.0
    %2558 = vmatprep.subr.mxu0 0.0
    %2559 = vmatpush2.msra.mxu0 0.0
    %2560 = vmatprep.subr.mxu0 0.0
    %2561 = vmatpush2.msra.mxu0 0.0
    %2562 = vmatprep.subr.mxu0 0.0
    %2563 = vmatpush2.msra.mxu0 0.0
    %2564 = vmatprep.subr.mxu0 0.0
    %2565 = vmatpush2.msra.mxu0 0.0
    %2566 = vmatprep.subr.mxu0 0.0
    %2567 = vmatpush2.msra.mxu0 0.0
    %2568 = vmatprep.mubr.f32.mxu0 0.0
    %2569 = vmatmul.mubr.f32.gmra.mxu0 %v2502
    %v2570 = vpop.f32.mrf.mxu0
    %v2571 = vadd.f32 0.0, %v2570
    %v2572 = vpop.f32.mrf.mxu0
    %2573 = vdwg.mxu0
    %v2574 = vmul.f32 %v2571, %v467
    %v2575 = vadd.f32 %v2500, %v2574
    %v2576 = vmul.f32 %v2497, %v472
    %2577 = vrot.lane.b32.xlu0 %v2497, 96
    %v2578 = vpop.permute.xlu0 %2577
    %v2579 = vsel %vm477, %v2578, 0
    %2581 = vmatprep.subr.mxu0 0.0
    %2582 = vmatpush1.msra.mxu0 0.0
    %2583 = vmatprep.subr.mxu0 0.0
    %2584 = vmatpush1.msra.mxu0 0.0
    %2585 = vmatprep.subr.mxu0 0.0
    %2586 = vmatpush1.msra.mxu0 0.0
    %2587 = vmatprep.subr.mxu0 0.0
    %2588 = vmatpush1.msra.mxu0 0.0
    %2589 = vmatprep.subr.mxu0 0.0
    %2590 = vmatpush1.msra.mxu0 0.0
    %2591 = vmatprep.subr.mxu0 0.0
    %2592 = vmatpush1.msra.mxu0 0.0
    %2593 = vmatprep.subr.mxu0 0.0
    %2594 = vmatpush1.msra.mxu0 0.0
    %2595 = vmatprep.subr.mxu0 0.0
    %2596 = vmatpush1.msra.mxu0 0.0
    %2597 = vmatprep.subr.mxu0 0.0
    %2598 = vmatpush1.msra.mxu0 0.0
    %2599 = vmatprep.subr.mxu0 0.0
    %2600 = vmatpush1.msra.mxu0 0.0
    %2601 = vmatprep.subr.mxu0 0.0
    %2602 = vmatpush1.msra.mxu0 0.0
    %2603 = vmatprep.subr.mxu0 0.0
    %2604 = vmatpush1.msra.mxu0 0.0
    %2605 = vmatprep.subr.mxu0 0.0
    %2606 = vmatpush1.msra.mxu0 0.0
    %2607 = vmatprep.subr.mxu0 0.0
    %2608 = vmatpush1.msra.mxu0 0.0
    %2609 = vmatprep.subr.mxu0 0.0
    %2610 = vmatpush1.msra.mxu0 %v286
    %2611 = vmatprep.subr.mxu0 0.0
    %2612 = vmatpush1.msra.mxu0 %v285
    %2613 = vmatprep.subr.mxu0 0.0
    %2614 = vmatpush2.msra.mxu0 0.0
    %2615 = vmatprep.subr.mxu0 0.0
    %2616 = vmatpush2.msra.mxu0 0.0
    %2617 = vmatprep.subr.mxu0 0.0
    %2618 = vmatpush2.msra.mxu0 0.0
    %2619 = vmatprep.subr.mxu0 0.0
    %2620 = vmatpush2.msra.mxu0 0.0
    %2621 = vmatprep.subr.mxu0 0.0
    %2622 = vmatpush2.msra.mxu0 0.0
    %2623 = vmatprep.subr.mxu0 0.0
    %2624 = vmatpush2.msra.mxu0 0.0
    %2625 = vmatprep.subr.mxu0 0.0
    %2626 = vmatpush2.msra.mxu0 0.0
    %2627 = vmatprep.subr.mxu0 0.0
    %2628 = vmatpush2.msra.mxu0 0.0
    %2629 = vmatprep.subr.mxu0 0.0
    %2630 = vmatpush2.msra.mxu0 0.0
    %2631 = vmatprep.subr.mxu0 0.0
    %2632 = vmatpush2.msra.mxu0 0.0
    %2633 = vmatprep.subr.mxu0 0.0
    %2634 = vmatpush2.msra.mxu0 0.0
    %2635 = vmatprep.subr.mxu0 0.0
    %2636 = vmatpush2.msra.mxu0 0.0
    %2637 = vmatprep.subr.mxu0 0.0
    %2638 = vmatpush2.msra.mxu0 0.0
    %2639 = vmatprep.subr.mxu0 0.0
    %2640 = vmatpush2.msra.mxu0 0.0
    %2641 = vmatprep.subr.mxu0 0.0
    %2642 = vmatpush2.msra.mxu0 0.0
    %2643 = vmatprep.subr.mxu0 0.0
    %2644 = vmatpush2.msra.mxu0 0.0
    %2645 = vmatprep.mubr.f32.mxu0 0.0
    %2646 = vmatmul.mubr.f32.gmra.mxu0 %v2579
    %v2647 = vpop.f32.mrf.mxu0
    %v2648 = vadd.f32 0.0, %v2647
    %v2649 = vpop.f32.mrf.mxu0
    %2650 = vdwg.mxu0
    %v2651 = vmul.f32 %v2648, %v467
    %2653 = vrot.lane.b32.xlu0 %v2651, 32
    %v2654 = vpop.permute.xlu0 %2653
    %v2656 = vadd.f32 %v2576, %v2654
    %s2657 = scalar_lea.vmem %s16, 32
    %v2658 = vld [vmem:[%s2657] sm:$0xff]
    %v2659 = vld [vmem:[%s2657 + $0x8] sm:$0xff]
    %v2660 = vld [vmem:[%s2657 + $0x10] sm:$0xff]
    %v2661 = vld [vmem:[%s2657 + $0x18] sm:$0xff]
    %s2662 = scalar_lea.vmem [#allocation17], 32
    %v2663 = vld [vmem:[%s2662] sm:$0xff]
    %v2664 = vld [vmem:[%s2662 + $0x8] sm:$0xff]
    %v2665 = vld [vmem:[%s2662 + $0x10] sm:$0xff]
    %v2666 = vld [vmem:[%s2662 + $0x18] sm:$0xff]
    %v2669 = vunpack.c.l.s4 1966171168
    %v2670 = vunpack.c.0.s8 %v2669
    %v2671 = vlaneseq
    %v2672 = vshrl.u32 %v2671, 7
    %v2673 = vsub.s32 %v2670, %v2672
    %v2674 = vrot.slane %v2656, %v2673
    %v2675 = vcombine.high %v2674, %v2674
    %v2677 = vunpack.c.l.s4 1966171168
    %v2678 = vunpack.c.0.s8 %v2677
    %v2679 = vlaneseq
    %v2680 = vshrl.u32 %v2679, 7
    %v2681 = vsub.s32 %v2678, %v2680
    %v2682 = vrot.slane %v2674, %v2681
    %v2684 = vunpack.c.l.s4 1966171168
    %v2685 = vunpack.c.0.s8 %v2684
    %v2686 = vlaneseq
    %v2687 = vshrl.u32 %v2686, 7
    %v2688 = vsub.s32 %v2685, %v2687
    %v2689 = vrot.slane %v2675, %v2688
    %v2690 = vlaneseq
    %v2691 = vshrl.u32 %v2690, 7
    %v2692 = vsub.s32 0, %v2691
    %v2693 = vrot.slane %v2682, %v2692
    %v2694 = vlaneseq
    %v2695 = vshrl.u32 %v2694, 7
    %v2696 = vsub.s32 0, %v2695
    %v2697 = vrot.slane %v2689, %v2696
    %2704 = vrot.lane.b32.xlu0 %v2658, 32
    %v2705 = vpop.permute.xlu0 %2704
    %2706 = vrot.lane.b32.xlu0 %v2659, 32
    %v2707 = vpop.permute.xlu0 %2706
    %2708 = vrot.lane.b32.xlu0 %v2660, 32
    %v2709 = vpop.permute.xlu0 %2708
    %2710 = vrot.lane.b32.xlu0 %v2661, 32
    %v2711 = vpop.permute.xlu0 %2710
    %v2716 = vsel %vm565, %v2693, %v2705
    %v2717 = vsel %vm566, %v2693, %v2707
    %v2718 = vsel %vm565, %v2697, %v2709
    %v2719 = vsel %vm566, %v2697, %v2711
    %v2721 = vunpack.c.l.s4 1966171168
    %v2722 = vunpack.c.0.s8 %v2721
    %v2723 = vlaneseq
    %v2724 = vshrl.u32 %v2723, 7
    %v2725 = vsub.s32 %v2722, %v2724
    %v2726 = vrot.slane %v2497, %v2725
    %v2727 = vcombine.high %v2726, %v2726
    %v2729 = vunpack.c.l.s4 1966171168
    %v2730 = vunpack.c.0.s8 %v2729
    %v2731 = vlaneseq
    %v2732 = vshrl.u32 %v2731, 7
    %v2733 = vsub.s32 %v2730, %v2732
    %v2734 = vrot.slane %v2726, %v2733
    %v2736 = vunpack.c.l.s4 1966171168
    %v2737 = vunpack.c.0.s8 %v2736
    %v2738 = vlaneseq
    %v2739 = vshrl.u32 %v2738, 7
    %v2740 = vsub.s32 %v2737, %v2739
    %v2741 = vrot.slane %v2727, %v2740
    %v2742 = vlaneseq
    %v2743 = vshrl.u32 %v2742, 7
    %v2744 = vsub.s32 0, %v2743
    %v2745 = vrot.slane %v2734, %v2744
    %v2746 = vlaneseq
    %v2747 = vshrl.u32 %v2746, 7
    %v2748 = vsub.s32 0, %v2747
    %v2749 = vrot.slane %v2741, %v2748
    %2756 = vrot.lane.b32.xlu0 %v2663, 48
    %v2757 = vpop.permute.xlu0 %2756
    %2758 = vrot.lane.b32.xlu0 %v2664, 48
    %v2759 = vpop.permute.xlu0 %2758
    %2760 = vrot.lane.b32.xlu0 %v2665, 48
    %v2761 = vpop.permute.xlu0 %2760
    %2762 = vrot.lane.b32.xlu0 %v2666, 48
    %v2763 = vpop.permute.xlu0 %2762
    %v2768 = vsel %vm565, %v2745, %v2757
    %v2769 = vsel %vm566, %v2745, %v2759
    %v2770 = vsel %vm565, %v2749, %v2761
    %v2771 = vsel %vm566, %v2749, %v2763
    %2776 = vrot.lane.b32.xlu0 %v2716, 96
    %v2777 = vpop.permute.xlu0 %2776
    %2778 = vrot.lane.b32.xlu0 %v2717, 96
    %v2779 = vpop.permute.xlu0 %2778
    %2780 = vrot.lane.b32.xlu0 %v2718, 96
    %v2781 = vpop.permute.xlu0 %2780
    %2782 = vrot.lane.b32.xlu0 %v2719, 96
    %v2783 = vpop.permute.xlu0 %2782
    %s2788 = scalar_lea.vmem [#allocation19], 32
    %2789 = vst.msk [vmem:[%s2788] sm:$0xff] %vm477, %v2777
    %2790 = vst.msk [vmem:[%s2788 + $0x8] sm:$0xff] %vm477, %v2779
    %2791 = vst.msk [vmem:[%s2788 + $0x10] sm:$0xff] %vm477, %v2781
    %2792 = vst.msk [vmem:[%s2788 + $0x18] sm:$0xff] %vm477, %v2783
    %2797 = vrot.lane.b32.xlu0 %v2768, 80
    %v2798 = vpop.permute.xlu0 %2797
    %2799 = vrot.lane.b32.xlu0 %v2769, 80
    %v2800 = vpop.permute.xlu0 %2799
    %2801 = vrot.lane.b32.xlu0 %v2770, 80
    %v2802 = vpop.permute.xlu0 %2801
    %2803 = vrot.lane.b32.xlu0 %v2771, 80
    %v2804 = vpop.permute.xlu0 %2803
    %s2809 = scalar_lea.vmem [#allocation21], 32
    %2810 = vst.msk [vmem:[%s2809] sm:$0xff] %vm477, %v2798
    %2811 = vst.msk [vmem:[%s2809 + $0x8] sm:$0xff] %vm477, %v2800
    %2812 = vst.msk [vmem:[%s2809 + $0x10] sm:$0xff] %vm477, %v2802
    %2813 = vst.msk [vmem:[%s2809 + $0x18] sm:$0xff] %vm477, %v2804
    %v2815 = vsel %vm712, %v2575, 0
    %v2817 = vsel %vm712, %v2777, 0
    %v2819 = vsel %vm712, %v2779, 0
    %2821 = vmatprep.subr.mxu0 0.0
    %2822 = vmatpush1.xpose.msra.mxu0 0.0
    %2823 = vmatprep.subr.mxu0 0.0
    %2824 = vmatpush1.xpose.msra.mxu0 0.0
    %2825 = vmatprep.subr.mxu0 0.0
    %2826 = vmatpush1.xpose.msra.mxu0 0.0
    %2827 = vmatprep.subr.mxu0 0.0
    %2828 = vmatpush1.xpose.msra.mxu0 0.0
    %2829 = vmatprep.subr.mxu0 0.0
    %2830 = vmatpush1.xpose.msra.mxu0 0.0
    %2831 = vmatprep.subr.mxu0 0.0
    %2832 = vmatpush1.xpose.msra.mxu0 0.0
    %2833 = vmatprep.subr.mxu0 0.0
    %2834 = vmatpush1.xpose.msra.mxu0 0.0
    %2835 = vmatprep.subr.mxu0 0.0
    %2836 = vmatpush1.xpose.msra.mxu0 0.0
    %2837 = vmatprep.subr.mxu0 0.0
    %2838 = vmatpush1.xpose.msra.mxu0 0.0
    %2839 = vmatprep.subr.mxu0 0.0
    %2840 = vmatpush1.xpose.msra.mxu0 0.0
    %2841 = vmatprep.subr.mxu0 0.0
    %2842 = vmatpush1.xpose.msra.mxu0 0.0
    %2843 = vmatprep.subr.mxu0 0.0
    %2844 = vmatpush1.xpose.msra.mxu0 0.0
    %2845 = vmatprep.subr.mxu0 0.0
    %2846 = vmatpush1.xpose.msra.mxu0 0.0
    %2847 = vmatprep.subr.mxu0 0.0
    %2848 = vmatpush1.xpose.msra.mxu0 0.0
    %2849 = vmatprep.subr.mxu0 0.0
    %2850 = vmatpush1.xpose.msra.mxu0 %v2819
    %2851 = vmatprep.subr.mxu0 0.0
    %2852 = vmatpush1.xpose.msra.mxu0 %v2817
    %2853 = vmatprep.subr.mxu0 0.0
    %2854 = vmatpush2.xpose.msra.mxu0 0.0
    %2855 = vmatprep.subr.mxu0 0.0
    %2856 = vmatpush2.xpose.msra.mxu0 0.0
    %2857 = vmatprep.subr.mxu0 0.0
    %2858 = vmatpush2.xpose.msra.mxu0 0.0
    %2859 = vmatprep.subr.mxu0 0.0
    %2860 = vmatpush2.xpose.msra.mxu0 0.0
    %2861 = vmatprep.subr.mxu0 0.0
    %2862 = vmatpush2.xpose.msra.mxu0 0.0
    %2863 = vmatprep.subr.mxu0 0.0
    %2864 = vmatpush2.xpose.msra.mxu0 0.0
    %2865 = vmatprep.subr.mxu0 0.0
    %2866 = vmatpush2.xpose.msra.mxu0 0.0
    %2867 = vmatprep.subr.mxu0 0.0
    %2868 = vmatpush2.xpose.msra.mxu0 0.0
    %2869 = vmatprep.subr.mxu0 0.0
    %2870 = vmatpush2.xpose.msra.mxu0 0.0
    %2871 = vmatprep.subr.mxu0 0.0
    %2872 = vmatpush2.xpose.msra.mxu0 0.0
    %2873 = vmatprep.subr.mxu0 0.0
    %2874 = vmatpush2.xpose.msra.mxu0 0.0
    %2875 = vmatprep.subr.mxu0 0.0
    %2876 = vmatpush2.xpose.msra.mxu0 0.0
    %2877 = vmatprep.subr.mxu0 0.0
    %2878 = vmatpush2.xpose.msra.mxu0 0.0
    %2879 = vmatprep.subr.mxu0 0.0
    %2880 = vmatpush2.xpose.msra.mxu0 0.0
    %2881 = vmatprep.subr.mxu0 0.0
    %2882 = vmatpush2.xpose.msra.mxu0 0.0
    %2883 = vmatprep.subr.mxu0 0.0
    %2884 = vmatpush2.xpose.msra.mxu0 0.0
    %2885 = vmatprep.mubr.f32.mxu0 0.0
    %2886 = vmatmul.mubr.f32.gmra.mxu0 %v2815
    %v2887 = vpop.f32.mrf.mxu0
    %v2888 = vadd.f32 0.0, %v2887
    %v2889 = vpop.f32.mrf.mxu0
    %2890 = vdwg.mxu0
    %v2891 = vmul.f32 %v2888, 0.35355338
    %v2892 = vsel %vm791, %v2891, -1e+30
    %v2893 = vsel %vm793, %v2892, -inf
    %2894 = vmax.xlane.f32.xlu0 %v2893
    %v2895 = vpop.xlane.xlu0 %2894
    %v2896 = vsub.f32 %v2892, %v2895
    %v2897 = vmul.f32 %v2896, 1.442695
    %v2898 = vpow.pop %v2897
    %v2899 = vsel %vm793, %v2898, 0.0
    %2900 = vadd.xlane.f32.xlu0 %v2899
    %v2901 = vpop.xlane.xlu0 %2900
    %v2902 = vrcp.pop %v2901
    %v2903 = vmul.f32 %v2898, %v2902
    %v2905 = vsel %vm477, %v2903, 0
    %2907 = vmatprep.subr.mxu0 0.0
    %2908 = vmatpush1.msra.mxu0 0.0
    %2909 = vmatprep.subr.mxu0 0.0
    %2910 = vmatpush1.msra.mxu0 0.0
    %2911 = vmatprep.subr.mxu0 0.0
    %2912 = vmatpush1.msra.mxu0 0.0
    %2913 = vmatprep.subr.mxu0 0.0
    %2914 = vmatpush1.msra.mxu0 0.0
    %2915 = vmatprep.subr.mxu0 0.0
    %2916 = vmatpush1.msra.mxu0 0.0
    %2917 = vmatprep.subr.mxu0 0.0
    %2918 = vmatpush1.msra.mxu0 0.0
    %2919 = vmatprep.subr.mxu0 0.0
    %2920 = vmatpush1.msra.mxu0 0.0
    %2921 = vmatprep.subr.mxu0 0.0
    %2922 = vmatpush1.msra.mxu0 0.0
    %2923 = vmatprep.subr.mxu0 0.0
    %2924 = vmatpush1.msra.mxu0 0.0
    %2925 = vmatprep.subr.mxu0 0.0
    %2926 = vmatpush1.msra.mxu0 0.0
    %2927 = vmatprep.subr.mxu0 0.0
    %2928 = vmatpush1.msra.mxu0 0.0
    %2929 = vmatprep.subr.mxu0 0.0
    %2930 = vmatpush1.msra.mxu0 0.0
    %2931 = vmatprep.subr.mxu0 0.0
    %2932 = vmatpush1.msra.mxu0 0.0
    %2933 = vmatprep.subr.mxu0 0.0
    %2934 = vmatpush1.msra.mxu0 0.0
    %2935 = vmatprep.subr.mxu0 0.0
    %2936 = vmatpush1.msra.mxu0 %v2800
    %2937 = vmatprep.subr.mxu0 0.0
    %2938 = vmatpush1.msra.mxu0 %v2798
    %2939 = vmatprep.subr.mxu0 0.0
    %2940 = vmatpush2.msra.mxu0 0.0
    %2941 = vmatprep.subr.mxu0 0.0
    %2942 = vmatpush2.msra.mxu0 0.0
    %2943 = vmatprep.subr.mxu0 0.0
    %2944 = vmatpush2.msra.mxu0 0.0
    %2945 = vmatprep.subr.mxu0 0.0
    %2946 = vmatpush2.msra.mxu0 0.0
    %2947 = vmatprep.subr.mxu0 0.0
    %2948 = vmatpush2.msra.mxu0 0.0
    %2949 = vmatprep.subr.mxu0 0.0
    %2950 = vmatpush2.msra.mxu0 0.0
    %2951 = vmatprep.subr.mxu0 0.0
    %2952 = vmatpush2.msra.mxu0 0.0
    %2953 = vmatprep.subr.mxu0 0.0
    %2954 = vmatpush2.msra.mxu0 0.0
    %2955 = vmatprep.subr.mxu0 0.0
    %2956 = vmatpush2.msra.mxu0 0.0
    %2957 = vmatprep.subr.mxu0 0.0
    %2958 = vmatpush2.msra.mxu0 0.0
    %2959 = vmatprep.subr.mxu0 0.0
    %2960 = vmatpush2.msra.mxu0 0.0
    %2961 = vmatprep.subr.mxu0 0.0
    %2962 = vmatpush2.msra.mxu0 0.0
    %2963 = vmatprep.subr.mxu0 0.0
    %2964 = vmatpush2.msra.mxu0 0.0
    %2965 = vmatprep.subr.mxu0 0.0
    %2966 = vmatpush2.msra.mxu0 0.0
    %2967 = vmatprep.subr.mxu0 0.0
    %2968 = vmatpush2.msra.mxu0 0.0
    %2969 = vmatprep.subr.mxu0 0.0
    %2970 = vmatpush2.msra.mxu0 0.0
    %2971 = vmatprep.mubr.f32.mxu0 0.0
    %2972 = vmatmul.mubr.f32.gmra.mxu0 %v2905
    %v2973 = vpop.f32.mrf.mxu0
    %v2974 = vadd.f32 0.0, %v2973
    %v2975 = vpop.f32.mrf.mxu0
    %2976 = vdwg.mxu0
    %2977 = vrot.lane.b32.xlu0 %v2575, 120
    %v2978 = vpop.permute.xlu0 %2977
    %v2979 = vsel %vm712, %v2978, 0
    %2981 = vmatprep.subr.mxu0 0.0
    %2982 = vmatpush1.xpose.msra.mxu0 0.0
    %2983 = vmatprep.subr.mxu0 0.0
    %2984 = vmatpush1.xpose.msra.mxu0 0.0
    %2985 = vmatprep.subr.mxu0 0.0
    %2986 = vmatpush1.xpose.msra.mxu0 0.0
    %2987 = vmatprep.subr.mxu0 0.0
    %2988 = vmatpush1.xpose.msra.mxu0 0.0
    %2989 = vmatprep.subr.mxu0 0.0
    %2990 = vmatpush1.xpose.msra.mxu0 0.0
    %2991 = vmatprep.subr.mxu0 0.0
    %2992 = vmatpush1.xpose.msra.mxu0 0.0
    %2993 = vmatprep.subr.mxu0 0.0
    %2994 = vmatpush1.xpose.msra.mxu0 0.0
    %2995 = vmatprep.subr.mxu0 0.0
    %2996 = vmatpush1.xpose.msra.mxu0 0.0
    %2997 = vmatprep.subr.mxu0 0.0
    %2998 = vmatpush1.xpose.msra.mxu0 0.0
    %2999 = vmatprep.subr.mxu0 0.0
    %3000 = vmatpush1.xpose.msra.mxu0 0.0
    %3001 = vmatprep.subr.mxu0 0.0
    %3002 = vmatpush1.xpose.msra.mxu0 0.0
    %3003 = vmatprep.subr.mxu0 0.0
    %3004 = vmatpush1.xpose.msra.mxu0 0.0
    %3005 = vmatprep.subr.mxu0 0.0
    %3006 = vmatpush1.xpose.msra.mxu0 0.0
    %3007 = vmatprep.subr.mxu0 0.0
    %3008 = vmatpush1.xpose.msra.mxu0 0.0
    %3009 = vmatprep.subr.mxu0 0.0
    %3010 = vmatpush1.xpose.msra.mxu0 %v2819
    %3011 = vmatprep.subr.mxu0 0.0
    %3012 = vmatpush1.xpose.msra.mxu0 %v2817
    %3013 = vmatprep.subr.mxu0 0.0
    %3014 = vmatpush2.xpose.msra.mxu0 0.0
    %3015 = vmatprep.subr.mxu0 0.0
    %3016 = vmatpush2.xpose.msra.mxu0 0.0
    %3017 = vmatprep.subr.mxu0 0.0
    %3018 = vmatpush2.xpose.msra.mxu0 0.0
    %3019 = vmatprep.subr.mxu0 0.0
    %3020 = vmatpush2.xpose.msra.mxu0 0.0
    %3021 = vmatprep.subr.mxu0 0.0
    %3022 = vmatpush2.xpose.msra.mxu0 0.0
    %3023 = vmatprep.subr.mxu0 0.0
    %3024 = vmatpush2.xpose.msra.mxu0 0.0
    %3025 = vmatprep.subr.mxu0 0.0
    %3026 = vmatpush2.xpose.msra.mxu0 0.0
    %3027 = vmatprep.subr.mxu0 0.0
    %3028 = vmatpush2.xpose.msra.mxu0 0.0
    %3029 = vmatprep.subr.mxu0 0.0
    %3030 = vmatpush2.xpose.msra.mxu0 0.0
    %3031 = vmatprep.subr.mxu0 0.0
    %3032 = vmatpush2.xpose.msra.mxu0 0.0
    %3033 = vmatprep.subr.mxu0 0.0
    %3034 = vmatpush2.xpose.msra.mxu0 0.0
    %3035 = vmatprep.subr.mxu0 0.0
    %3036 = vmatpush2.xpose.msra.mxu0 0.0
    %3037 = vmatprep.subr.mxu0 0.0
    %3038 = vmatpush2.xpose.msra.mxu0 0.0
    %3039 = vmatprep.subr.mxu0 0.0
    %3040 = vmatpush2.xpose.msra.mxu0 0.0
    %3041 = vmatprep.subr.mxu0 0.0
    %3042 = vmatpush2.xpose.msra.mxu0 0.0
    %3043 = vmatprep.subr.mxu0 0.0
    %3044 = vmatpush2.xpose.msra.mxu0 0.0
    %3045 = vmatprep.mubr.f32.mxu0 0.0
    %3046 = vmatmul.mubr.f32.gmra.mxu0 %v2979
    %v3047 = vpop.f32.mrf.mxu0
    %v3048 = vadd.f32 0.0, %v3047
    %v3049 = vpop.f32.mrf.mxu0
    %3050 = vdwg.mxu0
    %v3051 = vmul.f32 %v3048, 0.35355338
    %v3052 = vsel %vm791, %v3051, -1e+30
    %v3053 = vsel %vm793, %v3052, -inf
    %3054 = vmax.xlane.f32.xlu0 %v3053
    %v3055 = vpop.xlane.xlu0 %3054
    %v3056 = vsub.f32 %v3052, %v3055
    %v3057 = vmul.f32 %v3056, 1.442695
    %v3058 = vpow.pop %v3057
    %v3059 = vsel %vm793, %v3058, 0.0
    %3060 = vadd.xlane.f32.xlu0 %v3059
    %v3061 = vpop.xlane.xlu0 %3060
    %v3062 = vrcp.pop %v3061
    %v3063 = vmul.f32 %v3058, %v3062
    %v3065 = vsel %vm477, %v3063, 0
    %3067 = vmatprep.subr.mxu0 0.0
    %3068 = vmatpush1.msra.mxu0 0.0
    %3069 = vmatprep.subr.mxu0 0.0
    %3070 = vmatpush1.msra.mxu0 0.0
    %3071 = vmatprep.subr.mxu0 0.0
    %3072 = vmatpush1.msra.mxu0 0.0
    %3073 = vmatprep.subr.mxu0 0.0
    %3074 = vmatpush1.msra.mxu0 0.0
    %3075 = vmatprep.subr.mxu0 0.0
    %3076 = vmatpush1.msra.mxu0 0.0
    %3077 = vmatprep.subr.mxu0 0.0
    %3078 = vmatpush1.msra.mxu0 0.0
    %3079 = vmatprep.subr.mxu0 0.0
    %3080 = vmatpush1.msra.mxu0 0.0
    %3081 = vmatprep.subr.mxu0 0.0
    %3082 = vmatpush1.msra.mxu0 0.0
    %3083 = vmatprep.subr.mxu0 0.0
    %3084 = vmatpush1.msra.mxu0 0.0
    %3085 = vmatprep.subr.mxu0 0.0
    %3086 = vmatpush1.msra.mxu0 0.0
    %3087 = vmatprep.subr.mxu0 0.0
    %3088 = vmatpush1.msra.mxu0 0.0
    %3089 = vmatprep.subr.mxu0 0.0
    %3090 = vmatpush1.msra.mxu0 0.0
    %3091 = vmatprep.subr.mxu0 0.0
    %3092 = vmatpush1.msra.mxu0 0.0
    %3093 = vmatprep.subr.mxu0 0.0
    %3094 = vmatpush1.msra.mxu0 0.0
    %3095 = vmatprep.subr.mxu0 0.0
    %3096 = vmatpush1.msra.mxu0 %v2800
    %3097 = vmatprep.subr.mxu0 0.0
    %3098 = vmatpush1.msra.mxu0 %v2798
    %3099 = vmatprep.subr.mxu0 0.0
    %3100 = vmatpush2.msra.mxu0 0.0
    %3101 = vmatprep.subr.mxu0 0.0
    %3102 = vmatpush2.msra.mxu0 0.0
    %3103 = vmatprep.subr.mxu0 0.0
    %3104 = vmatpush2.msra.mxu0 0.0
    %3105 = vmatprep.subr.mxu0 0.0
    %3106 = vmatpush2.msra.mxu0 0.0
    %3107 = vmatprep.subr.mxu0 0.0
    %3108 = vmatpush2.msra.mxu0 0.0
    %3109 = vmatprep.subr.mxu0 0.0
    %3110 = vmatpush2.msra.mxu0 0.0
    %3111 = vmatprep.subr.mxu0 0.0
    %3112 = vmatpush2.msra.mxu0 0.0
    %3113 = vmatprep.subr.mxu0 0.0
    %3114 = vmatpush2.msra.mxu0 0.0
    %3115 = vmatprep.subr.mxu0 0.0
    %3116 = vmatpush2.msra.mxu0 0.0
    %3117 = vmatprep.subr.mxu0 0.0
    %3118 = vmatpush2.msra.mxu0 0.0
    %3119 = vmatprep.subr.mxu0 0.0
    %3120 = vmatpush2.msra.mxu0 0.0
    %3121 = vmatprep.subr.mxu0 0.0
    %3122 = vmatpush2.msra.mxu0 0.0
    %3123 = vmatprep.subr.mxu0 0.0
    %3124 = vmatpush2.msra.mxu0 0.0
    %3125 = vmatprep.subr.mxu0 0.0
    %3126 = vmatpush2.msra.mxu0 0.0
    %3127 = vmatprep.subr.mxu0 0.0
    %3128 = vmatpush2.msra.mxu0 0.0
    %3129 = vmatprep.subr.mxu0 0.0
    %3130 = vmatpush2.msra.mxu0 0.0
    %3131 = vmatprep.mubr.f32.mxu0 0.0
    %3132 = vmatmul.mubr.f32.gmra.mxu0 %v3065
    %v3133 = vpop.f32.mrf.mxu0
    %v3134 = vadd.f32 0.0, %v3133
    %v3135 = vpop.f32.mrf.mxu0
    %3136 = vdwg.mxu0
    %3137 = vrot.lane.b32.xlu0 %v2575, 112
    %v3138 = vpop.permute.xlu0 %3137
    %3139 = vrot.lane.b32.xlu0 %v2716, 88
    %v3140 = vpop.permute.xlu0 %3139
    %3141 = vrot.lane.b32.xlu0 %v2717, 88
    %v3142 = vpop.permute.xlu0 %3141
    %v3143 = vsel %vm712, %v3138, 0
    %v3145 = vsel %vm712, %v3140, 0
    %v3147 = vsel %vm712, %v3142, 0
    %3149 = vmatprep.subr.mxu0 0.0
    %3150 = vmatpush1.xpose.msra.mxu0 0.0
    %3151 = vmatprep.subr.mxu0 0.0
    %3152 = vmatpush1.xpose.msra.mxu0 0.0
    %3153 = vmatprep.subr.mxu0 0.0
    %3154 = vmatpush1.xpose.msra.mxu0 0.0
    %3155 = vmatprep.subr.mxu0 0.0
    %3156 = vmatpush1.xpose.msra.mxu0 0.0
    %3157 = vmatprep.subr.mxu0 0.0
    %3158 = vmatpush1.xpose.msra.mxu0 0.0
    %3159 = vmatprep.subr.mxu0 0.0
    %3160 = vmatpush1.xpose.msra.mxu0 0.0
    %3161 = vmatprep.subr.mxu0 0.0
    %3162 = vmatpush1.xpose.msra.mxu0 0.0
    %3163 = vmatprep.subr.mxu0 0.0
    %3164 = vmatpush1.xpose.msra.mxu0 0.0
    %3165 = vmatprep.subr.mxu0 0.0
    %3166 = vmatpush1.xpose.msra.mxu0 0.0
    %3167 = vmatprep.subr.mxu0 0.0
    %3168 = vmatpush1.xpose.msra.mxu0 0.0
    %3169 = vmatprep.subr.mxu0 0.0
    %3170 = vmatpush1.xpose.msra.mxu0 0.0
    %3171 = vmatprep.subr.mxu0 0.0
    %3172 = vmatpush1.xpose.msra.mxu0 0.0
    %3173 = vmatprep.subr.mxu0 0.0
    %3174 = vmatpush1.xpose.msra.mxu0 0.0
    %3175 = vmatprep.subr.mxu0 0.0
    %3176 = vmatpush1.xpose.msra.mxu0 0.0
    %3177 = vmatprep.subr.mxu0 0.0
    %3178 = vmatpush1.xpose.msra.mxu0 %v3147
    %3179 = vmatprep.subr.mxu0 0.0
    %3180 = vmatpush1.xpose.msra.mxu0 %v3145
    %3181 = vmatprep.subr.mxu0 0.0
    %3182 = vmatpush2.xpose.msra.mxu0 0.0
    %3183 = vmatprep.subr.mxu0 0.0
    %3184 = vmatpush2.xpose.msra.mxu0 0.0
    %3185 = vmatprep.subr.mxu0 0.0
    %3186 = vmatpush2.xpose.msra.mxu0 0.0
    %3187 = vmatprep.subr.mxu0 0.0
    %3188 = vmatpush2.xpose.msra.mxu0 0.0
    %3189 = vmatprep.subr.mxu0 0.0
    %3190 = vmatpush2.xpose.msra.mxu0 0.0
    %3191 = vmatprep.subr.mxu0 0.0
    %3192 = vmatpush2.xpose.msra.mxu0 0.0
    %3193 = vmatprep.subr.mxu0 0.0
    %3194 = vmatpush2.xpose.msra.mxu0 0.0
    %3195 = vmatprep.subr.mxu0 0.0
    %3196 = vmatpush2.xpose.msra.mxu0 0.0
    %3197 = vmatprep.subr.mxu0 0.0
    %3198 = vmatpush2.xpose.msra.mxu0 0.0
    %3199 = vmatprep.subr.mxu0 0.0
    %3200 = vmatpush2.xpose.msra.mxu0 0.0
    %3201 = vmatprep.subr.mxu0 0.0
    %3202 = vmatpush2.xpose.msra.mxu0 0.0
    %3203 = vmatprep.subr.mxu0 0.0
    %3204 = vmatpush2.xpose.msra.mxu0 0.0
    %3205 = vmatprep.subr.mxu0 0.0
    %3206 = vmatpush2.xpose.msra.mxu0 0.0
    %3207 = vmatprep.subr.mxu0 0.0
    %3208 = vmatpush2.xpose.msra.mxu0 0.0
    %3209 = vmatprep.subr.mxu0 0.0
    %3210 = vmatpush2.xpose.msra.mxu0 0.0
    %3211 = vmatprep.subr.mxu0 0.0
    %3212 = vmatpush2.xpose.msra.mxu0 0.0
    %3213 = vmatprep.mubr.f32.mxu0 0.0
    %3214 = vmatmul.mubr.f32.gmra.mxu0 %v3143
    %v3215 = vpop.f32.mrf.mxu0
    %v3216 = vadd.f32 0.0, %v3215
    %v3217 = vpop.f32.mrf.mxu0
    %3218 = vdwg.mxu0
    %v3219 = vmul.f32 %v3216, 0.35355338
    %v3220 = vsel %vm791, %v3219, -1e+30
    %v3221 = vsel %vm793, %v3220, -inf
    %3222 = vmax.xlane.f32.xlu0 %v3221
    %v3223 = vpop.xlane.xlu0 %3222
    %v3224 = vsub.f32 %v3220, %v3223
    %v3225 = vmul.f32 %v3224, 1.442695
    %v3226 = vpow.pop %v3225
    %v3227 = vsel %vm793, %v3226, 0.0
    %3228 = vadd.xlane.f32.xlu0 %v3227
    %v3229 = vpop.xlane.xlu0 %3228
    %v3230 = vrcp.pop %v3229
    %v3231 = vmul.f32 %v3226, %v3230
    %3232 = vrot.lane.b32.xlu0 %v2768, 72
    %v3233 = vpop.permute.xlu0 %3232
    %3234 = vrot.lane.b32.xlu0 %v2769, 72
    %v3235 = vpop.permute.xlu0 %3234
    %v3239 = vsel %vm477, %v3231, 0
    %3241 = vmatprep.subr.mxu0 0.0
    %3242 = vmatpush1.msra.mxu0 0.0
    %3243 = vmatprep.subr.mxu0 0.0
    %3244 = vmatpush1.msra.mxu0 0.0
    %3245 = vmatprep.subr.mxu0 0.0
    %3246 = vmatpush1.msra.mxu0 0.0
    %3247 = vmatprep.subr.mxu0 0.0
    %3248 = vmatpush1.msra.mxu0 0.0
    %3249 = vmatprep.subr.mxu0 0.0
    %3250 = vmatpush1.msra.mxu0 0.0
    %3251 = vmatprep.subr.mxu0 0.0
    %3252 = vmatpush1.msra.mxu0 0.0
    %3253 = vmatprep.subr.mxu0 0.0
    %3254 = vmatpush1.msra.mxu0 0.0
    %3255 = vmatprep.subr.mxu0 0.0
    %3256 = vmatpush1.msra.mxu0 0.0
    %3257 = vmatprep.subr.mxu0 0.0
    %3258 = vmatpush1.msra.mxu0 0.0
    %3259 = vmatprep.subr.mxu0 0.0
    %3260 = vmatpush1.msra.mxu0 0.0
    %3261 = vmatprep.subr.mxu0 0.0
    %3262 = vmatpush1.msra.mxu0 0.0
    %3263 = vmatprep.subr.mxu0 0.0
    %3264 = vmatpush1.msra.mxu0 0.0
    %3265 = vmatprep.subr.mxu0 0.0
    %3266 = vmatpush1.msra.mxu0 0.0
    %3267 = vmatprep.subr.mxu0 0.0
    %3268 = vmatpush1.msra.mxu0 0.0
    %3269 = vmatprep.subr.mxu0 0.0
    %3270 = vmatpush1.msra.mxu0 %v3235
    %3271 = vmatprep.subr.mxu0 0.0
    %3272 = vmatpush1.msra.mxu0 %v3233
    %3273 = vmatprep.subr.mxu0 0.0
    %3274 = vmatpush2.msra.mxu0 0.0
    %3275 = vmatprep.subr.mxu0 0.0
    %3276 = vmatpush2.msra.mxu0 0.0
    %3277 = vmatprep.subr.mxu0 0.0
    %3278 = vmatpush2.msra.mxu0 0.0
    %3279 = vmatprep.subr.mxu0 0.0
    %3280 = vmatpush2.msra.mxu0 0.0
    %3281 = vmatprep.subr.mxu0 0.0
    %3282 = vmatpush2.msra.mxu0 0.0
    %3283 = vmatprep.subr.mxu0 0.0
    %3284 = vmatpush2.msra.mxu0 0.0
    %3285 = vmatprep.subr.mxu0 0.0
    %3286 = vmatpush2.msra.mxu0 0.0
    %3287 = vmatprep.subr.mxu0 0.0
    %3288 = vmatpush2.msra.mxu0 0.0
    %3289 = vmatprep.subr.mxu0 0.0
    %3290 = vmatpush2.msra.mxu0 0.0
    %3291 = vmatprep.subr.mxu0 0.0
    %3292 = vmatpush2.msra.mxu0 0.0
    %3293 = vmatprep.subr.mxu0 0.0
    %3294 = vmatpush2.msra.mxu0 0.0
    %3295 = vmatprep.subr.mxu0 0.0
    %3296 = vmatpush2.msra.mxu0 0.0
    %3297 = vmatprep.subr.mxu0 0.0
    %3298 = vmatpush2.msra.mxu0 0.0
    %3299 = vmatprep.subr.mxu0 0.0
    %3300 = vmatpush2.msra.mxu0 0.0
    %3301 = vmatprep.subr.mxu0 0.0
    %3302 = vmatpush2.msra.mxu0 0.0
    %3303 = vmatprep.subr.mxu0 0.0
    %3304 = vmatpush2.msra.mxu0 0.0
    %3305 = vmatprep.mubr.f32.mxu0 0.0
    %3306 = vmatmul.mubr.f32.gmra.mxu0 %v3239
    %v3307 = vpop.f32.mrf.mxu0
    %v3308 = vadd.f32 0.0, %v3307
    %v3309 = vpop.f32.mrf.mxu0
    %3310 = vdwg.mxu0
    %3311 = vrot.lane.b32.xlu0 %v2575, 104
    %v3312 = vpop.permute.xlu0 %3311
    %v3313 = vsel %vm712, %v3312, 0
    %3315 = vmatprep.subr.mxu0 0.0
    %3316 = vmatpush1.xpose.msra.mxu0 0.0
    %3317 = vmatprep.subr.mxu0 0.0
    %3318 = vmatpush1.xpose.msra.mxu0 0.0
    %3319 = vmatprep.subr.mxu0 0.0
    %3320 = vmatpush1.xpose.msra.mxu0 0.0
    %3321 = vmatprep.subr.mxu0 0.0
    %3322 = vmatpush1.xpose.msra.mxu0 0.0
    %3323 = vmatprep.subr.mxu0 0.0
    %3324 = vmatpush1.xpose.msra.mxu0 0.0
    %3325 = vmatprep.subr.mxu0 0.0
    %3326 = vmatpush1.xpose.msra.mxu0 0.0
    %3327 = vmatprep.subr.mxu0 0.0
    %3328 = vmatpush1.xpose.msra.mxu0 0.0
    %3329 = vmatprep.subr.mxu0 0.0
    %3330 = vmatpush1.xpose.msra.mxu0 0.0
    %3331 = vmatprep.subr.mxu0 0.0
    %3332 = vmatpush1.xpose.msra.mxu0 0.0
    %3333 = vmatprep.subr.mxu0 0.0
    %3334 = vmatpush1.xpose.msra.mxu0 0.0
    %3335 = vmatprep.subr.mxu0 0.0
    %3336 = vmatpush1.xpose.msra.mxu0 0.0
    %3337 = vmatprep.subr.mxu0 0.0
    %3338 = vmatpush1.xpose.msra.mxu0 0.0
    %3339 = vmatprep.subr.mxu0 0.0
    %3340 = vmatpush1.xpose.msra.mxu0 0.0
    %3341 = vmatprep.subr.mxu0 0.0
    %3342 = vmatpush1.xpose.msra.mxu0 0.0
    %3343 = vmatprep.subr.mxu0 0.0
    %3344 = vmatpush1.xpose.msra.mxu0 %v3147
    %3345 = vmatprep.subr.mxu0 0.0
    %3346 = vmatpush1.xpose.msra.mxu0 %v3145
    %3347 = vmatprep.subr.mxu0 0.0
    %3348 = vmatpush2.xpose.msra.mxu0 0.0
    %3349 = vmatprep.subr.mxu0 0.0
    %3350 = vmatpush2.xpose.msra.mxu0 0.0
    %3351 = vmatprep.subr.mxu0 0.0
    %3352 = vmatpush2.xpose.msra.mxu0 0.0
    %3353 = vmatprep.subr.mxu0 0.0
    %3354 = vmatpush2.xpose.msra.mxu0 0.0
    %3355 = vmatprep.subr.mxu0 0.0
    %3356 = vmatpush2.xpose.msra.mxu0 0.0
    %3357 = vmatprep.subr.mxu0 0.0
    %3358 = vmatpush2.xpose.msra.mxu0 0.0
    %3359 = vmatprep.subr.mxu0 0.0
    %3360 = vmatpush2.xpose.msra.mxu0 0.0
    %3361 = vmatprep.subr.mxu0 0.0
    %3362 = vmatpush2.xpose.msra.mxu0 0.0
    %3363 = vmatprep.subr.mxu0 0.0
    %3364 = vmatpush2.xpose.msra.mxu0 0.0
    %3365 = vmatprep.subr.mxu0 0.0
    %3366 = vmatpush2.xpose.msra.mxu0 0.0
    %3367 = vmatprep.subr.mxu0 0.0
    %3368 = vmatpush2.xpose.msra.mxu0 0.0
    %3369 = vmatprep.subr.mxu0 0.0
    %3370 = vmatpush2.xpose.msra.mxu0 0.0
    %3371 = vmatprep.subr.mxu0 0.0
    %3372 = vmatpush2.xpose.msra.mxu0 0.0
    %3373 = vmatprep.subr.mxu0 0.0
    %3374 = vmatpush2.xpose.msra.mxu0 0.0
    %3375 = vmatprep.subr.mxu0 0.0
    %3376 = vmatpush2.xpose.msra.mxu0 0.0
    %3377 = vmatprep.subr.mxu0 0.0
    %3378 = vmatpush2.xpose.msra.mxu0 0.0
    %3379 = vmatprep.mubr.f32.mxu0 0.0
    %3380 = vmatmul.mubr.f32.gmra.mxu0 %v3313
    %v3381 = vpop.f32.mrf.mxu0
    %v3382 = vadd.f32 0.0, %v3381
    %v3383 = vpop.f32.mrf.mxu0
    %3384 = vdwg.mxu0
    %v3385 = vmul.f32 %v3382, 0.35355338
    %v3386 = vsel %vm791, %v3385, -1e+30
    %v3387 = vsel %vm793, %v3386, -inf
    %3388 = vmax.xlane.f32.xlu0 %v3387
    %v3389 = vpop.xlane.xlu0 %3388
    %v3390 = vsub.f32 %v3386, %v3389
    %v3391 = vmul.f32 %v3390, 1.442695
    %v3392 = vpow.pop %v3391
    %v3393 = vsel %vm793, %v3392, 0.0
    %3394 = vadd.xlane.f32.xlu0 %v3393
    %v3395 = vpop.xlane.xlu0 %3394
    %v3396 = vrcp.pop %v3395
    %v3397 = vmul.f32 %v3392, %v3396
    %v3399 = vsel %vm477, %v3397, 0
    %3401 = vmatprep.subr.mxu0 0.0
    %3402 = vmatpush1.msra.mxu0 0.0
    %3403 = vmatprep.subr.mxu0 0.0
    %3404 = vmatpush1.msra.mxu0 0.0
    %3405 = vmatprep.subr.mxu0 0.0
    %3406 = vmatpush1.msra.mxu0 0.0
    %3407 = vmatprep.subr.mxu0 0.0
    %3408 = vmatpush1.msra.mxu0 0.0
    %3409 = vmatprep.subr.mxu0 0.0
    %3410 = vmatpush1.msra.mxu0 0.0
    %3411 = vmatprep.subr.mxu0 0.0
    %3412 = vmatpush1.msra.mxu0 0.0
    %3413 = vmatprep.subr.mxu0 0.0
    %3414 = vmatpush1.msra.mxu0 0.0
    %3415 = vmatprep.subr.mxu0 0.0
    %3416 = vmatpush1.msra.mxu0 0.0
    %3417 = vmatprep.subr.mxu0 0.0
    %3418 = vmatpush1.msra.mxu0 0.0
    %3419 = vmatprep.subr.mxu0 0.0
    %3420 = vmatpush1.msra.mxu0 0.0
    %3421 = vmatprep.subr.mxu0 0.0
    %3422 = vmatpush1.msra.mxu0 0.0
    %3423 = vmatprep.subr.mxu0 0.0
    %3424 = vmatpush1.msra.mxu0 0.0
    %3425 = vmatprep.subr.mxu0 0.0
    %3426 = vmatpush1.msra.mxu0 0.0
    %3427 = vmatprep.subr.mxu0 0.0
    %3428 = vmatpush1.msra.mxu0 0.0
    %3429 = vmatprep.subr.mxu0 0.0
    %3430 = vmatpush1.msra.mxu0 %v3235
    %3431 = vmatprep.subr.mxu0 0.0
    %3432 = vmatpush1.msra.mxu0 %v3233
    %3433 = vmatprep.subr.mxu0 0.0
    %3434 = vmatpush2.msra.mxu0 0.0
    %3435 = vmatprep.subr.mxu0 0.0
    %3436 = vmatpush2.msra.mxu0 0.0
    %3437 = vmatprep.subr.mxu0 0.0
    %3438 = vmatpush2.msra.mxu0 0.0
    %3439 = vmatprep.subr.mxu0 0.0
    %3440 = vmatpush2.msra.mxu0 0.0
    %3441 = vmatprep.subr.mxu0 0.0
    %3442 = vmatpush2.msra.mxu0 0.0
    %3443 = vmatprep.subr.mxu0 0.0
    %3444 = vmatpush2.msra.mxu0 0.0
    %3445 = vmatprep.subr.mxu0 0.0
    %3446 = vmatpush2.msra.mxu0 0.0
    %3447 = vmatprep.subr.mxu0 0.0
    %3448 = vmatpush2.msra.mxu0 0.0
    %3449 = vmatprep.subr.mxu0 0.0
    %3450 = vmatpush2.msra.mxu0 0.0
    %3451 = vmatprep.subr.mxu0 0.0
    %3452 = vmatpush2.msra.mxu0 0.0
    %3453 = vmatprep.subr.mxu0 0.0
    %3454 = vmatpush2.msra.mxu0 0.0
    %3455 = vmatprep.subr.mxu0 0.0
    %3456 = vmatpush2.msra.mxu0 0.0
    %3457 = vmatprep.subr.mxu0 0.0
    %3458 = vmatpush2.msra.mxu0 0.0
    %3459 = vmatprep.subr.mxu0 0.0
    %3460 = vmatpush2.msra.mxu0 0.0
    %3461 = vmatprep.subr.mxu0 0.0
    %3462 = vmatpush2.msra.mxu0 0.0
    %3463 = vmatprep.subr.mxu0 0.0
    %3464 = vmatpush2.msra.mxu0 0.0
    %3465 = vmatprep.mubr.f32.mxu0 0.0
    %3466 = vmatmul.mubr.f32.gmra.mxu0 %v3399
    %v3467 = vpop.f32.mrf.mxu0
    %v3468 = vadd.f32 0.0, %v3467
    %v3469 = vpop.f32.mrf.mxu0
    %3470 = vdwg.mxu0
    %3472 = vrot.lane.b32.xlu0 %v3134, 8
    %v3473 = vpop.permute.xlu0 %3472
    %3476 = vrot.lane.b32.xlu0 %v3308, 16
    %v3477 = vpop.permute.xlu0 %3476
    %3480 = vrot.lane.b32.xlu0 %v3468, 24
    %v3481 = vpop.permute.xlu0 %3480
    %v3483 = vsel %vm712, %v2974, %v3473
    %v3484 = vsel %vm477, %v3483, %v3477
    %v3485 = vsel %vm1386, %v3484, %v3481
    %v3486 = vrot.slane %v2575, 1
    %v3487 = vsel %vm712, %v3486, 0
    %v3489 = vsel %vm712, %v2781, 0
    %v3491 = vsel %vm712, %v2783, 0
    %3493 = vmatprep.subr.mxu0 0.0
    %3494 = vmatpush1.xpose.msra.mxu0 0.0
    %3495 = vmatprep.subr.mxu0 0.0
    %3496 = vmatpush1.xpose.msra.mxu0 0.0
    %3497 = vmatprep.subr.mxu0 0.0
    %3498 = vmatpush1.xpose.msra.mxu0 0.0
    %3499 = vmatprep.subr.mxu0 0.0
    %3500 = vmatpush1.xpose.msra.mxu0 0.0
    %3501 = vmatprep.subr.mxu0 0.0
    %3502 = vmatpush1.xpose.msra.mxu0 0.0
    %3503 = vmatprep.subr.mxu0 0.0
    %3504 = vmatpush1.xpose.msra.mxu0 0.0
    %3505 = vmatprep.subr.mxu0 0.0
    %3506 = vmatpush1.xpose.msra.mxu0 0.0
    %3507 = vmatprep.subr.mxu0 0.0
    %3508 = vmatpush1.xpose.msra.mxu0 0.0
    %3509 = vmatprep.subr.mxu0 0.0
    %3510 = vmatpush1.xpose.msra.mxu0 0.0
    %3511 = vmatprep.subr.mxu0 0.0
    %3512 = vmatpush1.xpose.msra.mxu0 0.0
    %3513 = vmatprep.subr.mxu0 0.0
    %3514 = vmatpush1.xpose.msra.mxu0 0.0
    %3515 = vmatprep.subr.mxu0 0.0
    %3516 = vmatpush1.xpose.msra.mxu0 0.0
    %3517 = vmatprep.subr.mxu0 0.0
    %3518 = vmatpush1.xpose.msra.mxu0 0.0
    %3519 = vmatprep.subr.mxu0 0.0
    %3520 = vmatpush1.xpose.msra.mxu0 0.0
    %3521 = vmatprep.subr.mxu0 0.0
    %3522 = vmatpush1.xpose.msra.mxu0 %v3491
    %3523 = vmatprep.subr.mxu0 0.0
    %3524 = vmatpush1.xpose.msra.mxu0 %v3489
    %3525 = vmatprep.subr.mxu0 0.0
    %3526 = vmatpush2.xpose.msra.mxu0 0.0
    %3527 = vmatprep.subr.mxu0 0.0
    %3528 = vmatpush2.xpose.msra.mxu0 0.0
    %3529 = vmatprep.subr.mxu0 0.0
    %3530 = vmatpush2.xpose.msra.mxu0 0.0
    %3531 = vmatprep.subr.mxu0 0.0
    %3532 = vmatpush2.xpose.msra.mxu0 0.0
    %3533 = vmatprep.subr.mxu0 0.0
    %3534 = vmatpush2.xpose.msra.mxu0 0.0
    %3535 = vmatprep.subr.mxu0 0.0
    %3536 = vmatpush2.xpose.msra.mxu0 0.0
    %3537 = vmatprep.subr.mxu0 0.0
    %3538 = vmatpush2.xpose.msra.mxu0 0.0
    %3539 = vmatprep.subr.mxu0 0.0
    %3540 = vmatpush2.xpose.msra.mxu0 0.0
    %3541 = vmatprep.subr.mxu0 0.0
    %3542 = vmatpush2.xpose.msra.mxu0 0.0
    %3543 = vmatprep.subr.mxu0 0.0
    %3544 = vmatpush2.xpose.msra.mxu0 0.0
    %3545 = vmatprep.subr.mxu0 0.0
    %3546 = vmatpush2.xpose.msra.mxu0 0.0
    %3547 = vmatprep.subr.mxu0 0.0
    %3548 = vmatpush2.xpose.msra.mxu0 0.0
    %3549 = vmatprep.subr.mxu0 0.0
    %3550 = vmatpush2.xpose.msra.mxu0 0.0
    %3551 = vmatprep.subr.mxu0 0.0
    %3552 = vmatpush2.xpose.msra.mxu0 0.0
    %3553 = vmatprep.subr.mxu0 0.0
    %3554 = vmatpush2.xpose.msra.mxu0 0.0
    %3555 = vmatprep.subr.mxu0 0.0
    %3556 = vmatpush2.xpose.msra.mxu0 0.0
    %3557 = vmatprep.mubr.f32.mxu0 0.0
    %3558 = vmatmul.mubr.f32.gmra.mxu0 %v3487
    %v3559 = vpop.f32.mrf.mxu0
    %v3560 = vadd.f32 0.0, %v3559
    %v3561 = vpop.f32.mrf.mxu0
    %3562 = vdwg.mxu0
    %v3563 = vmul.f32 %v3560, 0.35355338
    %v3564 = vsel %vm791, %v3563, -1e+30
    %v3565 = vsel %vm793, %v3564, -inf
    %3566 = vmax.xlane.f32.xlu0 %v3565
    %v3567 = vpop.xlane.xlu0 %3566
    %v3568 = vsub.f32 %v3564, %v3567
    %v3569 = vmul.f32 %v3568, 1.442695
    %v3570 = vpow.pop %v3569
    %v3571 = vsel %vm793, %v3570, 0.0
    %3572 = vadd.xlane.f32.xlu0 %v3571
    %v3573 = vpop.xlane.xlu0 %3572
    %v3574 = vrcp.pop %v3573
    %v3575 = vmul.f32 %v3570, %v3574
    %v3577 = vsel %vm477, %v3575, 0
    %3579 = vmatprep.subr.mxu0 0.0
    %3580 = vmatpush1.msra.mxu0 0.0
    %3581 = vmatprep.subr.mxu0 0.0
    %3582 = vmatpush1.msra.mxu0 0.0
    %3583 = vmatprep.subr.mxu0 0.0
    %3584 = vmatpush1.msra.mxu0 0.0
    %3585 = vmatprep.subr.mxu0 0.0
    %3586 = vmatpush1.msra.mxu0 0.0
    %3587 = vmatprep.subr.mxu0 0.0
    %3588 = vmatpush1.msra.mxu0 0.0
    %3589 = vmatprep.subr.mxu0 0.0
    %3590 = vmatpush1.msra.mxu0 0.0
    %3591 = vmatprep.subr.mxu0 0.0
    %3592 = vmatpush1.msra.mxu0 0.0
    %3593 = vmatprep.subr.mxu0 0.0
    %3594 = vmatpush1.msra.mxu0 0.0
    %3595 = vmatprep.subr.mxu0 0.0
    %3596 = vmatpush1.msra.mxu0 0.0
    %3597 = vmatprep.subr.mxu0 0.0
    %3598 = vmatpush1.msra.mxu0 0.0
    %3599 = vmatprep.subr.mxu0 0.0
    %3600 = vmatpush1.msra.mxu0 0.0
    %3601 = vmatprep.subr.mxu0 0.0
    %3602 = vmatpush1.msra.mxu0 0.0
    %3603 = vmatprep.subr.mxu0 0.0
    %3604 = vmatpush1.msra.mxu0 0.0
    %3605 = vmatprep.subr.mxu0 0.0
    %3606 = vmatpush1.msra.mxu0 0.0
    %3607 = vmatprep.subr.mxu0 0.0
    %3608 = vmatpush1.msra.mxu0 %v2804
    %3609 = vmatprep.subr.mxu0 0.0
    %3610 = vmatpush1.msra.mxu0 %v2802
    %3611 = vmatprep.subr.mxu0 0.0
    %3612 = vmatpush2.msra.mxu0 0.0
    %3613 = vmatprep.subr.mxu0 0.0
    %3614 = vmatpush2.msra.mxu0 0.0
    %3615 = vmatprep.subr.mxu0 0.0
    %3616 = vmatpush2.msra.mxu0 0.0
    %3617 = vmatprep.subr.mxu0 0.0
    %3618 = vmatpush2.msra.mxu0 0.0
    %3619 = vmatprep.subr.mxu0 0.0
    %3620 = vmatpush2.msra.mxu0 0.0
    %3621 = vmatprep.subr.mxu0 0.0
    %3622 = vmatpush2.msra.mxu0 0.0
    %3623 = vmatprep.subr.mxu0 0.0
    %3624 = vmatpush2.msra.mxu0 0.0
    %3625 = vmatprep.subr.mxu0 0.0
    %3626 = vmatpush2.msra.mxu0 0.0
    %3627 = vmatprep.subr.mxu0 0.0
    %3628 = vmatpush2.msra.mxu0 0.0
    %3629 = vmatprep.subr.mxu0 0.0
    %3630 = vmatpush2.msra.mxu0 0.0
    %3631 = vmatprep.subr.mxu0 0.0
    %3632 = vmatpush2.msra.mxu0 0.0
    %3633 = vmatprep.subr.mxu0 0.0
    %3634 = vmatpush2.msra.mxu0 0.0
    %3635 = vmatprep.subr.mxu0 0.0
    %3636 = vmatpush2.msra.mxu0 0.0
    %3637 = vmatprep.subr.mxu0 0.0
    %3638 = vmatpush2.msra.mxu0 0.0
    %3639 = vmatprep.subr.mxu0 0.0
    %3640 = vmatpush2.msra.mxu0 0.0
    %3641 = vmatprep.subr.mxu0 0.0
    %3642 = vmatpush2.msra.mxu0 0.0
    %3643 = vmatprep.mubr.f32.mxu0 0.0
    %3644 = vmatmul.mubr.f32.gmra.mxu0 %v3577
    %v3645 = vpop.f32.mrf.mxu0
    %v3646 = vadd.f32 0.0, %v3645
    %v3647 = vpop.f32.mrf.mxu0
    %3648 = vdwg.mxu0
    %3649 = vrot.lane.b32.xlu0 %v3486, 120
    %v3650 = vpop.permute.xlu0 %3649
    %v3651 = vsel %vm712, %v3650, 0
    %3653 = vmatprep.subr.mxu0 0.0
    %3654 = vmatpush1.xpose.msra.mxu0 0.0
    %3655 = vmatprep.subr.mxu0 0.0
    %3656 = vmatpush1.xpose.msra.mxu0 0.0
    %3657 = vmatprep.subr.mxu0 0.0
    %3658 = vmatpush1.xpose.msra.mxu0 0.0
    %3659 = vmatprep.subr.mxu0 0.0
    %3660 = vmatpush1.xpose.msra.mxu0 0.0
    %3661 = vmatprep.subr.mxu0 0.0
    %3662 = vmatpush1.xpose.msra.mxu0 0.0
    %3663 = vmatprep.subr.mxu0 0.0
    %3664 = vmatpush1.xpose.msra.mxu0 0.0
    %3665 = vmatprep.subr.mxu0 0.0
    %3666 = vmatpush1.xpose.msra.mxu0 0.0
    %3667 = vmatprep.subr.mxu0 0.0
    %3668 = vmatpush1.xpose.msra.mxu0 0.0
    %3669 = vmatprep.subr.mxu0 0.0
    %3670 = vmatpush1.xpose.msra.mxu0 0.0
    %3671 = vmatprep.subr.mxu0 0.0
    %3672 = vmatpush1.xpose.msra.mxu0 0.0
    %3673 = vmatprep.subr.mxu0 0.0
    %3674 = vmatpush1.xpose.msra.mxu0 0.0
    %3675 = vmatprep.subr.mxu0 0.0
    %3676 = vmatpush1.xpose.msra.mxu0 0.0
    %3677 = vmatprep.subr.mxu0 0.0
    %3678 = vmatpush1.xpose.msra.mxu0 0.0
    %3679 = vmatprep.subr.mxu0 0.0
    %3680 = vmatpush1.xpose.msra.mxu0 0.0
    %3681 = vmatprep.subr.mxu0 0.0
    %3682 = vmatpush1.xpose.msra.mxu0 %v3491
    %3683 = vmatprep.subr.mxu0 0.0
    %3684 = vmatpush1.xpose.msra.mxu0 %v3489
    %3685 = vmatprep.subr.mxu0 0.0
    %3686 = vmatpush2.xpose.msra.mxu0 0.0
    %3687 = vmatprep.subr.mxu0 0.0
    %3688 = vmatpush2.xpose.msra.mxu0 0.0
    %3689 = vmatprep.subr.mxu0 0.0
    %3690 = vmatpush2.xpose.msra.mxu0 0.0
    %3691 = vmatprep.subr.mxu0 0.0
    %3692 = vmatpush2.xpose.msra.mxu0 0.0
    %3693 = vmatprep.subr.mxu0 0.0
    %3694 = vmatpush2.xpose.msra.mxu0 0.0
    %3695 = vmatprep.subr.mxu0 0.0
    %3696 = vmatpush2.xpose.msra.mxu0 0.0
    %3697 = vmatprep.subr.mxu0 0.0
    %3698 = vmatpush2.xpose.msra.mxu0 0.0
    %3699 = vmatprep.subr.mxu0 0.0
    %3700 = vmatpush2.xpose.msra.mxu0 0.0
    %3701 = vmatprep.subr.mxu0 0.0
    %3702 = vmatpush2.xpose.msra.mxu0 0.0
    %3703 = vmatprep.subr.mxu0 0.0
    %3704 = vmatpush2.xpose.msra.mxu0 0.0
    %3705 = vmatprep.subr.mxu0 0.0
    %3706 = vmatpush2.xpose.msra.mxu0 0.0
    %3707 = vmatprep.subr.mxu0 0.0
    %3708 = vmatpush2.xpose.msra.mxu0 0.0
    %3709 = vmatprep.subr.mxu0 0.0
    %3710 = vmatpush2.xpose.msra.mxu0 0.0
    %3711 = vmatprep.subr.mxu0 0.0
    %3712 = vmatpush2.xpose.msra.mxu0 0.0
    %3713 = vmatprep.subr.mxu0 0.0
    %3714 = vmatpush2.xpose.msra.mxu0 0.0
    %3715 = vmatprep.subr.mxu0 0.0
    %3716 = vmatpush2.xpose.msra.mxu0 0.0
    %3717 = vmatprep.mubr.f32.mxu0 0.0
    %3718 = vmatmul.mubr.f32.gmra.mxu0 %v3651
    %v3719 = vpop.f32.mrf.mxu0
    %v3720 = vadd.f32 0.0, %v3719
    %v3721 = vpop.f32.mrf.mxu0
    %3722 = vdwg.mxu0
    %v3723 = vmul.f32 %v3720, 0.35355338
    %v3724 = vsel %vm791, %v3723, -1e+30
    %v3725 = vsel %vm793, %v3724, -inf
    %3726 = vmax.xlane.f32.xlu0 %v3725
    %v3727 = vpop.xlane.xlu0 %3726
    %v3728 = vsub.f32 %v3724, %v3727
    %v3729 = vmul.f32 %v3728, 1.442695
    %v3730 = vpow.pop %v3729
    %v3731 = vsel %vm793, %v3730, 0.0
    %3732 = vadd.xlane.f32.xlu0 %v3731
    %v3733 = vpop.xlane.xlu0 %3732
    %v3734 = vrcp.pop %v3733
    %v3735 = vmul.f32 %v3730, %v3734
    %v3737 = vsel %vm477, %v3735, 0
    %3739 = vmatprep.subr.mxu0 0.0
    %3740 = vmatpush1.msra.mxu0 0.0
    %3741 = vmatprep.subr.mxu0 0.0
    %3742 = vmatpush1.msra.mxu0 0.0
    %3743 = vmatprep.subr.mxu0 0.0
    %3744 = vmatpush1.msra.mxu0 0.0
    %3745 = vmatprep.subr.mxu0 0.0
    %3746 = vmatpush1.msra.mxu0 0.0
    %3747 = vmatprep.subr.mxu0 0.0
    %3748 = vmatpush1.msra.mxu0 0.0
    %3749 = vmatprep.subr.mxu0 0.0
    %3750 = vmatpush1.msra.mxu0 0.0
    %3751 = vmatprep.subr.mxu0 0.0
    %3752 = vmatpush1.msra.mxu0 0.0
    %3753 = vmatprep.subr.mxu0 0.0
    %3754 = vmatpush1.msra.mxu0 0.0
    %3755 = vmatprep.subr.mxu0 0.0
    %3756 = vmatpush1.msra.mxu0 0.0
    %3757 = vmatprep.subr.mxu0 0.0
    %3758 = vmatpush1.msra.mxu0 0.0
    %3759 = vmatprep.subr.mxu0 0.0
    %3760 = vmatpush1.msra.mxu0 0.0
    %3761 = vmatprep.subr.mxu0 0.0
    %3762 = vmatpush1.msra.mxu0 0.0
    %3763 = vmatprep.subr.mxu0 0.0
    %3764 = vmatpush1.msra.mxu0 0.0
    %3765 = vmatprep.subr.mxu0 0.0
    %3766 = vmatpush1.msra.mxu0 0.0
    %3767 = vmatprep.subr.mxu0 0.0
    %3768 = vmatpush1.msra.mxu0 %v2804
    %3769 = vmatprep.subr.mxu0 0.0
    %3770 = vmatpush1.msra.mxu0 %v2802
    %3771 = vmatprep.subr.mxu0 0.0
    %3772 = vmatpush2.msra.mxu0 0.0
    %3773 = vmatprep.subr.mxu0 0.0
    %3774 = vmatpush2.msra.mxu0 0.0
    %3775 = vmatprep.subr.mxu0 0.0
    %3776 = vmatpush2.msra.mxu0 0.0
    %3777 = vmatprep.subr.mxu0 0.0
    %3778 = vmatpush2.msra.mxu0 0.0
    %3779 = vmatprep.subr.mxu0 0.0
    %3780 = vmatpush2.msra.mxu0 0.0
    %3781 = vmatprep.subr.mxu0 0.0
    %3782 = vmatpush2.msra.mxu0 0.0
    %3783 = vmatprep.subr.mxu0 0.0
    %3784 = vmatpush2.msra.mxu0 0.0
    %3785 = vmatprep.subr.mxu0 0.0
    %3786 = vmatpush2.msra.mxu0 0.0
    %3787 = vmatprep.subr.mxu0 0.0
    %3788 = vmatpush2.msra.mxu0 0.0
    %3789 = vmatprep.subr.mxu0 0.0
    %3790 = vmatpush2.msra.mxu0 0.0
    %3791 = vmatprep.subr.mxu0 0.0
    %3792 = vmatpush2.msra.mxu0 0.0
    %3793 = vmatprep.subr.mxu0 0.0
    %3794 = vmatpush2.msra.mxu0 0.0
    %3795 = vmatprep.subr.mxu0 0.0
    %3796 = vmatpush2.msra.mxu0 0.0
    %3797 = vmatprep.subr.mxu0 0.0
    %3798 = vmatpush2.msra.mxu0 0.0
    %3799 = vmatprep.subr.mxu0 0.0
    %3800 = vmatpush2.msra.mxu0 0.0
    %3801 = vmatprep.subr.mxu0 0.0
    %3802 = vmatpush2.msra.mxu0 0.0
    %3803 = vmatprep.mubr.f32.mxu0 0.0
    %3804 = vmatmul.mubr.f32.gmra.mxu0 %v3737
    %v3805 = vpop.f32.mrf.mxu0
    %v3806 = vadd.f32 0.0, %v3805
    %v3807 = vpop.f32.mrf.mxu0
    %3808 = vdwg.mxu0
    %3809 = vrot.lane.b32.xlu0 %v3486, 112
    %v3810 = vpop.permute.xlu0 %3809
    %3811 = vrot.lane.b32.xlu0 %v2718, 88
    %v3812 = vpop.permute.xlu0 %3811
    %3813 = vrot.lane.b32.xlu0 %v2719, 88
    %v3814 = vpop.permute.xlu0 %3813
    %v3815 = vsel %vm712, %v3810, 0
    %v3817 = vsel %vm712, %v3812, 0
    %v3819 = vsel %vm712, %v3814, 0
    %3821 = vmatprep.subr.mxu0 0.0
    %3822 = vmatpush1.xpose.msra.mxu0 0.0
    %3823 = vmatprep.subr.mxu0 0.0
    %3824 = vmatpush1.xpose.msra.mxu0 0.0
    %3825 = vmatprep.subr.mxu0 0.0
    %3826 = vmatpush1.xpose.msra.mxu0 0.0
    %3827 = vmatprep.subr.mxu0 0.0
    %3828 = vmatpush1.xpose.msra.mxu0 0.0
    %3829 = vmatprep.subr.mxu0 0.0
    %3830 = vmatpush1.xpose.msra.mxu0 0.0
    %3831 = vmatprep.subr.mxu0 0.0
    %3832 = vmatpush1.xpose.msra.mxu0 0.0
    %3833 = vmatprep.subr.mxu0 0.0
    %3834 = vmatpush1.xpose.msra.mxu0 0.0
    %3835 = vmatprep.subr.mxu0 0.0
    %3836 = vmatpush1.xpose.msra.mxu0 0.0
    %3837 = vmatprep.subr.mxu0 0.0
    %3838 = vmatpush1.xpose.msra.mxu0 0.0
    %3839 = vmatprep.subr.mxu0 0.0
    %3840 = vmatpush1.xpose.msra.mxu0 0.0
    %3841 = vmatprep.subr.mxu0 0.0
    %3842 = vmatpush1.xpose.msra.mxu0 0.0
    %3843 = vmatprep.subr.mxu0 0.0
    %3844 = vmatpush1.xpose.msra.mxu0 0.0
    %3845 = vmatprep.subr.mxu0 0.0
    %3846 = vmatpush1.xpose.msra.mxu0 0.0
    %3847 = vmatprep.subr.mxu0 0.0
    %3848 = vmatpush1.xpose.msra.mxu0 0.0
    %3849 = vmatprep.subr.mxu0 0.0
    %3850 = vmatpush1.xpose.msra.mxu0 %v3819
    %3851 = vmatprep.subr.mxu0 0.0
    %3852 = vmatpush1.xpose.msra.mxu0 %v3817
    %3853 = vmatprep.subr.mxu0 0.0
    %3854 = vmatpush2.xpose.msra.mxu0 0.0
    %3855 = vmatprep.subr.mxu0 0.0
    %3856 = vmatpush2.xpose.msra.mxu0 0.0
    %3857 = vmatprep.subr.mxu0 0.0
    %3858 = vmatpush2.xpose.msra.mxu0 0.0
    %3859 = vmatprep.subr.mxu0 0.0
    %3860 = vmatpush2.xpose.msra.mxu0 0.0
    %3861 = vmatprep.subr.mxu0 0.0
    %3862 = vmatpush2.xpose.msra.mxu0 0.0
    %3863 = vmatprep.subr.mxu0 0.0
    %3864 = vmatpush2.xpose.msra.mxu0 0.0
    %3865 = vmatprep.subr.mxu0 0.0
    %3866 = vmatpush2.xpose.msra.mxu0 0.0
    %3867 = vmatprep.subr.mxu0 0.0
    %3868 = vmatpush2.xpose.msra.mxu0 0.0
    %3869 = vmatprep.subr.mxu0 0.0
    %3870 = vmatpush2.xpose.msra.mxu0 0.0
    %3871 = vmatprep.subr.mxu0 0.0
    %3872 = vmatpush2.xpose.msra.mxu0 0.0
    %3873 = vmatprep.subr.mxu0 0.0
    %3874 = vmatpush2.xpose.msra.mxu0 0.0
    %3875 = vmatprep.subr.mxu0 0.0
    %3876 = vmatpush2.xpose.msra.mxu0 0.0
    %3877 = vmatprep.subr.mxu0 0.0
    %3878 = vmatpush2.xpose.msra.mxu0 0.0
    %3879 = vmatprep.subr.mxu0 0.0
    %3880 = vmatpush2.xpose.msra.mxu0 0.0
    %3881 = vmatprep.subr.mxu0 0.0
    %3882 = vmatpush2.xpose.msra.mxu0 0.0
    %3883 = vmatprep.subr.mxu0 0.0
    %3884 = vmatpush2.xpose.msra.mxu0 0.0
    %3885 = vmatprep.mubr.f32.mxu0 0.0
    %3886 = vmatmul.mubr.f32.gmra.mxu0 %v3815
    %v3887 = vpop.f32.mrf.mxu0
    %v3888 = vadd.f32 0.0, %v3887
    %v3889 = vpop.f32.mrf.mxu0
    %3890 = vdwg.mxu0
    %v3891 = vmul.f32 %v3888, 0.35355338
    %v3892 = vsel %vm791, %v3891, -1e+30
    %v3893 = vsel %vm793, %v3892, -inf
    %3894 = vmax.xlane.f32.xlu0 %v3893
    %v3895 = vpop.xlane.xlu0 %3894
    %v3896 = vsub.f32 %v3892, %v3895
    %v3897 = vmul.f32 %v3896, 1.442695
    %v3898 = vpow.pop %v3897
    %v3899 = vsel %vm793, %v3898, 0.0
    %3900 = vadd.xlane.f32.xlu0 %v3899
    %v3901 = vpop.xlane.xlu0 %3900
    %v3902 = vrcp.pop %v3901
    %v3903 = vmul.f32 %v3898, %v3902
    %3904 = vrot.lane.b32.xlu0 %v2770, 72
    %v3905 = vpop.permute.xlu0 %3904
    %3906 = vrot.lane.b32.xlu0 %v2771, 72
    %v3907 = vpop.permute.xlu0 %3906
    %v3911 = vsel %vm477, %v3903, 0
    %3913 = vmatprep.subr.mxu0 0.0
    %3914 = vmatpush1.msra.mxu0 0.0
    %3915 = vmatprep.subr.mxu0 0.0
    %3916 = vmatpush1.msra.mxu0 0.0
    %3917 = vmatprep.subr.mxu0 0.0
    %3918 = vmatpush1.msra.mxu0 0.0
    %3919 = vmatprep.subr.mxu0 0.0
    %3920 = vmatpush1.msra.mxu0 0.0
    %3921 = vmatprep.subr.mxu0 0.0
    %3922 = vmatpush1.msra.mxu0 0.0
    %3923 = vmatprep.subr.mxu0 0.0
    %3924 = vmatpush1.msra.mxu0 0.0
    %3925 = vmatprep.subr.mxu0 0.0
    %3926 = vmatpush1.msra.mxu0 0.0
    %3927 = vmatprep.subr.mxu0 0.0
    %3928 = vmatpush1.msra.mxu0 0.0
    %3929 = vmatprep.subr.mxu0 0.0
    %3930 = vmatpush1.msra.mxu0 0.0
    %3931 = vmatprep.subr.mxu0 0.0
    %3932 = vmatpush1.msra.mxu0 0.0
    %3933 = vmatprep.subr.mxu0 0.0
    %3934 = vmatpush1.msra.mxu0 0.0
    %3935 = vmatprep.subr.mxu0 0.0
    %3936 = vmatpush1.msra.mxu0 0.0
    %3937 = vmatprep.subr.mxu0 0.0
    %3938 = vmatpush1.msra.mxu0 0.0
    %3939 = vmatprep.subr.mxu0 0.0
    %3940 = vmatpush1.msra.mxu0 0.0
    %3941 = vmatprep.subr.mxu0 0.0
    %3942 = vmatpush1.msra.mxu0 %v3907
    %3943 = vmatprep.subr.mxu0 0.0
    %3944 = vmatpush1.msra.mxu0 %v3905
    %3945 = vmatprep.subr.mxu0 0.0
    %3946 = vmatpush2.msra.mxu0 0.0
    %3947 = vmatprep.subr.mxu0 0.0
    %3948 = vmatpush2.msra.mxu0 0.0
    %3949 = vmatprep.subr.mxu0 0.0
    %3950 = vmatpush2.msra.mxu0 0.0
    %3951 = vmatprep.subr.mxu0 0.0
    %3952 = vmatpush2.msra.mxu0 0.0
    %3953 = vmatprep.subr.mxu0 0.0
    %3954 = vmatpush2.msra.mxu0 0.0
    %3955 = vmatprep.subr.mxu0 0.0
    %3956 = vmatpush2.msra.mxu0 0.0
    %3957 = vmatprep.subr.mxu0 0.0
    %3958 = vmatpush2.msra.mxu0 0.0
    %3959 = vmatprep.subr.mxu0 0.0
    %3960 = vmatpush2.msra.mxu0 0.0
    %3961 = vmatprep.subr.mxu0 0.0
    %3962 = vmatpush2.msra.mxu0 0.0
    %3963 = vmatprep.subr.mxu0 0.0
    %3964 = vmatpush2.msra.mxu0 0.0
    %3965 = vmatprep.subr.mxu0 0.0
    %3966 = vmatpush2.msra.mxu0 0.0
    %3967 = vmatprep.subr.mxu0 0.0
    %3968 = vmatpush2.msra.mxu0 0.0
    %3969 = vmatprep.subr.mxu0 0.0
    %3970 = vmatpush2.msra.mxu0 0.0
    %3971 = vmatprep.subr.mxu0 0.0
    %3972 = vmatpush2.msra.mxu0 0.0
    %3973 = vmatprep.subr.mxu0 0.0
    %3974 = vmatpush2.msra.mxu0 0.0
    %3975 = vmatprep.subr.mxu0 0.0
    %3976 = vmatpush2.msra.mxu0 0.0
    %3977 = vmatprep.mubr.f32.mxu0 0.0
    %3978 = vmatmul.mubr.f32.gmra.mxu0 %v3911
    %v3979 = vpop.f32.mrf.mxu0
    %v3980 = vadd.f32 0.0, %v3979
    %v3981 = vpop.f32.mrf.mxu0
    %3982 = vdwg.mxu0
    %3983 = vrot.lane.b32.xlu0 %v3486, 104
    %v3984 = vpop.permute.xlu0 %3983
    %v3985 = vsel %vm712, %v3984, 0
    %3987 = vmatprep.subr.mxu0 0.0
    %3988 = vmatpush1.xpose.msra.mxu0 0.0
    %3989 = vmatprep.subr.mxu0 0.0
    %3990 = vmatpush1.xpose.msra.mxu0 0.0
    %3991 = vmatprep.subr.mxu0 0.0
    %3992 = vmatpush1.xpose.msra.mxu0 0.0
    %3993 = vmatprep.subr.mxu0 0.0
    %3994 = vmatpush1.xpose.msra.mxu0 0.0
    %3995 = vmatprep.subr.mxu0 0.0
    %3996 = vmatpush1.xpose.msra.mxu0 0.0
    %3997 = vmatprep.subr.mxu0 0.0
    %3998 = vmatpush1.xpose.msra.mxu0 0.0
    %3999 = vmatprep.subr.mxu0 0.0
    %4000 = vmatpush1.xpose.msra.mxu0 0.0
    %4001 = vmatprep.subr.mxu0 0.0
    %4002 = vmatpush1.xpose.msra.mxu0 0.0
    %4003 = vmatprep.subr.mxu0 0.0
    %4004 = vmatpush1.xpose.msra.mxu0 0.0
    %4005 = vmatprep.subr.mxu0 0.0
    %4006 = vmatpush1.xpose.msra.mxu0 0.0
    %4007 = vmatprep.subr.mxu0 0.0
    %4008 = vmatpush1.xpose.msra.mxu0 0.0
    %4009 = vmatprep.subr.mxu0 0.0
    %4010 = vmatpush1.xpose.msra.mxu0 0.0
    %4011 = vmatprep.subr.mxu0 0.0
    %4012 = vmatpush1.xpose.msra.mxu0 0.0
    %4013 = vmatprep.subr.mxu0 0.0
    %4014 = vmatpush1.xpose.msra.mxu0 0.0
    %4015 = vmatprep.subr.mxu0 0.0
    %4016 = vmatpush1.xpose.msra.mxu0 %v3819
    %4017 = vmatprep.subr.mxu0 0.0
    %4018 = vmatpush1.xpose.msra.mxu0 %v3817
    %4019 = vmatprep.subr.mxu0 0.0
    %4020 = vmatpush2.xpose.msra.mxu0 0.0
    %4021 = vmatprep.subr.mxu0 0.0
    %4022 = vmatpush2.xpose.msra.mxu0 0.0
    %4023 = vmatprep.subr.mxu0 0.0
    %4024 = vmatpush2.xpose.msra.mxu0 0.0
    %4025 = vmatprep.subr.mxu0 0.0
    %4026 = vmatpush2.xpose.msra.mxu0 0.0
    %4027 = vmatprep.subr.mxu0 0.0
    %4028 = vmatpush2.xpose.msra.mxu0 0.0
    %4029 = vmatprep.subr.mxu0 0.0
    %4030 = vmatpush2.xpose.msra.mxu0 0.0
    %4031 = vmatprep.subr.mxu0 0.0
    %4032 = vmatpush2.xpose.msra.mxu0 0.0
    %4033 = vmatprep.subr.mxu0 0.0
    %4034 = vmatpush2.xpose.msra.mxu0 0.0
    %4035 = vmatprep.subr.mxu0 0.0
    %4036 = vmatpush2.xpose.msra.mxu0 0.0
    %4037 = vmatprep.subr.mxu0 0.0
    %4038 = vmatpush2.xpose.msra.mxu0 0.0
    %4039 = vmatprep.subr.mxu0 0.0
    %4040 = vmatpush2.xpose.msra.mxu0 0.0
    %4041 = vmatprep.subr.mxu0 0.0
    %4042 = vmatpush2.xpose.msra.mxu0 0.0
    %4043 = vmatprep.subr.mxu0 0.0
    %4044 = vmatpush2.xpose.msra.mxu0 0.0
    %4045 = vmatprep.subr.mxu0 0.0
    %4046 = vmatpush2.xpose.msra.mxu0 0.0
    %4047 = vmatprep.subr.mxu0 0.0
    %4048 = vmatpush2.xpose.msra.mxu0 0.0
    %4049 = vmatprep.subr.mxu0 0.0
    %4050 = vmatpush2.xpose.msra.mxu0 0.0
    %4051 = vmatprep.mubr.f32.mxu0 0.0
    %4052 = vmatmul.mubr.f32.gmra.mxu0 %v3985
    %v4053 = vpop.f32.mrf.mxu0
    %v4054 = vadd.f32 0.0, %v4053
    %v4055 = vpop.f32.mrf.mxu0
    %4056 = vdwg.mxu0
    %v4057 = vmul.f32 %v4054, 0.35355338
    %v4058 = vsel %vm791, %v4057, -1e+30
    %v4059 = vsel %vm793, %v4058, -inf
    %4060 = vmax.xlane.f32.xlu0 %v4059
    %v4061 = vpop.xlane.xlu0 %4060
    %v4062 = vsub.f32 %v4058, %v4061
    %v4063 = vmul.f32 %v4062, 1.442695
    %v4064 = vpow.pop %v4063
    %v4065 = vsel %vm793, %v4064, 0.0
    %4066 = vadd.xlane.f32.xlu0 %v4065
    %v4067 = vpop.xlane.xlu0 %4066
    %v4068 = vrcp.pop %v4067
    %v4069 = vmul.f32 %v4064, %v4068
    %v4071 = vsel %vm477, %v4069, 0
    %4073 = vmatprep.subr.mxu0 0.0
    %4074 = vmatpush1.msra.mxu0 0.0
    %4075 = vmatprep.subr.mxu0 0.0
    %4076 = vmatpush1.msra.mxu0 0.0
    %4077 = vmatprep.subr.mxu0 0.0
    %4078 = vmatpush1.msra.mxu0 0.0
    %4079 = vmatprep.subr.mxu0 0.0
    %4080 = vmatpush1.msra.mxu0 0.0
    %4081 = vmatprep.subr.mxu0 0.0
    %4082 = vmatpush1.msra.mxu0 0.0
    %4083 = vmatprep.subr.mxu0 0.0
    %4084 = vmatpush1.msra.mxu0 0.0
    %4085 = vmatprep.subr.mxu0 0.0
    %4086 = vmatpush1.msra.mxu0 0.0
    %4087 = vmatprep.subr.mxu0 0.0
    %4088 = vmatpush1.msra.mxu0 0.0
    %4089 = vmatprep.subr.mxu0 0.0
    %4090 = vmatpush1.msra.mxu0 0.0
    %4091 = vmatprep.subr.mxu0 0.0
    %4092 = vmatpush1.msra.mxu0 0.0
    %4093 = vmatprep.subr.mxu0 0.0
    %4094 = vmatpush1.msra.mxu0 0.0
    %4095 = vmatprep.subr.mxu0 0.0
    %4096 = vmatpush1.msra.mxu0 0.0
    %4097 = vmatprep.subr.mxu0 0.0
    %4098 = vmatpush1.msra.mxu0 0.0
    %4099 = vmatprep.subr.mxu0 0.0
    %4100 = vmatpush1.msra.mxu0 0.0
    %4101 = vmatprep.subr.mxu0 0.0
    %4102 = vmatpush1.msra.mxu0 %v3907
    %4103 = vmatprep.subr.mxu0 0.0
    %4104 = vmatpush1.msra.mxu0 %v3905
    %4105 = vmatprep.subr.mxu0 0.0
    %4106 = vmatpush2.msra.mxu0 0.0
    %4107 = vmatprep.subr.mxu0 0.0
    %4108 = vmatpush2.msra.mxu0 0.0
    %4109 = vmatprep.subr.mxu0 0.0
    %4110 = vmatpush2.msra.mxu0 0.0
    %4111 = vmatprep.subr.mxu0 0.0
    %4112 = vmatpush2.msra.mxu0 0.0
    %4113 = vmatprep.subr.mxu0 0.0
    %4114 = vmatpush2.msra.mxu0 0.0
    %4115 = vmatprep.subr.mxu0 0.0
    %4116 = vmatpush2.msra.mxu0 0.0
    %4117 = vmatprep.subr.mxu0 0.0
    %4118 = vmatpush2.msra.mxu0 0.0
    %4119 = vmatprep.subr.mxu0 0.0
    %4120 = vmatpush2.msra.mxu0 0.0
    %4121 = vmatprep.subr.mxu0 0.0
    %4122 = vmatpush2.msra.mxu0 0.0
    %4123 = vmatprep.subr.mxu0 0.0
    %4124 = vmatpush2.msra.mxu0 0.0
    %4125 = vmatprep.subr.mxu0 0.0
    %4126 = vmatpush2.msra.mxu0 0.0
    %4127 = vmatprep.subr.mxu0 0.0
    %4128 = vmatpush2.msra.mxu0 0.0
    %4129 = vmatprep.subr.mxu0 0.0
    %4130 = vmatpush2.msra.mxu0 0.0
    %4131 = vmatprep.subr.mxu0 0.0
    %4132 = vmatpush2.msra.mxu0 0.0
    %4133 = vmatprep.subr.mxu0 0.0
    %4134 = vmatpush2.msra.mxu0 0.0
    %4135 = vmatprep.subr.mxu0 0.0
    %4136 = vmatpush2.msra.mxu0 0.0
    %4137 = vmatprep.mubr.f32.mxu0 0.0
    %4138 = vmatmul.mubr.f32.gmra.mxu0 %v4071
    %v4139 = vpop.f32.mrf.mxu0
    %v4140 = vadd.f32 0.0, %v4139
    %v4141 = vpop.f32.mrf.mxu0
    %4142 = vdwg.mxu0
    %4144 = vrot.lane.b32.xlu0 %v3806, 8
    %v4145 = vpop.permute.xlu0 %4144
    %4148 = vrot.lane.b32.xlu0 %v3980, 16
    %v4149 = vpop.permute.xlu0 %4148
    %4152 = vrot.lane.b32.xlu0 %v4140, 24
    %v4153 = vpop.permute.xlu0 %4152
    %v4155 = vsel %vm712, %v3646, %v4145
    %v4156 = vsel %vm477, %v4155, %v4149
    %v4157 = vsel %vm1386, %v4156, %v4153
    %v4159 = vrot.slane %v4157, 7
    %v4161 = vsel %vm2063, %v3485, %v4159
    %s4162 = scalar_lea.vmem %s10, 32
    %v4163 = vld [vmem:[%s4162] sm:$0xff]
    %v4164 = vld [vmem:[%s4162 + $0x8] sm:$0xff]
    %v4165 = vld [vmem:[%s4162 + $0x10] sm:$0xff]
    %v4166 = vld [vmem:[%s4162 + $0x18] sm:$0xff]
    %v4168 = vsel %vm312, %v4161, 0
    %4170 = vmatprep.subr.mxu0 0.0
    %4171 = vmatpush1.msra.mxu0 0.0
    %4172 = vmatprep.subr.mxu0 0.0
    %4173 = vmatpush1.msra.mxu0 0.0
    %4174 = vmatprep.subr.mxu0 0.0
    %4175 = vmatpush1.msra.mxu0 0.0
    %4176 = vmatprep.subr.mxu0 0.0
    %4177 = vmatpush1.msra.mxu0 0.0
    %4178 = vmatprep.subr.mxu0 0.0
    %4179 = vmatpush1.msra.mxu0 0.0
    %4180 = vmatprep.subr.mxu0 0.0
    %4181 = vmatpush1.msra.mxu0 0.0
    %4182 = vmatprep.subr.mxu0 0.0
    %4183 = vmatpush1.msra.mxu0 0.0
    %4184 = vmatprep.subr.mxu0 0.0
    %4185 = vmatpush1.msra.mxu0 0.0
    %4186 = vmatprep.subr.mxu0 0.0
    %4187 = vmatpush1.msra.mxu0 0.0
    %4188 = vmatprep.subr.mxu0 0.0
    %4189 = vmatpush1.msra.mxu0 0.0
    %4190 = vmatprep.subr.mxu0 0.0
    %4191 = vmatpush1.msra.mxu0 0.0
    %4192 = vmatprep.subr.mxu0 0.0
    %4193 = vmatpush1.msra.mxu0 0.0
    %4194 = vmatprep.subr.mxu0 0.0
    %4195 = vmatpush1.msra.mxu0 %v4166
    %4196 = vmatprep.subr.mxu0 0.0
    %4197 = vmatpush1.msra.mxu0 %v4165
    %4198 = vmatprep.subr.mxu0 0.0
    %4199 = vmatpush1.msra.mxu0 %v4164
    %4200 = vmatprep.subr.mxu0 0.0
    %4201 = vmatpush1.msra.mxu0 %v4163
    %4202 = vmatprep.subr.mxu0 0.0
    %4203 = vmatpush2.msra.mxu0 0.0
    %4204 = vmatprep.subr.mxu0 0.0
    %4205 = vmatpush2.msra.mxu0 0.0
    %4206 = vmatprep.subr.mxu0 0.0
    %4207 = vmatpush2.msra.mxu0 0.0
    %4208 = vmatprep.subr.mxu0 0.0
    %4209 = vmatpush2.msra.mxu0 0.0
    %4210 = vmatprep.subr.mxu0 0.0
    %4211 = vmatpush2.msra.mxu0 0.0
    %4212 = vmatprep.subr.mxu0 0.0
    %4213 = vmatpush2.msra.mxu0 0.0
    %4214 = vmatprep.subr.mxu0 0.0
    %4215 = vmatpush2.msra.mxu0 0.0
    %4216 = vmatprep.subr.mxu0 0.0
    %4217 = vmatpush2.msra.mxu0 0.0
    %4218 = vmatprep.subr.mxu0 0.0
    %4219 = vmatpush2.msra.mxu0 0.0
    %4220 = vmatprep.subr.mxu0 0.0
    %4221 = vmatpush2.msra.mxu0 0.0
    %4222 = vmatprep.subr.mxu0 0.0
    %4223 = vmatpush2.msra.mxu0 0.0
    %4224 = vmatprep.subr.mxu0 0.0
    %4225 = vmatpush2.msra.mxu0 0.0
    %4226 = vmatprep.subr.mxu0 0.0
    %4227 = vmatpush2.msra.mxu0 0.0
    %4228 = vmatprep.subr.mxu0 0.0
    %4229 = vmatpush2.msra.mxu0 0.0
    %4230 = vmatprep.subr.mxu0 0.0
    %4231 = vmatpush2.msra.mxu0 0.0
    %4232 = vmatprep.subr.mxu0 0.0
    %4233 = vmatpush2.msra.mxu0 0.0
    %4234 = vmatprep.mubr.f32.mxu0 0.0
    %4235 = vmatmul.mubr.f32.gmra.mxu0 %v4168
    %v4236 = vpop.f32.mrf.mxu0
    %v4237 = vadd.f32 0.0, %v4236
    %v4238 = vpop.f32.mrf.mxu0
    %4239 = vdwg.mxu0
    %v4240 = vadd.f32 %v2404, %v4237
    %s4241 = scalar_lea.vmem [#allocation12], 1
    %v4242 = vld [vmem:[%s4241] sm:$0x1]
    %v4243 = vmul.f32 %v4240, %v4240
    %v4244 = vsel %vm292, %v4243, 0.0
    %4245 = vadd.xlane.f32.xlu0 %v4244
    %v4246 = vpop.xlane.xlu0 %4245
    %v4247 = vmul.f32 %v4246, %v296
    %v4248 = vadd.f32 %v4247, 1e-05
    %v4249 = vrsqrt.pop %v4248
    %v4250 = vmul.f32 %v4240, %v4249
    %v4252 = vlaneseq
    %v4253 = vshrl.u32 %v4252, 7
    %v4254 = vsub.s32 0, %v4253
    %v4255 = vrot.slane %v4242, %v4254
    %v4257 = vmul.f32 %v4250, %v4255
    %s4258 = scalar_lea.vmem %s11, 32
    %v4259 = vld [vmem:[%s4258] sm:$0xff]
    %v4260 = vld [vmem:[%s4258 + $0x8] sm:$0xff]
    %v4261 = vld [vmem:[%s4258 + $0x10] sm:$0xff]
    %v4262 = vld [vmem:[%s4258 + $0x18] sm:$0xff]
    %v4264 = vsel %vm312, %v4257, 0
    %4266 = vmatprep.subr.mxu0 0.0
    %4267 = vmatpush1.msra.mxu0 0.0
    %4268 = vmatprep.subr.mxu0 0.0
    %4269 = vmatpush1.msra.mxu0 0.0
    %4270 = vmatprep.subr.mxu0 0.0
    %4271 = vmatpush1.msra.mxu0 0.0
    %4272 = vmatprep.subr.mxu0 0.0
    %4273 = vmatpush1.msra.mxu0 0.0
    %4274 = vmatprep.subr.mxu0 0.0
    %4275 = vmatpush1.msra.mxu0 0.0
    %4276 = vmatprep.subr.mxu0 0.0
    %4277 = vmatpush1.msra.mxu0 0.0
    %4278 = vmatprep.subr.mxu0 0.0
    %4279 = vmatpush1.msra.mxu0 0.0
    %4280 = vmatprep.subr.mxu0 0.0
    %4281 = vmatpush1.msra.mxu0 0.0
    %4282 = vmatprep.subr.mxu0 0.0
    %4283 = vmatpush1.msra.mxu0 0.0
    %4284 = vmatprep.subr.mxu0 0.0
    %4285 = vmatpush1.msra.mxu0 0.0
    %4286 = vmatprep.subr.mxu0 0.0
    %4287 = vmatpush1.msra.mxu0 0.0
    %4288 = vmatprep.subr.mxu0 0.0
    %4289 = vmatpush1.msra.mxu0 0.0
    %4290 = vmatprep.subr.mxu0 0.0
    %4291 = vmatpush1.msra.mxu0 %v4262
    %4292 = vmatprep.subr.mxu0 0.0
    %4293 = vmatpush1.msra.mxu0 %v4261
    %4294 = vmatprep.subr.mxu0 0.0
    %4295 = vmatpush1.msra.mxu0 %v4260
    %4296 = vmatprep.subr.mxu0 0.0
    %4297 = vmatpush1.msra.mxu0 %v4259
    %4298 = vmatprep.subr.mxu0 0.0
    %4299 = vmatpush2.msra.mxu0 0.0
    %4300 = vmatprep.subr.mxu0 0.0
    %4301 = vmatpush2.msra.mxu0 0.0
    %4302 = vmatprep.subr.mxu0 0.0
    %4303 = vmatpush2.msra.mxu0 0.0
    %4304 = vmatprep.subr.mxu0 0.0
    %4305 = vmatpush2.msra.mxu0 0.0
    %4306 = vmatprep.subr.mxu0 0.0
    %4307 = vmatpush2.msra.mxu0 0.0
    %4308 = vmatprep.subr.mxu0 0.0
    %4309 = vmatpush2.msra.mxu0 0.0
    %4310 = vmatprep.subr.mxu0 0.0
    %4311 = vmatpush2.msra.mxu0 0.0
    %4312 = vmatprep.subr.mxu0 0.0
    %4313 = vmatpush2.msra.mxu0 0.0
    %4314 = vmatprep.subr.mxu0 0.0
    %4315 = vmatpush2.msra.mxu0 0.0
    %4316 = vmatprep.subr.mxu0 0.0
    %4317 = vmatpush2.msra.mxu0 0.0
    %4318 = vmatprep.subr.mxu0 0.0
    %4319 = vmatpush2.msra.mxu0 0.0
    %4320 = vmatprep.subr.mxu0 0.0
    %4321 = vmatpush2.msra.mxu0 0.0
    %4322 = vmatprep.subr.mxu0 0.0
    %4323 = vmatpush2.msra.mxu0 0.0
    %4324 = vmatprep.subr.mxu0 0.0
    %4325 = vmatpush2.msra.mxu0 0.0
    %4326 = vmatprep.subr.mxu0 0.0
    %4327 = vmatpush2.msra.mxu0 0.0
    %4328 = vmatprep.subr.mxu0 0.0
    %4329 = vmatpush2.msra.mxu0 0.0
    %4330 = vmatprep.mubr.f32.mxu0 0.0
    %4331 = vmatmul.mubr.f32.gmra.mxu0 %v4264
    %v4332 = vpop.f32.mrf.mxu0
    %v4333 = vadd.f32 0.0, %v4332
    %v4334 = vpop.f32.mrf.mxu0
    %4335 = vdwg.mxu0
    %s4336 = scalar_lea.vmem %s12, 32
    %v4337 = vld [vmem:[%s4336] sm:$0xff]
    %v4338 = vld [vmem:[%s4336 + $0x8] sm:$0xff]
    %v4339 = vld [vmem:[%s4336 + $0x10] sm:$0xff]
    %v4340 = vld [vmem:[%s4336 + $0x18] sm:$0xff]
    %4341 = vmatprep.subr.mxu0 0.0
    %4342 = vmatpush1.msra.mxu0 0.0
    %4343 = vmatprep.subr.mxu0 0.0
    %4344 = vmatpush1.msra.mxu0 0.0
    %4345 = vmatprep.subr.mxu0 0.0
    %4346 = vmatpush1.msra.mxu0 0.0
    %4347 = vmatprep.subr.mxu0 0.0
    %4348 = vmatpush1.msra.mxu0 0.0
    %4349 = vmatprep.subr.mxu0 0.0
    %4350 = vmatpush1.msra.mxu0 0.0
    %4351 = vmatprep.subr.mxu0 0.0
    %4352 = vmatpush1.msra.mxu0 0.0
    %4353 = vmatprep.subr.mxu0 0.0
    %4354 = vmatpush1.msra.mxu0 0.0
    %4355 = vmatprep.subr.mxu0 0.0
    %4356 = vmatpush1.msra.mxu0 0.0
    %4357 = vmatprep.subr.mxu0 0.0
    %4358 = vmatpush1.msra.mxu0 0.0
    %4359 = vmatprep.subr.mxu0 0.0
    %4360 = vmatpush1.msra.mxu0 0.0
    %4361 = vmatprep.subr.mxu0 0.0
    %4362 = vmatpush1.msra.mxu0 0.0
    %4363 = vmatprep.subr.mxu0 0.0
    %4364 = vmatpush1.msra.mxu0 0.0
    %4365 = vmatprep.subr.mxu0 0.0
    %4366 = vmatpush1.msra.mxu0 %v4340
    %4367 = vmatprep.subr.mxu0 0.0
    %4368 = vmatpush1.msra.mxu0 %v4339
    %4369 = vmatprep.subr.mxu0 0.0
    %4370 = vmatpush1.msra.mxu0 %v4338
    %4371 = vmatprep.subr.mxu0 0.0
    %4372 = vmatpush1.msra.mxu0 %v4337
    %4373 = vmatprep.subr.mxu0 0.0
    %4374 = vmatpush2.msra.mxu0 0.0
    %4375 = vmatprep.subr.mxu0 0.0
    %4376 = vmatpush2.msra.mxu0 0.0
    %4377 = vmatprep.subr.mxu0 0.0
    %4378 = vmatpush2.msra.mxu0 0.0
    %4379 = vmatprep.subr.mxu0 0.0
    %4380 = vmatpush2.msra.mxu0 0.0
    %4381 = vmatprep.subr.mxu0 0.0
    %4382 = vmatpush2.msra.mxu0 0.0
    %4383 = vmatprep.subr.mxu0 0.0
    %4384 = vmatpush2.msra.mxu0 0.0
    %4385 = vmatprep.subr.mxu0 0.0
    %4386 = vmatpush2.msra.mxu0 0.0
    %4387 = vmatprep.subr.mxu0 0.0
    %4388 = vmatpush2.msra.mxu0 0.0
    %4389 = vmatprep.subr.mxu0 0.0
    %4390 = vmatpush2.msra.mxu0 0.0
    %4391 = vmatprep.subr.mxu0 0.0
    %4392 = vmatpush2.msra.mxu0 0.0
    %4393 = vmatprep.subr.mxu0 0.0
    %4394 = vmatpush2.msra.mxu0 0.0
    %4395 = vmatprep.subr.mxu0 0.0
    %4396 = vmatpush2.msra.mxu0 0.0
    %4397 = vmatprep.subr.mxu0 0.0
    %4398 = vmatpush2.msra.mxu0 0.0
    %4399 = vmatprep.subr.mxu0 0.0
    %4400 = vmatpush2.msra.mxu0 0.0
    %4401 = vmatprep.subr.mxu0 0.0
    %4402 = vmatpush2.msra.mxu0 0.0
    %4403 = vmatprep.subr.mxu0 0.0
    %4404 = vmatpush2.msra.mxu0 0.0
    %4405 = vmatprep.mubr.f32.mxu0 0.0
    %4406 = vmatmul.mubr.f32.gmra.mxu0 %v4264
    %v4407 = vpop.f32.mrf.mxu0
    %v4408 = vadd.f32 0.0, %v4407
    %v4409 = vpop.f32.mrf.mxu0
    %4410 = vdwg.mxu0
    %v4411 = vsub.f32 0.0, %v4333
    %v4412 = vmul.f32 %v4411, 1.442695
    %v4413 = vpow.pop %v4412
    %v4414 = vadd.f32 %v4413, 1.0
    %v4415 = vrcp.pop %v4414
    %v4416 = vmul.f32 1.0, %v4415
    %v4417 = vmul.f32 %v4333, %v4416
    %v4418 = vmul.f32 %v4417, %v4408
    %s4419 = scalar_lea.vmem %s13, 96
    %v4420 = vld [vmem:[%s4419] sm:$0xff]
    %v4421 = vld [vmem:[%s4419 + $0x8] sm:$0xff]
    %v4422 = vld [vmem:[%s4419 + $0x10] sm:$0xff]
    %v4423 = vld [vmem:[%s4419 + $0x18] sm:$0xff]
    %v4424 = vld [vmem:[%s4419 + $0x20] sm:$0xff]
    %v4425 = vld [vmem:[%s4419 + $0x28] sm:$0xff]
    %v4426 = vld [vmem:[%s4419 + $0x30] sm:$0xff]
    %v4427 = vld [vmem:[%s4419 + $0x38] sm:$0xff]
    %v4428 = vld [vmem:[%s4419 + $0x40] sm:$0xff]
    %v4429 = vld [vmem:[%s4419 + $0x48] sm:$0xff]
    %v4430 = vld [vmem:[%s4419 + $0x50] sm:$0xff]
    %v4431 = vld [vmem:[%s4419 + $0x58] sm:$0xff]
    %v4433 = vsel %vm2330, %v4418, 0
    %4435 = vmatprep.subr.mxu0 0.0
    %4436 = vmatpush1.msra.mxu0 0.0
    %4437 = vmatprep.subr.mxu0 0.0
    %4438 = vmatpush1.msra.mxu0 0.0
    %4439 = vmatprep.subr.mxu0 0.0
    %4440 = vmatpush1.msra.mxu0 0.0
    %4441 = vmatprep.subr.mxu0 0.0
    %4442 = vmatpush1.msra.mxu0 0.0
    %4443 = vmatprep.subr.mxu0 0.0
    %4444 = vmatpush1.msra.mxu0 %v4431
    %4445 = vmatprep.subr.mxu0 0.0
    %4446 = vmatpush1.msra.mxu0 %v4430
    %4447 = vmatprep.subr.mxu0 0.0
    %4448 = vmatpush1.msra.mxu0 %v4429
    %4449 = vmatprep.subr.mxu0 0.0
    %4450 = vmatpush1.msra.mxu0 %v4428
    %4451 = vmatprep.subr.mxu0 0.0
    %4452 = vmatpush1.msra.mxu0 %v4427
    %4453 = vmatprep.subr.mxu0 0.0
    %4454 = vmatpush1.msra.mxu0 %v4426
    %4455 = vmatprep.subr.mxu0 0.0
    %4456 = vmatpush1.msra.mxu0 %v4425
    %4457 = vmatprep.subr.mxu0 0.0
    %4458 = vmatpush1.msra.mxu0 %v4424
    %4459 = vmatprep.subr.mxu0 0.0
    %4460 = vmatpush1.msra.mxu0 %v4423
    %4461 = vmatprep.subr.mxu0 0.0
    %4462 = vmatpush1.msra.mxu0 %v4422
    %4463 = vmatprep.subr.mxu0 0.0
    %4464 = vmatpush1.msra.mxu0 %v4421
    %4465 = vmatprep.subr.mxu0 0.0
    %4466 = vmatpush1.msra.mxu0 %v4420
    %4467 = vmatprep.subr.mxu0 0.0
    %4468 = vmatpush2.msra.mxu0 0.0
    %4469 = vmatprep.subr.mxu0 0.0
    %4470 = vmatpush2.msra.mxu0 0.0
    %4471 = vmatprep.subr.mxu0 0.0
    %4472 = vmatpush2.msra.mxu0 0.0
    %4473 = vmatprep.subr.mxu0 0.0
    %4474 = vmatpush2.msra.mxu0 0.0
    %4475 = vmatprep.subr.mxu0 0.0
    %4476 = vmatpush2.msra.mxu0 0.0
    %4477 = vmatprep.subr.mxu0 0.0
    %4478 = vmatpush2.msra.mxu0 0.0
    %4479 = vmatprep.subr.mxu0 0.0
    %4480 = vmatpush2.msra.mxu0 0.0
    %4481 = vmatprep.subr.mxu0 0.0
    %4482 = vmatpush2.msra.mxu0 0.0
    %4483 = vmatprep.subr.mxu0 0.0
    %4484 = vmatpush2.msra.mxu0 0.0
    %4485 = vmatprep.subr.mxu0 0.0
    %4486 = vmatpush2.msra.mxu0 0.0
    %4487 = vmatprep.subr.mxu0 0.0
    %4488 = vmatpush2.msra.mxu0 0.0
    %4489 = vmatprep.subr.mxu0 0.0
    %4490 = vmatpush2.msra.mxu0 0.0
    %4491 = vmatprep.subr.mxu0 0.0
    %4492 = vmatpush2.msra.mxu0 0.0
    %4493 = vmatprep.subr.mxu0 0.0
    %4494 = vmatpush2.msra.mxu0 0.0
    %4495 = vmatprep.subr.mxu0 0.0
    %4496 = vmatpush2.msra.mxu0 0.0
    %4497 = vmatprep.subr.mxu0 0.0
    %4498 = vmatpush2.msra.mxu0 0.0
    %4499 = vmatprep.mubr.f32.mxu0 0.0
    %4500 = vmatmul.mubr.f32.gmra.mxu0 %v4433
    %v4501 = vpop.f32.mrf.mxu0
    %v4502 = vadd.f32 0.0, %v4501
    %v4503 = vpop.f32.mrf.mxu0
    %4504 = vdwg.mxu0
    %v4505 = vadd.f32 %v4240, %v4502
    %v4506 = vld [vmem:[#allocation14] sm:$0x1]
    %v4507 = vmul.f32 %v4505, %v4505
    %v4508 = vsel %vm292, %v4507, 0.0
    %4509 = vadd.xlane.f32.xlu0 %v4508
    %v4510 = vpop.xlane.xlu0 %4509
    %v4511 = vmul.f32 %v4510, %v296
    %v4512 = vadd.f32 %v4511, 1e-05
    %v4513 = vrsqrt.pop %v4512
    %v4514 = vmul.f32 %v4505, %v4513
    %v4516 = vlaneseq
    %v4517 = vshrl.u32 %v4516, 7
    %v4518 = vsub.s32 0, %v4517
    %v4519 = vrot.slane %v4506, %v4518
    %v4521 = vmul.f32 %v4514, %v4519
    %v4522 = vld [vmem:[#allocation15] sm:$0xff]
    %v4523 = vld [vmem:[#allocation15 + $0x8] sm:$0xff]
    %v4524 = vld [vmem:[#allocation15 + $0x10] sm:$0xff]
    %v4525 = vld [vmem:[#allocation15 + $0x18] sm:$0xff]
    %v4527 = vsel %vm312, %v4521, 0
    %4529 = vmatprep.subr.mxu0 0.0
    %4530 = vmatpush1.msra.mxu0 0.0
    %4531 = vmatprep.subr.mxu0 0.0
    %4532 = vmatpush1.msra.mxu0 0.0
    %4533 = vmatprep.subr.mxu0 0.0
    %4534 = vmatpush1.msra.mxu0 0.0
    %4535 = vmatprep.subr.mxu0 0.0
    %4536 = vmatpush1.msra.mxu0 0.0
    %4537 = vmatprep.subr.mxu0 0.0
    %4538 = vmatpush1.msra.mxu0 0.0
    %4539 = vmatprep.subr.mxu0 0.0
    %4540 = vmatpush1.msra.mxu0 0.0
    %4541 = vmatprep.subr.mxu0 0.0
    %4542 = vmatpush1.msra.mxu0 0.0
    %4543 = vmatprep.subr.mxu0 0.0
    %4544 = vmatpush1.msra.mxu0 0.0
    %4545 = vmatprep.subr.mxu0 0.0
    %4546 = vmatpush1.msra.mxu0 0.0
    %4547 = vmatprep.subr.mxu0 0.0
    %4548 = vmatpush1.msra.mxu0 0.0
    %4549 = vmatprep.subr.mxu0 0.0
    %4550 = vmatpush1.msra.mxu0 0.0
    %4551 = vmatprep.subr.mxu0 0.0
    %4552 = vmatpush1.msra.mxu0 0.0
    %4553 = vmatprep.subr.mxu0 0.0
    %4554 = vmatpush1.msra.mxu0 %v4525
    %4555 = vmatprep.subr.mxu0 0.0
    %4556 = vmatpush1.msra.mxu0 %v4524
    %4557 = vmatprep.subr.mxu0 0.0
    %4558 = vmatpush1.msra.mxu0 %v4523
    %4559 = vmatprep.subr.mxu0 0.0
    %4560 = vmatpush1.msra.mxu0 %v4522
    %4561 = vmatprep.subr.mxu0 0.0
    %4562 = vmatpush2.msra.mxu0 0.0
    %4563 = vmatprep.subr.mxu0 0.0
    %4564 = vmatpush2.msra.mxu0 0.0
    %4565 = vmatprep.subr.mxu0 0.0
    %4566 = vmatpush2.msra.mxu0 0.0
    %4567 = vmatprep.subr.mxu0 0.0
    %4568 = vmatpush2.msra.mxu0 0.0
    %4569 = vmatprep.subr.mxu0 0.0
    %4570 = vmatpush2.msra.mxu0 0.0
    %4571 = vmatprep.subr.mxu0 0.0
    %4572 = vmatpush2.msra.mxu0 0.0
    %4573 = vmatprep.subr.mxu0 0.0
    %4574 = vmatpush2.msra.mxu0 0.0
    %4575 = vmatprep.subr.mxu0 0.0
    %4576 = vmatpush2.msra.mxu0 0.0
    %4577 = vmatprep.subr.mxu0 0.0
    %4578 = vmatpush2.msra.mxu0 0.0
    %4579 = vmatprep.subr.mxu0 0.0
    %4580 = vmatpush2.msra.mxu0 0.0
    %4581 = vmatprep.subr.mxu0 0.0
    %4582 = vmatpush2.msra.mxu0 0.0
    %4583 = vmatprep.subr.mxu0 0.0
    %4584 = vmatpush2.msra.mxu0 0.0
    %4585 = vmatprep.subr.mxu0 0.0
    %4586 = vmatpush2.msra.mxu0 0.0
    %4587 = vmatprep.subr.mxu0 0.0
    %4588 = vmatpush2.msra.mxu0 0.0
    %4589 = vmatprep.subr.mxu0 0.0
    %4590 = vmatpush2.msra.mxu0 0.0
    %4591 = vmatprep.subr.mxu0 0.0
    %4592 = vmatpush2.msra.mxu0 0.0
    %4593 = vmatprep.mubr.f32.mxu0 0.0
    %4594 = vmatmul.mubr.f32.gmra.mxu0 %v4527
    %v4595 = vpop.f32.mrf.mxu0
    %v4596 = vadd.f32 0.0, %v4595
    %v4597 = vpop.f32.mrf.mxu0
    %4598 = vdwg.mxu0
    %vm4599 = vcmask 517120
    %4600 = vst.msk [vmem:[#allocation18] sm:$0x3] %vm4599, %v4596
    // Predicated region
    $region110: #{decode_step.1} parent=1 // pred_check
      _
    $region111: #{decode_step.1} parent=1 // pred_check_branch
      %4602 = sbr.rel (0) target = $region113
    $region112: #{decode_step.1} parent=1 // pred_region
      %s4604 = ssub.s32 32, 32
      %4605 = vsyncadd [#allocation5], %s4604
      %s4607 = sshll.u32 [#allocation18], 4
      %s4608 = int_to_ptr.vmem [resolvable:$true] %s4607
      %4610 = dma.vmem_to_hbm [thread:$0]  %s4608, 32, %s18, [#allocation5]
    $region113: #{decode_step.1} parent=1 // pred_fallthru
      _
    // Predicated region
    $region114: #{decode_step.1} parent=1 // pred_check
      _
    $region115: #{decode_step.1} parent=1 // pred_check_branch
      %4612 = sbr.rel (0) target = $region117
    $region116: #{decode_step.1} parent=1 // pred_region
      %s4614 = ssub.s32 1024, 1024
      %4615 = vsyncadd [#allocation20], %s4614
      %s4616 = sshll.u32 [#allocation19], 4
      %s4617 = int_to_ptr.vmem [resolvable:$true] %s4616
      %4622 = dma.vmem_to_hbm [thread:$0]  %s4617, 1024, %s19, [#allocation20], 128, 128, 8
    $region117: #{decode_step.1} parent=1 // pred_fallthru
      _
    // Predicated region
    $region118: #{decode_step.1} parent=1 // pred_check
      _
    $region119: #{decode_step.1} parent=1 // pred_check_branch
      %4624 = sbr.rel (0) target = $region121
    $region120: #{decode_step.1} parent=1 // pred_region
      %s4626 = ssub.s32 1024, 1024
      %4627 = vsyncadd [#allocation20], %s4626
      %s4628 = sshll.u32 [#allocation21], 4
      %s4629 = int_to_ptr.vmem [resolvable:$true] %s4628
      %4634 = dma.vmem_to_hbm [thread:$0]  %s4629, 1024, %s20, [#allocation20], 128, 128, 8
    $region121: #{decode_step.1} parent=1 // pred_fallthru
      _
    // Predicated region
    $region122: #{decode_step.1} parent=1 // pred_check
      _
    $region123: #{decode_step.1} parent=1 // pred_check_branch
      %4636 = sbr.rel (0) target = $region125
    $region124: #{decode_step.1} parent=1 // pred_region
      %4637 = dma.done [#allocation5], 32
    $region125: #{decode_step.1} parent=1 // pred_fallthru
      _
    // Predicated region
    $region126: #{decode_step.1} parent=1 // pred_check
      _
    $region127: #{decode_step.1} parent=1 // pred_check_branch
      %4639 = sbr.rel (0) target = $region129
    $region128: #{decode_step.1} parent=1 // pred_region
      %4640 = dma.done [#allocation20], 1024
    $region129: #{decode_step.1} parent=1 // pred_fallthru
      _
    // Predicated region
    $region130: #{decode_step.1} parent=1 // pred_check
      _
    $region131: #{decode_step.1} parent=1 // pred_check_branch
      %4642 = sbr.rel (0) target = $region133
    $region132: #{decode_step.1} parent=1 // pred_region
      %4643 = dma.done [#allocation20], 1024
    $region133: #{decode_step.1} parent=1 // pred_fallthru
      _
    %4644 = vsyncpa [#allocation4], 1
    %4645 = vsyncpa [#allocation7], 1
    %4646 = vsyncpa [#allocation10], 1
    %4647 = vsyncpa [#allocation13], 1
    %4648 = vsyncpa [#allocation16], 1
    %4649 = vsyncpa [#allocation5], 1
    %4650 = vsyncpa [#allocation20], 1

</llo_original>
